<compile_context>
chip_gen: v5e
topology: v5e:2x2
jax: 0.10.0
libtpu: 0.0.40
codegen_flags: <defaults>
</compile_context>

<pallas_src>
import functools

import numpy as np
import jax
import jax.numpy as jnp
from jax import lax
from jax.experimental import pallas as pl
from jax.experimental.pallas import tpu as pltpu


# ----------------------------------------------------------------------------
# Fused RCUBlock kernel (one batch element per grid step)
# ----------------------------------------------------------------------------
def _rcu_kernel(x_ref, w_ref, b_ref, m_ref, o_ref, res_ref, *,
                H, W, C, n_blocks, n_stages):
    # x_ref  : (1, C, H*W)         input image, flattened NCHW, f32
    # w_ref  : (n_convs, 9, C, C)  per-tap weights, w[s, ky*3+kx] = W_oihw[:, :, ky, kx]
    # b_ref  : (n_blocks, C, 1)    biases of the j==0 convs only
    # m_ref  : (9, 1, H*W)         border masks (1 inside, 0 where a tap reads OOB)
    # o_ref  : (1, C, H*W)         output
    # res_ref: (C, H*W) f32 VMEM   residual parking spot (explicit, not SSA)
    HW = H * W
    cur = x_ref[0]                                        # (C, HW), f32

    for i in range(n_blocks):
        res_ref[...] = cur                                # residual = x
        for j in range(n_stages):
            s = i * n_stages + j
            a = jnp.maximum(cur, 0.0)                     # x = relu(x)

            # Center tap (ky=kx=1): no shift, no mask — start the accumulator.
            acc = jnp.dot(w_ref[s, 4], a,
                          preferred_element_type=jnp.float32)   # (C, HW)

            # 8 shifted taps: lane-roll of the flattened image + border mask,
            # each feeding one accumulating (C,C)@(C,HW) MXU matmul.
            for t in (0, 1, 2, 3, 5, 6, 7, 8):
                dy, dx = t // 3 - 1, t % 3 - 1
                shift = (-(dy * W + dx)) % HW             # rolled[r] = a[r + dy*W + dx]
                lhs = pltpu.roll(a, shift, axis=1) * m_ref[t]
                acc = acc + jnp.dot(w_ref[s, t], lhs,
                                    preferred_element_type=jnp.float32)

            if j == 0:                                    # only '_conv' has a bias
                acc = acc + b_ref[i]                      # (C,1) broadcast over lanes
            cur = acc
        cur = cur + res_ref[...]                          # x += residual

    o_ref[0] = cur


def rcu_pallas(x_flat, w_packed, b_packed, masks, H, W, n_blocks, n_stages):
    N, C, HW = x_flat.shape
    n_convs = n_blocks * n_stages
    kern = functools.partial(_rcu_kernel, H=H, W=W, C=C,
                             n_blocks=n_blocks, n_stages=n_stages)
    return pl.pallas_call(
        kern,
        out_shape=jax.ShapeDtypeStruct((N, C, HW), jnp.float32),
        grid_spec=pltpu.PrefetchScalarGridSpec(
            num_scalar_prefetch=0,
            grid=(N,),
            in_specs=[
                pl.BlockSpec((1, C, HW), lambda n: (n, 0, 0)),
                pl.BlockSpec((n_convs, 9, C, C), lambda n: (0, 0, 0, 0)),
                pl.BlockSpec((n_blocks, C, 1), lambda n: (0, 0, 0)),
                pl.BlockSpec((9, 1, HW), lambda n: (0, 0, 0)),
            ],
            out_specs=pl.BlockSpec((1, C, HW), lambda n: (n, 0, 0)),
            scratch_shapes=[pltpu.VMEM((C, HW), jnp.float32)],
        ),
        compiler_params=pltpu.CompilerParams(
            dimension_semantics=("parallel",)),
    )(x_flat, w_packed, b_packed, masks)


# ----------------------------------------------------------------------------
# Wrapper: parameter packing + layout glue (plain JAX / numpy constants)
# ----------------------------------------------------------------------------
def _make_tap_masks(H, W):
    """masks[t, 0, r] == 1 iff tap t = (ky*3+kx) reads inside the image at pixel r."""
    r = np.arange(H * W)
    h, w = r // W, r % W
    m = np.zeros((9, 1, H * W), np.float32)
    for t in range(9):
        dy, dx = t // 3 - 1, t % 3 - 1
        m[t, 0] = ((h + dy >= 0) & (h + dy < H) &
                   (w + dx >= 0) & (w + dx < W)).astype(np.float32)
    return jnp.asarray(m)


def init_rcu_params(key, planes, n_blocks=2, n_stages=2):
    """conv '{i+1}_conv' (j=0) has a bias; '{i+1}_conv_relu_varout_dimred' (j=1) has none."""
    params = {}
    keys = jax.random.split(key, 2 * n_blocks * n_stages)
    k = 0
    for i in range(n_blocks):
        for j in range(n_stages):
            params[f"w{i}{j}"] = (
                jax.random.normal(keys[k], (planes, planes, 3, 3), jnp.float32)
                * 0.05)
            k += 1
            if j == 0:
                params[f"b{i}{j}"] = (
                    jax.random.normal(keys[k], (planes,), jnp.float32) * 0.1)
            k += 1
    return params


def rcu_forward(params, x_nchw, n_blocks=2, n_stages=2):
    N, C, H, W = x_nchw.shape
    # Native NCHW order -> (N, C, H*W) is a free, contiguous reshape.
    x_flat = x_nchw.reshape(N, C, H * W).astype(jnp.float32)
    ws, bs = [], []
    for i in range(n_blocks):
        for j in range(n_stages):
            w = params[f"w{i}{j}"]                               # (O=C, I=C, 3, 3)
            # (O,I,3,3) -> (3,3,O,I) -> (9, O, I); tap index t = ky*3 + kx
            ws.append(jnp.transpose(w, (2, 3, 0, 1)).reshape(9, C, C))
        bs.append(params[f"b{i}0"].reshape(C, 1))                # only j==0 biases
    w_packed = jnp.stack(ws, axis=0)     # (n_convs, 9, C, C)
    b_packed = jnp.stack(bs, axis=0)     # (n_blocks, C, 1)
    masks = _make_tap_masks(H, W)        # (9, 1, H*W)
    out = rcu_pallas(x_flat, w_packed, b_packed, masks, H, W, n_blocks, n_stages)
    return out.reshape(N, C, H, W)


# ----------------------------------------------------------------------------
# Pure-JAX reference (lax.conv_general_dilated) for validation
# ----------------------------------------------------------------------------
def _ref_conv3x3(x_nchw, w_oihw, b):
    y = lax.conv_general_dilated(
        x_nchw, w_oihw, window_strides=(1, 1), padding=[(1, 1), (1, 1)],
        dimension_numbers=("NCHW", "OIHW", "NCHW"),
        precision=lax.Precision.HIGHEST)
    if b is not None:
        y = y + b[None, :, None, None]
    return y


def rcu_reference(params, x_nchw, n_blocks=2, n_stages=2):
    x = x_nchw.astype(jnp.float32)
    for i in range(n_blocks):
        residual = x
        for j in range(n_stages):
            x = jnp.maximum(x, 0.0)
            x = _ref_conv3x3(x, params[f"w{i}{j}"], params.get(f"b{i}{j}"))
        x = x + residual
    return x


if __name__ == "__main__":
    key = jax.random.PRNGKey(0)
    kx, kp = jax.random.split(key)

    # RCUBlock requires in_planes == out_planes for the residual add.
    N, C, H, W = 2, 32, 16, 16
    n_blocks, n_stages = 2, 2

    x = jax.random.normal(kx, (N, C, H, W), jnp.float32)
    params = init_rcu_params(kp, C, n_blocks, n_stages)

    fwd = jax.jit(rcu_forward, static_argnames=("n_blocks", "n_stages"))
    out = jax.block_until_ready(fwd(params, x, n_blocks=n_blocks,
                                    n_stages=n_stages))

    ref = rcu_reference(params, x, n_blocks, n_stages)
    assert out.shape == (N, C, H, W), out.shape
    max_err = float(jnp.max(jnp.abs(out - ref)))
    assert jnp.allclose(out, ref, rtol=2e-3, atol=2e-3), max_err

    print("KERNEL_OK")
</pallas_src>

<mosaic_0001>
module attributes {stable_mosaic.version = 11 : i64} {
  func.func @_rcu_kernel(%arg0: i32, %arg1: memref<1x32x256xf32, #tpu.memory_space<vmem>>, %arg2: memref<4x9x32x32xf32, #tpu.memory_space<vmem>>, %arg3: memref<2x32x1xf32, #tpu.memory_space<vmem>>, %arg4: memref<9x1x256xf32, #tpu.memory_space<vmem>>, %arg5: memref<1x32x256xf32, #tpu.memory_space<vmem>>, %arg6: memref<32x256xf32, #tpu.memory_space<vmem>>) attributes {dimension_semantics = [#tpu.dimension_semantics<parallel>], iteration_bounds = array<i64: 2>, scalar_prefetch = 0 : i64, scratch_operands = 1 : i64, tpu.core_type = #tpu.core_type<tc>, window_params = [{transform_indices = @transform_0, window_bounds = array<i64: 1, 32, 256>}, {pipeline_mode = #tpu.pipeline_mode<synchronous>, transform_indices = @transform_1, window_bounds = array<i64: 4, 9, 32, 32>}, {pipeline_mode = #tpu.pipeline_mode<synchronous>, transform_indices = @transform_2, window_bounds = array<i64: 2, 32, 1>}, {pipeline_mode = #tpu.pipeline_mode<synchronous>, transform_indices = @transform_3, window_bounds = array<i64: 9, 1, 256>}, {transform_indices = @transform_4, window_bounds = array<i64: 1, 32, 256>}]} {
    %c0 = arith.constant 0 : index
    %c0_0 = arith.constant 0 : index
    %c0_1 = arith.constant 0 : index
    %0 = vector.load %arg1[%c0, %c0_0, %c0_1] : memref<1x32x256xf32, #tpu.memory_space<vmem>>, vector<1x32x256xf32>
    %1 = vector.shape_cast %0 : vector<1x32x256xf32> to vector<32x256xf32>
    %c0_2 = arith.constant 0 : index
    %c0_3 = arith.constant 0 : index
    %2 = vector.load %arg6[%c0_2, %c0_3] : memref<32x256xf32, #tpu.memory_space<vmem>>, vector<32x256xf32>
    tpu.vector_store %arg6[%c0_2, %c0_3], %1 {strides = array<i32>} : memref<32x256xf32, #tpu.memory_space<vmem>>, vector<32x256xf32>,
    %cst = arith.constant 0.000000e+00 : f32
    %3 = vector.broadcast %cst : f32 to vector<32x256xf32>
    %4 = arith.maximumf %1, %3 : vector<32x256xf32>
    %c0_4 = arith.constant 0 : index
    %c4 = arith.constant 4 : index
    %c0_5 = arith.constant 0 : index
    %c0_6 = arith.constant 0 : index
    %5 = vector.load %arg2[%c0_4, %c4, %c0_5, %c0_6] : memref<4x9x32x32xf32, #tpu.memory_space<vmem>>, vector<1x1x32x32xf32>
    %6 = vector.shape_cast %5 : vector<1x1x32x32xf32> to vector<32x32xf32>
    %cst_7 = arith.constant dense<0.000000e+00> : vector<32x256xf32>
    %7 = tpu.matmul %6, %4, %cst_7 {dimension_numbers = #tpu.dot_dimension_numbers<[1], [0], [0], [1], [0, 0, 1, 1], [], []>} : vector<32x32xf32>, vector<32x256xf32>, vector<32x256xf32> -> vector<32x256xf32>
    %c17_i32 = arith.constant 17 : i32
    %8 = tpu.dynamic_rotate %4 by %c17_i32 dim 1 : vector<32x256xf32>, i32 -> vector<32x256xf32>
    %c0_8 = arith.constant 0 : index
    %c0_9 = arith.constant 0 : index
    %c0_10 = arith.constant 0 : index
    %9 = vector.load %arg4[%c0_8, %c0_9, %c0_10] : memref<9x1x256xf32, #tpu.memory_space<vmem>>, vector<1x1x256xf32>
    %10 = vector.shape_cast %9 : vector<1x1x256xf32> to vector<1x256xf32>
    %11 = vector.broadcast %10 : vector<1x256xf32> to vector<32x256xf32>
    %12 = arith.mulf %8, %11 : vector<32x256xf32>
    %c0_11 = arith.constant 0 : index
    %c0_12 = arith.constant 0 : index
    %c0_13 = arith.constant 0 : index
    %c0_14 = arith.constant 0 : index
    %13 = vector.load %arg2[%c0_11, %c0_12, %c0_13, %c0_14] : memref<4x9x32x32xf32, #tpu.memory_space<vmem>>, vector<1x1x32x32xf32>
    %14 = vector.shape_cast %13 : vector<1x1x32x32xf32> to vector<32x32xf32>
    %cst_15 = arith.constant dense<0.000000e+00> : vector<32x256xf32>
    %15 = tpu.matmul %14, %12, %cst_15 {dimension_numbers = #tpu.dot_dimension_numbers<[1], [0], [0], [1], [0, 0, 1, 1], [], []>} : vector<32x32xf32>, vector<32x256xf32>, vector<32x256xf32> -> vector<32x256xf32>
    %16 = arith.addf %7, %15 : vector<32x256xf32>
    %c16_i32 = arith.constant 16 : i32
    %17 = tpu.dynamic_rotate %4 by %c16_i32 dim 1 : vector<32x256xf32>, i32 -> vector<32x256xf32>
    %c1 = arith.constant 1 : index
    %c0_16 = arith.constant 0 : index
    %c0_17 = arith.constant 0 : index
    %18 = vector.load %arg4[%c1, %c0_16, %c0_17] : memref<9x1x256xf32, #tpu.memory_space<vmem>>, vector<1x1x256xf32>
    %19 = vector.shape_cast %18 : vector<1x1x256xf32> to vector<1x256xf32>
    %20 = vector.broadcast %19 : vector<1x256xf32> to vector<32x256xf32>
    %21 = arith.mulf %17, %20 : vector<32x256xf32>
    %c0_18 = arith.constant 0 : index
    %c1_19 = arith.constant 1 : index
    %c0_20 = arith.constant 0 : index
    %c0_21 = arith.constant 0 : index
    %22 = vector.load %arg2[%c0_18, %c1_19, %c0_20, %c0_21] : memref<4x9x32x32xf32, #tpu.memory_space<vmem>>, vector<1x1x32x32xf32>
    %23 = vector.shape_cast %22 : vector<1x1x32x32xf32> to vector<32x32xf32>
    %cst_22 = arith.constant dense<0.000000e+00> : vector<32x256xf32>
    %24 = tpu.matmul %23, %21, %cst_22 {dimension_numbers = #tpu.dot_dimension_numbers<[1], [0], [0], [1], [0, 0, 1, 1], [], []>} : vector<32x32xf32>, vector<32x256xf32>, vector<32x256xf32> -> vector<32x256xf32>
    %25 = arith.addf %16, %24 : vector<32x256xf32>
    %c15_i32 = arith.constant 15 : i32
    %26 = tpu.dynamic_rotate %4 by %c15_i32 dim 1 : vector<32x256xf32>, i32 -> vector<32x256xf32>
    %c2 = arith.constant 2 : index
    %c0_23 = arith.constant 0 : index
    %c0_24 = arith.constant 0 : index
    %27 = vector.load %arg4[%c2, %c0_23, %c0_24] : memref<9x1x256xf32, #tpu.memory_space<vmem>>, vector<1x1x256xf32>
    %28 = vector.shape_cast %27 : vector<1x1x256xf32> to vector<1x256xf32>
    %29 = vector.broadcast %28 : vector<1x256xf32> to vector<32x256xf32>
    %30 = arith.mulf %26, %29 : vector<32x256xf32>
    %c0_25 = arith.constant 0 : index
    %c2_26 = arith.constant 2 : index
    %c0_27 = arith.constant 0 : index
    %c0_28 = arith.constant 0 : index
    %31 = vector.load %arg2[%c0_25, %c2_26, %c0_27, %c0_28] : memref<4x9x32x32xf32, #tpu.memory_space<vmem>>, vector<1x1x32x32xf32>
    %32 = vector.shape_cast %31 : vector<1x1x32x32xf32> to vector<32x32xf32>
    %cst_29 = arith.constant dense<0.000000e+00> : vector<32x256xf32>
    %33 = tpu.matmul %32, %30, %cst_29 {dimension_numbers = #tpu.dot_dimension_numbers<[1], [0], [0], [1], [0, 0, 1, 1], [], []>} : vector<32x32xf32>, vector<32x256xf32>, vector<32x256xf32> -> vector<32x256xf32>
    %34 = arith.addf %25, %33 : vector<32x256xf32>
    %c1_i32 = arith.constant 1 : i32
    %35 = tpu.dynamic_rotate %4 by %c1_i32 dim 1 : vector<32x256xf32>, i32 -> vector<32x256xf32>
    %c3 = arith.constant 3 : index
    %c0_30 = arith.constant 0 : index
    %c0_31 = arith.constant 0 : index
    %36 = vector.load %arg4[%c3, %c0_30, %c0_31] : memref<9x1x256xf32, #tpu.memory_space<vmem>>, vector<1x1x256xf32>
    %37 = vector.shape_cast %36 : vector<1x1x256xf32> to vector<1x256xf32>
    %38 = vector.broadcast %37 : vector<1x256xf32> to vector<32x256xf32>
    %39 = arith.mulf %35, %38 : vector<32x256xf32>
    %c0_32 = arith.constant 0 : index
    %c3_33 = arith.constant 3 : index
    %c0_34 = arith.constant 0 : index
    %c0_35 = arith.constant 0 : index
    %40 = vector.load %arg2[%c0_32, %c3_33, %c0_34, %c0_35] : memref<4x9x32x32xf32, #tpu.memory_space<vmem>>, vector<1x1x32x32xf32>
    %41 = vector.shape_cast %40 : vector<1x1x32x32xf32> to vector<32x32xf32>
    %cst_36 = arith.constant dense<0.000000e+00> : vector<32x256xf32>
    %42 = tpu.matmul %41, %39, %cst_36 {dimension_numbers = #tpu.dot_dimension_numbers<[1], [0], [0], [1], [0, 0, 1, 1], [], []>} : vector<32x32xf32>, vector<32x256xf32>, vector<32x256xf32> -> vector<32x256xf32>
    %43 = arith.addf %34, %42 : vector<32x256xf32>
    %c255_i32 = arith.constant 255 : i32
    %44 = tpu.dynamic_rotate %4 by %c255_i32 dim 1 : vector<32x256xf32>, i32 -> vector<32x256xf32>
    %c5 = arith.constant 5 : index
    %c0_37 = arith.constant 0 : index
    %c0_38 = arith.constant 0 : index
    %45 = vector.load %arg4[%c5, %c0_37, %c0_38] : memref<9x1x256xf32, #tpu.memory_space<vmem>>, vector<1x1x256xf32>
    %46 = vector.shape_cast %45 : vector<1x1x256xf32> to vector<1x256xf32>
    %47 = vector.broadcast %46 : vector<1x256xf32> to vector<32x256xf32>
    %48 = arith.mulf %44, %47 : vector<32x256xf32>
    %c0_39 = arith.constant 0 : index
    %c5_40 = arith.constant 5 : index
    %c0_41 = arith.constant 0 : index
    %c0_42 = arith.constant 0 : index
    %49 = vector.load %arg2[%c0_39, %c5_40, %c0_41, %c0_42] : memref<4x9x32x32xf32, #tpu.memory_space<vmem>>, vector<1x1x32x32xf32>
    %50 = vector.shape_cast %49 : vector<1x1x32x32xf32> to vector<32x32xf32>
    %cst_43 = arith.constant dense<0.000000e+00> : vector<32x256xf32>
    %51 = tpu.matmul %50, %48, %cst_43 {dimension_numbers = #tpu.dot_dimension_numbers<[1], [0], [0], [1], [0, 0, 1, 1], [], []>} : vector<32x32xf32>, vector<32x256xf32>, vector<32x256xf32> -> vector<32x256xf32>
    %52 = arith.addf %43, %51 : vector<32x256xf32>
    %c241_i32 = arith.constant 241 : i32
    %53 = tpu.dynamic_rotate %4 by %c241_i32 dim 1 : vector<32x256xf32>, i32 -> vector<32x256xf32>
    %c6 = arith.constant 6 : index
    %c0_44 = arith.constant 0 : index
    %c0_45 = arith.constant 0 : index
    %54 = vector.load %arg4[%c6, %c0_44, %c0_45] : memref<9x1x256xf32, #tpu.memory_space<vmem>>, vector<1x1x256xf32>
    %55 = vector.shape_cast %54 : vector<1x1x256xf32> to vector<1x256xf32>
    %56 = vector.broadcast %55 : vector<1x256xf32> to vector<32x256xf32>
    %57 = arith.mulf %53, %56 : vector<32x256xf32>
    %c0_46 = arith.constant 0 : index
    %c6_47 = arith.constant 6 : index
    %c0_48 = arith.constant 0 : index
    %c0_49 = arith.constant 0 : index
    %58 = vector.load %arg2[%c0_46, %c6_47, %c0_48, %c0_49] : memref<4x9x32x32xf32, #tpu.memory_space<vmem>>, vector<1x1x32x32xf32>
    %59 = vector.shape_cast %58 : vector<1x1x32x32xf32> to vector<32x32xf32>
    %cst_50 = arith.constant dense<0.000000e+00> : vector<32x256xf32>
    %60 = tpu.matmul %59, %57, %cst_50 {dimension_numbers = #tpu.dot_dimension_numbers<[1], [0], [0], [1], [0, 0, 1, 1], [], []>} : vector<32x32xf32>, vector<32x256xf32>, vector<32x256xf32> -> vector<32x256xf32>
    %61 = arith.addf %52, %60 : vector<32x256xf32>
    %c240_i32 = arith.constant 240 : i32
    %62 = tpu.dynamic_rotate %4 by %c240_i32 dim 1 : vector<32x256xf32>, i32 -> vector<32x256xf32>
    %c7 = arith.constant 7 : index
    %c0_51 = arith.constant 0 : index
    %c0_52 = arith.constant 0 : index
    %63 = vector.load %arg4[%c7, %c0_51, %c0_52] : memref<9x1x256xf32, #tpu.memory_space<vmem>>, vector<1x1x256xf32>
    %64 = vector.shape_cast %63 : vector<1x1x256xf32> to vector<1x256xf32>
    %65 = vector.broadcast %64 : vector<1x256xf32> to vector<32x256xf32>
    %66 = arith.mulf %62, %65 : vector<32x256xf32>
    %c0_53 = arith.constant 0 : index
    %c7_54 = arith.constant 7 : index
    %c0_55 = arith.constant 0 : index
    %c0_56 = arith.constant 0 : index
    %67 = vector.load %arg2[%c0_53, %c7_54, %c0_55, %c0_56] : memref<4x9x32x32xf32, #tpu.memory_space<vmem>>, vector<1x1x32x32xf32>
    %68 = vector.shape_cast %67 : vector<1x1x32x32xf32> to vector<32x32xf32>
    %cst_57 = arith.constant dense<0.000000e+00> : vector<32x256xf32>
    %69 = tpu.matmul %68, %66, %cst_57 {dimension_numbers = #tpu.dot_dimension_numbers<[1], [0], [0], [1], [0, 0, 1, 1], [], []>} : vector<32x32xf32>, vector<32x256xf32>, vector<32x256xf32> -> vector<32x256xf32>
    %70 = arith.addf %61, %69 : vector<32x256xf32>
    %c239_i32 = arith.constant 239 : i32
    %71 = tpu.dynamic_rotate %4 by %c239_i32 dim 1 : vector<32x256xf32>, i32 -> vector<32x256xf32>
    %c8 = arith.constant 8 : index
    %c0_58 = arith.constant 0 : index
    %c0_59 = arith.constant 0 : index
    %72 = vector.load %arg4[%c8, %c0_58, %c0_59] : memref<9x1x256xf32, #tpu.memory_space<vmem>>, vector<1x1x256xf32>
    %73 = vector.shape_cast %72 : vector<1x1x256xf32> to vector<1x256xf32>
    %74 = vector.broadcast %73 : vector<1x256xf32> to vector<32x256xf32>
    %75 = arith.mulf %71, %74 : vector<32x256xf32>
    %c0_60 = arith.constant 0 : index
    %c8_61 = arith.constant 8 : index
    %c0_62 = arith.constant 0 : index
    %c0_63 = arith.constant 0 : index
    %76 = vector.load %arg2[%c0_60, %c8_61, %c0_62, %c0_63] : memref<4x9x32x32xf32, #tpu.memory_space<vmem>>, vector<1x1x32x32xf32>
    %77 = vector.shape_cast %76 : vector<1x1x32x32xf32> to vector<32x32xf32>
    %cst_64 = arith.constant dense<0.000000e+00> : vector<32x256xf32>
    %78 = tpu.matmul %77, %75, %cst_64 {dimension_numbers = #tpu.dot_dimension_numbers<[1], [0], [0], [1], [0, 0, 1, 1], [], []>} : vector<32x32xf32>, vector<32x256xf32>, vector<32x256xf32> -> vector<32x256xf32>
    %79 = arith.addf %70, %78 : vector<32x256xf32>
    %c0_65 = arith.constant 0 : index
    %c0_66 = arith.constant 0 : index
    %c0_67 = arith.constant 0 : index
    %80 = vector.load %arg3[%c0_65, %c0_66, %c0_67] : memref<2x32x1xf32, #tpu.memory_space<vmem>>, vector<1x32x1xf32>
    %81 = vector.shape_cast %80 : vector<1x32x1xf32> to vector<32x1xf32>
    %82 = vector.broadcast %81 : vector<32x1xf32> to vector<32x256xf32>
    %83 = arith.addf %79, %82 : vector<32x256xf32>
    %cst_68 = arith.constant 0.000000e+00 : f32
    %84 = vector.broadcast %cst_68 : f32 to vector<32x256xf32>
    %85 = arith.maximumf %83, %84 : vector<32x256xf32>
    %c1_69 = arith.constant 1 : index
    %c4_70 = arith.constant 4 : index
    %c0_71 = arith.constant 0 : index
    %c0_72 = arith.constant 0 : index
    %86 = vector.load %arg2[%c1_69, %c4_70, %c0_71, %c0_72] : memref<4x9x32x32xf32, #tpu.memory_space<vmem>>, vector<1x1x32x32xf32>
    %87 = vector.shape_cast %86 : vector<1x1x32x32xf32> to vector<32x32xf32>
    %cst_73 = arith.constant dense<0.000000e+00> : vector<32x256xf32>
    %88 = tpu.matmul %87, %85, %cst_73 {dimension_numbers = #tpu.dot_dimension_numbers<[1], [0], [0], [1], [0, 0, 1, 1], [], []>} : vector<32x32xf32>, vector<32x256xf32>, vector<32x256xf32> -> vector<32x256xf32>
    %c17_i32_74 = arith.constant 17 : i32
    %89 = tpu.dynamic_rotate %85 by %c17_i32_74 dim 1 : vector<32x256xf32>, i32 -> vector<32x256xf32>
    %c0_75 = arith.constant 0 : index
    %c0_76 = arith.constant 0 : index
    %c0_77 = arith.constant 0 : index
    %90 = vector.load %arg4[%c0_75, %c0_76, %c0_77] : memref<9x1x256xf32, #tpu.memory_space<vmem>>, vector<1x1x256xf32>
    %91 = vector.shape_cast %90 : vector<1x1x256xf32> to vector<1x256xf32>
    %92 = vector.broadcast %91 : vector<1x256xf32> to vector<32x256xf32>
    %93 = arith.mulf %89, %92 : vector<32x256xf32>
    %c1_78 = arith.constant 1 : index
    %c0_79 = arith.constant 0 : index
    %c0_80 = arith.constant 0 : index
    %c0_81 = arith.constant 0 : index
    %94 = vector.load %arg2[%c1_78, %c0_79, %c0_80, %c0_81] : memref<4x9x32x32xf32, #tpu.memory_space<vmem>>, vector<1x1x32x32xf32>
    %95 = vector.shape_cast %94 : vector<1x1x32x32xf32> to vector<32x32xf32>
    %cst_82 = arith.constant dense<0.000000e+00> : vector<32x256xf32>
    %96 = tpu.matmul %95, %93, %cst_82 {dimension_numbers = #tpu.dot_dimension_numbers<[1], [0], [0], [1], [0, 0, 1, 1], [], []>} : vector<32x32xf32>, vector<32x256xf32>, vector<32x256xf32> -> vector<32x256xf32>
    %97 = arith.addf %88, %96 : vector<32x256xf32>
    %c16_i32_83 = arith.constant 16 : i32
    %98 = tpu.dynamic_rotate %85 by %c16_i32_83 dim 1 : vector<32x256xf32>, i32 -> vector<32x256xf32>
    %c1_84 = arith.constant 1 : index
    %c0_85 = arith.constant 0 : index
    %c0_86 = arith.constant 0 : index
    %99 = vector.load %arg4[%c1_84, %c0_85, %c0_86] : memref<9x1x256xf32, #tpu.memory_space<vmem>>, vector<1x1x256xf32>
    %100 = vector.shape_cast %99 : vector<1x1x256xf32> to vector<1x256xf32>
    %101 = vector.broadcast %100 : vector<1x256xf32> to vector<32x256xf32>
    %102 = arith.mulf %98, %101 : vector<32x256xf32>
    %c1_87 = arith.constant 1 : index
    %c1_88 = arith.constant 1 : index
    %c0_89 = arith.constant 0 : index
    %c0_90 = arith.constant 0 : index
    %103 = vector.load %arg2[%c1_87, %c1_88, %c0_89, %c0_90] : memref<4x9x32x32xf32, #tpu.memory_space<vmem>>, vector<1x1x32x32xf32>
    %104 = vector.shape_cast %103 : vector<1x1x32x32xf32> to vector<32x32xf32>
    %cst_91 = arith.constant dense<0.000000e+00> : vector<32x256xf32>
    %105 = tpu.matmul %104, %102, %cst_91 {dimension_numbers = #tpu.dot_dimension_numbers<[1], [0], [0], [1], [0, 0, 1, 1], [], []>} : vector<32x32xf32>, vector<32x256xf32>, vector<32x256xf32> -> vector<32x256xf32>
    %106 = arith.addf %97, %105 : vector<32x256xf32>
    %c15_i32_92 = arith.constant 15 : i32
    %107 = tpu.dynamic_rotate %85 by %c15_i32_92 dim 1 : vector<32x256xf32>, i32 -> vector<32x256xf32>
    %c2_93 = arith.constant 2 : index
    %c0_94 = arith.constant 0 : index
    %c0_95 = arith.constant 0 : index
    %108 = vector.load %arg4[%c2_93, %c0_94, %c0_95] : memref<9x1x256xf32, #tpu.memory_space<vmem>>, vector<1x1x256xf32>
    %109 = vector.shape_cast %108 : vector<1x1x256xf32> to vector<1x256xf32>
    %110 = vector.broadcast %109 : vector<1x256xf32> to vector<32x256xf32>
    %111 = arith.mulf %107, %110 : vector<32x256xf32>
    %c1_96 = arith.constant 1 : index
    %c2_97 = arith.constant 2 : index
    %c0_98 = arith.constant 0 : index
    %c0_99 = arith.constant 0 : index
    %112 = vector.load %arg2[%c1_96, %c2_97, %c0_98, %c0_99] : memref<4x9x32x32xf32, #tpu.memory_space<vmem>>, vector<1x1x32x32xf32>
    %113 = vector.shape_cast %112 : vector<1x1x32x32xf32> to vector<32x32xf32>
    %cst_100 = arith.constant dense<0.000000e+00> : vector<32x256xf32>
    %114 = tpu.matmul %113, %111, %cst_100 {dimension_numbers = #tpu.dot_dimension_numbers<[1], [0], [0], [1], [0, 0, 1, 1], [], []>} : vector<32x32xf32>, vector<32x256xf32>, vector<32x256xf32> -> vector<32x256xf32>
    %115 = arith.addf %106, %114 : vector<32x256xf32>
    %c1_i32_101 = arith.constant 1 : i32
    %116 = tpu.dynamic_rotate %85 by %c1_i32_101 dim 1 : vector<32x256xf32>, i32 -> vector<32x256xf32>
    %c3_102 = arith.constant 3 : index
    %c0_103 = arith.constant 0 : index
    %c0_104 = arith.constant 0 : index
    %117 = vector.load %arg4[%c3_102, %c0_103, %c0_104] : memref<9x1x256xf32, #tpu.memory_space<vmem>>, vector<1x1x256xf32>
    %118 = vector.shape_cast %117 : vector<1x1x256xf32> to vector<1x256xf32>
    %119 = vector.broadcast %118 : vector<1x256xf32> to vector<32x256xf32>
    %120 = arith.mulf %116, %119 : vector<32x256xf32>
    %c1_105 = arith.constant 1 : index
    %c3_106 = arith.constant 3 : index
    %c0_107 = arith.constant 0 : index
    %c0_108 = arith.constant 0 : index
    %121 = vector.load %arg2[%c1_105, %c3_106, %c0_107, %c0_108] : memref<4x9x32x32xf32, #tpu.memory_space<vmem>>, vector<1x1x32x32xf32>
    %122 = vector.shape_cast %121 : vector<1x1x32x32xf32> to vector<32x32xf32>
    %cst_109 = arith.constant dense<0.000000e+00> : vector<32x256xf32>
    %123 = tpu.matmul %122, %120, %cst_109 {dimension_numbers = #tpu.dot_dimension_numbers<[1], [0], [0], [1], [0, 0, 1, 1], [], []>} : vector<32x32xf32>, vector<32x256xf32>, vector<32x256xf32> -> vector<32x256xf32>
    %124 = arith.addf %115, %123 : vector<32x256xf32>
    %c255_i32_110 = arith.constant 255 : i32
    %125 = tpu.dynamic_rotate %85 by %c255_i32_110 dim 1 : vector<32x256xf32>, i32 -> vector<32x256xf32>
    %c5_111 = arith.constant 5 : index
    %c0_112 = arith.constant 0 : index
    %c0_113 = arith.constant 0 : index
    %126 = vector.load %arg4[%c5_111, %c0_112, %c0_113] : memref<9x1x256xf32, #tpu.memory_space<vmem>>, vector<1x1x256xf32>
    %127 = vector.shape_cast %126 : vector<1x1x256xf32> to vector<1x256xf32>
    %128 = vector.broadcast %127 : vector<1x256xf32> to vector<32x256xf32>
    %129 = arith.mulf %125, %128 : vector<32x256xf32>
    %c1_114 = arith.constant 1 : index
    %c5_115 = arith.constant 5 : index
    %c0_116 = arith.constant 0 : index
    %c0_117 = arith.constant 0 : index
    %130 = vector.load %arg2[%c1_114, %c5_115, %c0_116, %c0_117] : memref<4x9x32x32xf32, #tpu.memory_space<vmem>>, vector<1x1x32x32xf32>
    %131 = vector.shape_cast %130 : vector<1x1x32x32xf32> to vector<32x32xf32>
    %cst_118 = arith.constant dense<0.000000e+00> : vector<32x256xf32>
    %132 = tpu.matmul %131, %129, %cst_118 {dimension_numbers = #tpu.dot_dimension_numbers<[1], [0], [0], [1], [0, 0, 1, 1], [], []>} : vector<32x32xf32>, vector<32x256xf32>, vector<32x256xf32> -> vector<32x256xf32>
    %133 = arith.addf %124, %132 : vector<32x256xf32>
    %c241_i32_119 = arith.constant 241 : i32
    %134 = tpu.dynamic_rotate %85 by %c241_i32_119 dim 1 : vector<32x256xf32>, i32 -> vector<32x256xf32>
    %c6_120 = arith.constant 6 : index
    %c0_121 = arith.constant 0 : index
    %c0_122 = arith.constant 0 : index
    %135 = vector.load %arg4[%c6_120, %c0_121, %c0_122] : memref<9x1x256xf32, #tpu.memory_space<vmem>>, vector<1x1x256xf32>
    %136 = vector.shape_cast %135 : vector<1x1x256xf32> to vector<1x256xf32>
    %137 = vector.broadcast %136 : vector<1x256xf32> to vector<32x256xf32>
    %138 = arith.mulf %134, %137 : vector<32x256xf32>
    %c1_123 = arith.constant 1 : index
    %c6_124 = arith.constant 6 : index
    %c0_125 = arith.constant 0 : index
    %c0_126 = arith.constant 0 : index
    %139 = vector.load %arg2[%c1_123, %c6_124, %c0_125, %c0_126] : memref<4x9x32x32xf32, #tpu.memory_space<vmem>>, vector<1x1x32x32xf32>
    %140 = vector.shape_cast %139 : vector<1x1x32x32xf32> to vector<32x32xf32>
    %cst_127 = arith.constant dense<0.000000e+00> : vector<32x256xf32>
    %141 = tpu.matmul %140, %138, %cst_127 {dimension_numbers = #tpu.dot_dimension_numbers<[1], [0], [0], [1], [0, 0, 1, 1], [], []>} : vector<32x32xf32>, vector<32x256xf32>, vector<32x256xf32> -> vector<32x256xf32>
    %142 = arith.addf %133, %141 : vector<32x256xf32>
    %c240_i32_128 = arith.constant 240 : i32
    %143 = tpu.dynamic_rotate %85 by %c240_i32_128 dim 1 : vector<32x256xf32>, i32 -> vector<32x256xf32>
    %c7_129 = arith.constant 7 : index
    %c0_130 = arith.constant 0 : index
    %c0_131 = arith.constant 0 : index
    %144 = vector.load %arg4[%c7_129, %c0_130, %c0_131] : memref<9x1x256xf32, #tpu.memory_space<vmem>>, vector<1x1x256xf32>
    %145 = vector.shape_cast %144 : vector<1x1x256xf32> to vector<1x256xf32>
    %146 = vector.broadcast %145 : vector<1x256xf32> to vector<32x256xf32>
    %147 = arith.mulf %143, %146 : vector<32x256xf32>
    %c1_132 = arith.constant 1 : index
    %c7_133 = arith.constant 7 : index
    %c0_134 = arith.constant 0 : index
    %c0_135 = arith.constant 0 : index
    %148 = vector.load %arg2[%c1_132, %c7_133, %c0_134, %c0_135] : memref<4x9x32x32xf32, #tpu.memory_space<vmem>>, vector<1x1x32x32xf32>
    %149 = vector.shape_cast %148 : vector<1x1x32x32xf32> to vector<32x32xf32>
    %cst_136 = arith.constant dense<0.000000e+00> : vector<32x256xf32>
    %150 = tpu.matmul %149, %147, %cst_136 {dimension_numbers = #tpu.dot_dimension_numbers<[1], [0], [0], [1], [0, 0, 1, 1], [], []>} : vector<32x32xf32>, vector<32x256xf32>, vector<32x256xf32> -> vector<32x256xf32>
    %151 = arith.addf %142, %150 : vector<32x256xf32>
    %c239_i32_137 = arith.constant 239 : i32
    %152 = tpu.dynamic_rotate %85 by %c239_i32_137 dim 1 : vector<32x256xf32>, i32 -> vector<32x256xf32>
    %c8_138 = arith.constant 8 : index
    %c0_139 = arith.constant 0 : index
    %c0_140 = arith.constant 0 : index
    %153 = vector.load %arg4[%c8_138, %c0_139, %c0_140] : memref<9x1x256xf32, #tpu.memory_space<vmem>>, vector<1x1x256xf32>
    %154 = vector.shape_cast %153 : vector<1x1x256xf32> to vector<1x256xf32>
    %155 = vector.broadcast %154 : vector<1x256xf32> to vector<32x256xf32>
    %156 = arith.mulf %152, %155 : vector<32x256xf32>
    %c1_141 = arith.constant 1 : index
    %c8_142 = arith.constant 8 : index
    %c0_143 = arith.constant 0 : index
    %c0_144 = arith.constant 0 : index
    %157 = vector.load %arg2[%c1_141, %c8_142, %c0_143, %c0_144] : memref<4x9x32x32xf32, #tpu.memory_space<vmem>>, vector<1x1x32x32xf32>
    %158 = vector.shape_cast %157 : vector<1x1x32x32xf32> to vector<32x32xf32>
    %cst_145 = arith.constant dense<0.000000e+00> : vector<32x256xf32>
    %159 = tpu.matmul %158, %156, %cst_145 {dimension_numbers = #tpu.dot_dimension_numbers<[1], [0], [0], [1], [0, 0, 1, 1], [], []>} : vector<32x32xf32>, vector<32x256xf32>, vector<32x256xf32> -> vector<32x256xf32>
    %160 = arith.addf %151, %159 : vector<32x256xf32>
    %c0_146 = arith.constant 0 : index
    %c0_147 = arith.constant 0 : index
    %161 = vector.load %arg6[%c0_146, %c0_147] : memref<32x256xf32, #tpu.memory_space<vmem>>, vector<32x256xf32>
    %162 = arith.addf %160, %161 : vector<32x256xf32>
    %c0_148 = arith.constant 0 : index
    %c0_149 = arith.constant 0 : index
    %163 = vector.load %arg6[%c0_148, %c0_149] : memref<32x256xf32, #tpu.memory_space<vmem>>, vector<32x256xf32>
    tpu.vector_store %arg6[%c0_148, %c0_149], %162 {strides = array<i32>} : memref<32x256xf32, #tpu.memory_space<vmem>>, vector<32x256xf32>,
    %cst_150 = arith.constant 0.000000e+00 : f32
    %164 = vector.broadcast %cst_150 : f32 to vector<32x256xf32>
    %165 = arith.maximumf %162, %164 : vector<32x256xf32>
    %c2_151 = arith.constant 2 : index
    %c4_152 = arith.constant 4 : index
    %c0_153 = arith.constant 0 : index
    %c0_154 = arith.constant 0 : index
    %166 = vector.load %arg2[%c2_151, %c4_152, %c0_153, %c0_154] : memref<4x9x32x32xf32, #tpu.memory_space<vmem>>, vector<1x1x32x32xf32>
    %167 = vector.shape_cast %166 : vector<1x1x32x32xf32> to vector<32x32xf32>
    %cst_155 = arith.constant dense<0.000000e+00> : vector<32x256xf32>
    %168 = tpu.matmul %167, %165, %cst_155 {dimension_numbers = #tpu.dot_dimension_numbers<[1], [0], [0], [1], [0, 0, 1, 1], [], []>} : vector<32x32xf32>, vector<32x256xf32>, vector<32x256xf32> -> vector<32x256xf32>
    %c17_i32_156 = arith.constant 17 : i32
    %169 = tpu.dynamic_rotate %165 by %c17_i32_156 dim 1 : vector<32x256xf32>, i32 -> vector<32x256xf32>
    %c0_157 = arith.constant 0 : index
    %c0_158 = arith.constant 0 : index
    %c0_159 = arith.constant 0 : index
    %170 = vector.load %arg4[%c0_157, %c0_158, %c0_159] : memref<9x1x256xf32, #tpu.memory_space<vmem>>, vector<1x1x256xf32>
    %171 = vector.shape_cast %170 : vector<1x1x256xf32> to vector<1x256xf32>
    %172 = vector.broadcast %171 : vector<1x256xf32> to vector<32x256xf32>
    %173 = arith.mulf %169, %172 : vector<32x256xf32>
    %c2_160 = arith.constant 2 : index
    %c0_161 = arith.constant 0 : index
    %c0_162 = arith.constant 0 : index
    %c0_163 = arith.constant 0 : index
    %174 = vector.load %arg2[%c2_160, %c0_161, %c0_162, %c0_163] : memref<4x9x32x32xf32, #tpu.memory_space<vmem>>, vector<1x1x32x32xf32>
    %175 = vector.shape_cast %174 : vector<1x1x32x32xf32> to vector<32x32xf32>
    %cst_164 = arith.constant dense<0.000000e+00> : vector<32x256xf32>
    %176 = tpu.matmul %175, %173, %cst_164 {dimension_numbers = #tpu.dot_dimension_numbers<[1], [0], [0], [1], [0, 0, 1, 1], [], []>} : vector<32x32xf32>, vector<32x256xf32>, vector<32x256xf32> -> vector<32x256xf32>
    %177 = arith.addf %168, %176 : vector<32x256xf32>
    %c16_i32_165 = arith.constant 16 : i32
    %178 = tpu.dynamic_rotate %165 by %c16_i32_165 dim 1 : vector<32x256xf32>, i32 -> vector<32x256xf32>
    %c1_166 = arith.constant 1 : index
    %c0_167 = arith.constant 0 : index
    %c0_168 = arith.constant 0 : index
    %179 = vector.load %arg4[%c1_166, %c0_167, %c0_168] : memref<9x1x256xf32, #tpu.memory_space<vmem>>, vector<1x1x256xf32>
    %180 = vector.shape_cast %179 : vector<1x1x256xf32> to vector<1x256xf32>
    %181 = vector.broadcast %180 : vector<1x256xf32> to vector<32x256xf32>
    %182 = arith.mulf %178, %181 : vector<32x256xf32>
    %c2_169 = arith.constant 2 : index
    %c1_170 = arith.constant 1 : index
    %c0_171 = arith.constant 0 : index
    %c0_172 = arith.constant 0 : index
    %183 = vector.load %arg2[%c2_169, %c1_170, %c0_171, %c0_172] : memref<4x9x32x32xf32, #tpu.memory_space<vmem>>, vector<1x1x32x32xf32>
    %184 = vector.shape_cast %183 : vector<1x1x32x32xf32> to vector<32x32xf32>
    %cst_173 = arith.constant dense<0.000000e+00> : vector<32x256xf32>
    %185 = tpu.matmul %184, %182, %cst_173 {dimension_numbers = #tpu.dot_dimension_numbers<[1], [0], [0], [1], [0, 0, 1, 1], [], []>} : vector<32x32xf32>, vector<32x256xf32>, vector<32x256xf32> -> vector<32x256xf32>
    %186 = arith.addf %177, %185 : vector<32x256xf32>
    %c15_i32_174 = arith.constant 15 : i32
    %187 = tpu.dynamic_rotate %165 by %c15_i32_174 dim 1 : vector<32x256xf32>, i32 -> vector<32x256xf32>
    %c2_175 = arith.constant 2 : index
    %c0_176 = arith.constant 0 : index
    %c0_177 = arith.constant 0 : index
    %188 = vector.load %arg4[%c2_175, %c0_176, %c0_177] : memref<9x1x256xf32, #tpu.memory_space<vmem>>, vector<1x1x256xf32>
    %189 = vector.shape_cast %188 : vector<1x1x256xf32> to vector<1x256xf32>
    %190 = vector.broadcast %189 : vector<1x256xf32> to vector<32x256xf32>
    %191 = arith.mulf %187, %190 : vector<32x256xf32>
    %c2_178 = arith.constant 2 : index
    %c2_179 = arith.constant 2 : index
    %c0_180 = arith.constant 0 : index
    %c0_181 = arith.constant 0 : index
    %192 = vector.load %arg2[%c2_178, %c2_179, %c0_180, %c0_181] : memref<4x9x32x32xf32, #tpu.memory_space<vmem>>, vector<1x1x32x32xf32>
    %193 = vector.shape_cast %192 : vector<1x1x32x32xf32> to vector<32x32xf32>
    %cst_182 = arith.constant dense<0.000000e+00> : vector<32x256xf32>
    %194 = tpu.matmul %193, %191, %cst_182 {dimension_numbers = #tpu.dot_dimension_numbers<[1], [0], [0], [1], [0, 0, 1, 1], [], []>} : vector<32x32xf32>, vector<32x256xf32>, vector<32x256xf32> -> vector<32x256xf32>
    %195 = arith.addf %186, %194 : vector<32x256xf32>
    %c1_i32_183 = arith.constant 1 : i32
    %196 = tpu.dynamic_rotate %165 by %c1_i32_183 dim 1 : vector<32x256xf32>, i32 -> vector<32x256xf32>
    %c3_184 = arith.constant 3 : index
    %c0_185 = arith.constant 0 : index
    %c0_186 = arith.constant 0 : index
    %197 = vector.load %arg4[%c3_184, %c0_185, %c0_186] : memref<9x1x256xf32, #tpu.memory_space<vmem>>, vector<1x1x256xf32>
    %198 = vector.shape_cast %197 : vector<1x1x256xf32> to vector<1x256xf32>
    %199 = vector.broadcast %198 : vector<1x256xf32> to vector<32x256xf32>
    %200 = arith.mulf %196, %199 : vector<32x256xf32>
    %c2_187 = arith.constant 2 : index
    %c3_188 = arith.constant 3 : index
    %c0_189 = arith.constant 0 : index
    %c0_190 = arith.constant 0 : index
    %201 = vector.load %arg2[%c2_187, %c3_188, %c0_189, %c0_190] : memref<4x9x32x32xf32, #tpu.memory_space<vmem>>, vector<1x1x32x32xf32>
    %202 = vector.shape_cast %201 : vector<1x1x32x32xf32> to vector<32x32xf32>
    %cst_191 = arith.constant dense<0.000000e+00> : vector<32x256xf32>
    %203 = tpu.matmul %202, %200, %cst_191 {dimension_numbers = #tpu.dot_dimension_numbers<[1], [0], [0], [1], [0, 0, 1, 1], [], []>} : vector<32x32xf32>, vector<32x256xf32>, vector<32x256xf32> -> vector<32x256xf32>
    %204 = arith.addf %195, %203 : vector<32x256xf32>
    %c255_i32_192 = arith.constant 255 : i32
    %205 = tpu.dynamic_rotate %165 by %c255_i32_192 dim 1 : vector<32x256xf32>, i32 -> vector<32x256xf32>
    %c5_193 = arith.constant 5 : index
    %c0_194 = arith.constant 0 : index
    %c0_195 = arith.constant 0 : index
    %206 = vector.load %arg4[%c5_193, %c0_194, %c0_195] : memref<9x1x256xf32, #tpu.memory_space<vmem>>, vector<1x1x256xf32>
    %207 = vector.shape_cast %206 : vector<1x1x256xf32> to vector<1x256xf32>
    %208 = vector.broadcast %207 : vector<1x256xf32> to vector<32x256xf32>
    %209 = arith.mulf %205, %208 : vector<32x256xf32>
    %c2_196 = arith.constant 2 : index
    %c5_197 = arith.constant 5 : index
    %c0_198 = arith.constant 0 : index
    %c0_199 = arith.constant 0 : index
    %210 = vector.load %arg2[%c2_196, %c5_197, %c0_198, %c0_199] : memref<4x9x32x32xf32, #tpu.memory_space<vmem>>, vector<1x1x32x32xf32>
    %211 = vector.shape_cast %210 : vector<1x1x32x32xf32> to vector<32x32xf32>
    %cst_200 = arith.constant dense<0.000000e+00> : vector<32x256xf32>
    %212 = tpu.matmul %211, %209, %cst_200 {dimension_numbers = #tpu.dot_dimension_numbers<[1], [0], [0], [1], [0, 0, 1, 1], [], []>} : vector<32x32xf32>, vector<32x256xf32>, vector<32x256xf32> -> vector<32x256xf32>
    %213 = arith.addf %204, %212 : vector<32x256xf32>
    %c241_i32_201 = arith.constant 241 : i32
    %214 = tpu.dynamic_rotate %165 by %c241_i32_201 dim 1 : vector<32x256xf32>, i32 -> vector<32x256xf32>
    %c6_202 = arith.constant 6 : index
    %c0_203 = arith.constant 0 : index
    %c0_204 = arith.constant 0 : index
    %215 = vector.load %arg4[%c6_202, %c0_203, %c0_204] : memref<9x1x256xf32, #tpu.memory_space<vmem>>, vector<1x1x256xf32>
    %216 = vector.shape_cast %215 : vector<1x1x256xf32> to vector<1x256xf32>
    %217 = vector.broadcast %216 : vector<1x256xf32> to vector<32x256xf32>
    %218 = arith.mulf %214, %217 : vector<32x256xf32>
    %c2_205 = arith.constant 2 : index
    %c6_206 = arith.constant 6 : index
    %c0_207 = arith.constant 0 : index
    %c0_208 = arith.constant 0 : index
    %219 = vector.load %arg2[%c2_205, %c6_206, %c0_207, %c0_208] : memref<4x9x32x32xf32, #tpu.memory_space<vmem>>, vector<1x1x32x32xf32>
    %220 = vector.shape_cast %219 : vector<1x1x32x32xf32> to vector<32x32xf32>
    %cst_209 = arith.constant dense<0.000000e+00> : vector<32x256xf32>
    %221 = tpu.matmul %220, %218, %cst_209 {dimension_numbers = #tpu.dot_dimension_numbers<[1], [0], [0], [1], [0, 0, 1, 1], [], []>} : vector<32x32xf32>, vector<32x256xf32>, vector<32x256xf32> -> vector<32x256xf32>
    %222 = arith.addf %213, %221 : vector<32x256xf32>
    %c240_i32_210 = arith.constant 240 : i32
    %223 = tpu.dynamic_rotate %165 by %c240_i32_210 dim 1 : vector<32x256xf32>, i32 -> vector<32x256xf32>
    %c7_211 = arith.constant 7 : index
    %c0_212 = arith.constant 0 : index
    %c0_213 = arith.constant 0 : index
    %224 = vector.load %arg4[%c7_211, %c0_212, %c0_213] : memref<9x1x256xf32, #tpu.memory_space<vmem>>, vector<1x1x256xf32>
    %225 = vector.shape_cast %224 : vector<1x1x256xf32> to vector<1x256xf32>
    %226 = vector.broadcast %225 : vector<1x256xf32> to vector<32x256xf32>
    %227 = arith.mulf %223, %226 : vector<32x256xf32>
    %c2_214 = arith.constant 2 : index
    %c7_215 = arith.constant 7 : index
    %c0_216 = arith.constant 0 : index
    %c0_217 = arith.constant 0 : index
    %228 = vector.load %arg2[%c2_214, %c7_215, %c0_216, %c0_217] : memref<4x9x32x32xf32, #tpu.memory_space<vmem>>, vector<1x1x32x32xf32>
    %229 = vector.shape_cast %228 : vector<1x1x32x32xf32> to vector<32x32xf32>
    %cst_218 = arith.constant dense<0.000000e+00> : vector<32x256xf32>
    %230 = tpu.matmul %229, %227, %cst_218 {dimension_numbers = #tpu.dot_dimension_numbers<[1], [0], [0], [1], [0, 0, 1, 1], [], []>} : vector<32x32xf32>, vector<32x256xf32>, vector<32x256xf32> -> vector<32x256xf32>
    %231 = arith.addf %222, %230 : vector<32x256xf32>
    %c239_i32_219 = arith.constant 239 : i32
    %232 = tpu.dynamic_rotate %165 by %c239_i32_219 dim 1 : vector<32x256xf32>, i32 -> vector<32x256xf32>
    %c8_220 = arith.constant 8 : index
    %c0_221 = arith.constant 0 : index
    %c0_222 = arith.constant 0 : index
    %233 = vector.load %arg4[%c8_220, %c0_221, %c0_222] : memref<9x1x256xf32, #tpu.memory_space<vmem>>, vector<1x1x256xf32>
    %234 = vector.shape_cast %233 : vector<1x1x256xf32> to vector<1x256xf32>
    %235 = vector.broadcast %234 : vector<1x256xf32> to vector<32x256xf32>
    %236 = arith.mulf %232, %235 : vector<32x256xf32>
    %c2_223 = arith.constant 2 : index
    %c8_224 = arith.constant 8 : index
    %c0_225 = arith.constant 0 : index
    %c0_226 = arith.constant 0 : index
    %237 = vector.load %arg2[%c2_223, %c8_224, %c0_225, %c0_226] : memref<4x9x32x32xf32, #tpu.memory_space<vmem>>, vector<1x1x32x32xf32>
    %238 = vector.shape_cast %237 : vector<1x1x32x32xf32> to vector<32x32xf32>
    %cst_227 = arith.constant dense<0.000000e+00> : vector<32x256xf32>
    %239 = tpu.matmul %238, %236, %cst_227 {dimension_numbers = #tpu.dot_dimension_numbers<[1], [0], [0], [1], [0, 0, 1, 1], [], []>} : vector<32x32xf32>, vector<32x256xf32>, vector<32x256xf32> -> vector<32x256xf32>
    %240 = arith.addf %231, %239 : vector<32x256xf32>
    %c1_228 = arith.constant 1 : index
    %c0_229 = arith.constant 0 : index
    %c0_230 = arith.constant 0 : index
    %241 = vector.load %arg3[%c1_228, %c0_229, %c0_230] : memref<2x32x1xf32, #tpu.memory_space<vmem>>, vector<1x32x1xf32>
    %242 = vector.shape_cast %241 : vector<1x32x1xf32> to vector<32x1xf32>
    %243 = vector.broadcast %242 : vector<32x1xf32> to vector<32x256xf32>
    %244 = arith.addf %240, %243 : vector<32x256xf32>
    %cst_231 = arith.constant 0.000000e+00 : f32
    %245 = vector.broadcast %cst_231 : f32 to vector<32x256xf32>
    %246 = arith.maximumf %244, %245 : vector<32x256xf32>
    %c3_232 = arith.constant 3 : index
    %c4_233 = arith.constant 4 : index
    %c0_234 = arith.constant 0 : index
    %c0_235 = arith.constant 0 : index
    %247 = vector.load %arg2[%c3_232, %c4_233, %c0_234, %c0_235] : memref<4x9x32x32xf32, #tpu.memory_space<vmem>>, vector<1x1x32x32xf32>
    %248 = vector.shape_cast %247 : vector<1x1x32x32xf32> to vector<32x32xf32>
    %cst_236 = arith.constant dense<0.000000e+00> : vector<32x256xf32>
    %249 = tpu.matmul %248, %246, %cst_236 {dimension_numbers = #tpu.dot_dimension_numbers<[1], [0], [0], [1], [0, 0, 1, 1], [], []>} : vector<32x32xf32>, vector<32x256xf32>, vector<32x256xf32> -> vector<32x256xf32>
    %c17_i32_237 = arith.constant 17 : i32
    %250 = tpu.dynamic_rotate %246 by %c17_i32_237 dim 1 : vector<32x256xf32>, i32 -> vector<32x256xf32>
    %c0_238 = arith.constant 0 : index
    %c0_239 = arith.constant 0 : index
    %c0_240 = arith.constant 0 : index
    %251 = vector.load %arg4[%c0_238, %c0_239, %c0_240] : memref<9x1x256xf32, #tpu.memory_space<vmem>>, vector<1x1x256xf32>
    %252 = vector.shape_cast %251 : vector<1x1x256xf32> to vector<1x256xf32>
    %253 = vector.broadcast %252 : vector<1x256xf32> to vector<32x256xf32>
    %254 = arith.mulf %250, %253 : vector<32x256xf32>
    %c3_241 = arith.constant 3 : index
    %c0_242 = arith.constant 0 : index
    %c0_243 = arith.constant 0 : index
    %c0_244 = arith.constant 0 : index
    %255 = vector.load %arg2[%c3_241, %c0_242, %c0_243, %c0_244] : memref<4x9x32x32xf32, #tpu.memory_space<vmem>>, vector<1x1x32x32xf32>
    %256 = vector.shape_cast %255 : vector<1x1x32x32xf32> to vector<32x32xf32>
    %cst_245 = arith.constant dense<0.000000e+00> : vector<32x256xf32>
    %257 = tpu.matmul %256, %254, %cst_245 {dimension_numbers = #tpu.dot_dimension_numbers<[1], [0], [0], [1], [0, 0, 1, 1], [], []>} : vector<32x32xf32>, vector<32x256xf32>, vector<32x256xf32> -> vector<32x256xf32>
    %258 = arith.addf %249, %257 : vector<32x256xf32>
    %c16_i32_246 = arith.constant 16 : i32
    %259 = tpu.dynamic_rotate %246 by %c16_i32_246 dim 1 : vector<32x256xf32>, i32 -> vector<32x256xf32>
    %c1_247 = arith.constant 1 : index
    %c0_248 = arith.constant 0 : index
    %c0_249 = arith.constant 0 : index
    %260 = vector.load %arg4[%c1_247, %c0_248, %c0_249] : memref<9x1x256xf32, #tpu.memory_space<vmem>>, vector<1x1x256xf32>
    %261 = vector.shape_cast %260 : vector<1x1x256xf32> to vector<1x256xf32>
    %262 = vector.broadcast %261 : vector<1x256xf32> to vector<32x256xf32>
    %263 = arith.mulf %259, %262 : vector<32x256xf32>
    %c3_250 = arith.constant 3 : index
    %c1_251 = arith.constant 1 : index
    %c0_252 = arith.constant 0 : index
    %c0_253 = arith.constant 0 : index
    %264 = vector.load %arg2[%c3_250, %c1_251, %c0_252, %c0_253] : memref<4x9x32x32xf32, #tpu.memory_space<vmem>>, vector<1x1x32x32xf32>
    %265 = vector.shape_cast %264 : vector<1x1x32x32xf32> to vector<32x32xf32>
    %cst_254 = arith.constant dense<0.000000e+00> : vector<32x256xf32>
    %266 = tpu.matmul %265, %263, %cst_254 {dimension_numbers = #tpu.dot_dimension_numbers<[1], [0], [0], [1], [0, 0, 1, 1], [], []>} : vector<32x32xf32>, vector<32x256xf32>, vector<32x256xf32> -> vector<32x256xf32>
    %267 = arith.addf %258, %266 : vector<32x256xf32>
    %c15_i32_255 = arith.constant 15 : i32
    %268 = tpu.dynamic_rotate %246 by %c15_i32_255 dim 1 : vector<32x256xf32>, i32 -> vector<32x256xf32>
    %c2_256 = arith.constant 2 : index
    %c0_257 = arith.constant 0 : index
    %c0_258 = arith.constant 0 : index
    %269 = vector.load %arg4[%c2_256, %c0_257, %c0_258] : memref<9x1x256xf32, #tpu.memory_space<vmem>>, vector<1x1x256xf32>
    %270 = vector.shape_cast %269 : vector<1x1x256xf32> to vector<1x256xf32>
    %271 = vector.broadcast %270 : vector<1x256xf32> to vector<32x256xf32>
    %272 = arith.mulf %268, %271 : vector<32x256xf32>
    %c3_259 = arith.constant 3 : index
    %c2_260 = arith.constant 2 : index
    %c0_261 = arith.constant 0 : index
    %c0_262 = arith.constant 0 : index
    %273 = vector.load %arg2[%c3_259, %c2_260, %c0_261, %c0_262] : memref<4x9x32x32xf32, #tpu.memory_space<vmem>>, vector<1x1x32x32xf32>
    %274 = vector.shape_cast %273 : vector<1x1x32x32xf32> to vector<32x32xf32>
    %cst_263 = arith.constant dense<0.000000e+00> : vector<32x256xf32>
    %275 = tpu.matmul %274, %272, %cst_263 {dimension_numbers = #tpu.dot_dimension_numbers<[1], [0], [0], [1], [0, 0, 1, 1], [], []>} : vector<32x32xf32>, vector<32x256xf32>, vector<32x256xf32> -> vector<32x256xf32>
    %276 = arith.addf %267, %275 : vector<32x256xf32>
    %c1_i32_264 = arith.constant 1 : i32
    %277 = tpu.dynamic_rotate %246 by %c1_i32_264 dim 1 : vector<32x256xf32>, i32 -> vector<32x256xf32>
    %c3_265 = arith.constant 3 : index
    %c0_266 = arith.constant 0 : index
    %c0_267 = arith.constant 0 : index
    %278 = vector.load %arg4[%c3_265, %c0_266, %c0_267] : memref<9x1x256xf32, #tpu.memory_space<vmem>>, vector<1x1x256xf32>
    %279 = vector.shape_cast %278 : vector<1x1x256xf32> to vector<1x256xf32>
    %280 = vector.broadcast %279 : vector<1x256xf32> to vector<32x256xf32>
    %281 = arith.mulf %277, %280 : vector<32x256xf32>
    %c3_268 = arith.constant 3 : index
    %c3_269 = arith.constant 3 : index
    %c0_270 = arith.constant 0 : index
    %c0_271 = arith.constant 0 : index
    %282 = vector.load %arg2[%c3_268, %c3_269, %c0_270, %c0_271] : memref<4x9x32x32xf32, #tpu.memory_space<vmem>>, vector<1x1x32x32xf32>
    %283 = vector.shape_cast %282 : vector<1x1x32x32xf32> to vector<32x32xf32>
    %cst_272 = arith.constant dense<0.000000e+00> : vector<32x256xf32>
    %284 = tpu.matmul %283, %281, %cst_272 {dimension_numbers = #tpu.dot_dimension_numbers<[1], [0], [0], [1], [0, 0, 1, 1], [], []>} : vector<32x32xf32>, vector<32x256xf32>, vector<32x256xf32> -> vector<32x256xf32>
    %285 = arith.addf %276, %284 : vector<32x256xf32>
    %c255_i32_273 = arith.constant 255 : i32
    %286 = tpu.dynamic_rotate %246 by %c255_i32_273 dim 1 : vector<32x256xf32>, i32 -> vector<32x256xf32>
    %c5_274 = arith.constant 5 : index
    %c0_275 = arith.constant 0 : index
    %c0_276 = arith.constant 0 : index
    %287 = vector.load %arg4[%c5_274, %c0_275, %c0_276] : memref<9x1x256xf32, #tpu.memory_space<vmem>>, vector<1x1x256xf32>
    %288 = vector.shape_cast %287 : vector<1x1x256xf32> to vector<1x256xf32>
    %289 = vector.broadcast %288 : vector<1x256xf32> to vector<32x256xf32>
    %290 = arith.mulf %286, %289 : vector<32x256xf32>
    %c3_277 = arith.constant 3 : index
    %c5_278 = arith.constant 5 : index
    %c0_279 = arith.constant 0 : index
    %c0_280 = arith.constant 0 : index
    %291 = vector.load %arg2[%c3_277, %c5_278, %c0_279, %c0_280] : memref<4x9x32x32xf32, #tpu.memory_space<vmem>>, vector<1x1x32x32xf32>
    %292 = vector.shape_cast %291 : vector<1x1x32x32xf32> to vector<32x32xf32>
    %cst_281 = arith.constant dense<0.000000e+00> : vector<32x256xf32>
    %293 = tpu.matmul %292, %290, %cst_281 {dimension_numbers = #tpu.dot_dimension_numbers<[1], [0], [0], [1], [0, 0, 1, 1], [], []>} : vector<32x32xf32>, vector<32x256xf32>, vector<32x256xf32> -> vector<32x256xf32>
    %294 = arith.addf %285, %293 : vector<32x256xf32>
    %c241_i32_282 = arith.constant 241 : i32
    %295 = tpu.dynamic_rotate %246 by %c241_i32_282 dim 1 : vector<32x256xf32>, i32 -> vector<32x256xf32>
    %c6_283 = arith.constant 6 : index
    %c0_284 = arith.constant 0 : index
    %c0_285 = arith.constant 0 : index
    %296 = vector.load %arg4[%c6_283, %c0_284, %c0_285] : memref<9x1x256xf32, #tpu.memory_space<vmem>>, vector<1x1x256xf32>
    %297 = vector.shape_cast %296 : vector<1x1x256xf32> to vector<1x256xf32>
    %298 = vector.broadcast %297 : vector<1x256xf32> to vector<32x256xf32>
    %299 = arith.mulf %295, %298 : vector<32x256xf32>
    %c3_286 = arith.constant 3 : index
    %c6_287 = arith.constant 6 : index
    %c0_288 = arith.constant 0 : index
    %c0_289 = arith.constant 0 : index
    %300 = vector.load %arg2[%c3_286, %c6_287, %c0_288, %c0_289] : memref<4x9x32x32xf32, #tpu.memory_space<vmem>>, vector<1x1x32x32xf32>
    %301 = vector.shape_cast %300 : vector<1x1x32x32xf32> to vector<32x32xf32>
    %cst_290 = arith.constant dense<0.000000e+00> : vector<32x256xf32>
    %302 = tpu.matmul %301, %299, %cst_290 {dimension_numbers = #tpu.dot_dimension_numbers<[1], [0], [0], [1], [0, 0, 1, 1], [], []>} : vector<32x32xf32>, vector<32x256xf32>, vector<32x256xf32> -> vector<32x256xf32>
    %303 = arith.addf %294, %302 : vector<32x256xf32>
    %c240_i32_291 = arith.constant 240 : i32
    %304 = tpu.dynamic_rotate %246 by %c240_i32_291 dim 1 : vector<32x256xf32>, i32 -> vector<32x256xf32>
    %c7_292 = arith.constant 7 : index
    %c0_293 = arith.constant 0 : index
    %c0_294 = arith.constant 0 : index
    %305 = vector.load %arg4[%c7_292, %c0_293, %c0_294] : memref<9x1x256xf32, #tpu.memory_space<vmem>>, vector<1x1x256xf32>
    %306 = vector.shape_cast %305 : vector<1x1x256xf32> to vector<1x256xf32>
    %307 = vector.broadcast %306 : vector<1x256xf32> to vector<32x256xf32>
    %308 = arith.mulf %304, %307 : vector<32x256xf32>
    %c3_295 = arith.constant 3 : index
    %c7_296 = arith.constant 7 : index
    %c0_297 = arith.constant 0 : index
    %c0_298 = arith.constant 0 : index
    %309 = vector.load %arg2[%c3_295, %c7_296, %c0_297, %c0_298] : memref<4x9x32x32xf32, #tpu.memory_space<vmem>>, vector<1x1x32x32xf32>
    %310 = vector.shape_cast %309 : vector<1x1x32x32xf32> to vector<32x32xf32>
    %cst_299 = arith.constant dense<0.000000e+00> : vector<32x256xf32>
    %311 = tpu.matmul %310, %308, %cst_299 {dimension_numbers = #tpu.dot_dimension_numbers<[1], [0], [0], [1], [0, 0, 1, 1], [], []>} : vector<32x32xf32>, vector<32x256xf32>, vector<32x256xf32> -> vector<32x256xf32>
    %312 = arith.addf %303, %311 : vector<32x256xf32>
    %c239_i32_300 = arith.constant 239 : i32
    %313 = tpu.dynamic_rotate %246 by %c239_i32_300 dim 1 : vector<32x256xf32>, i32 -> vector<32x256xf32>
    %c8_301 = arith.constant 8 : index
    %c0_302 = arith.constant 0 : index
    %c0_303 = arith.constant 0 : index
    %314 = vector.load %arg4[%c8_301, %c0_302, %c0_303] : memref<9x1x256xf32, #tpu.memory_space<vmem>>, vector<1x1x256xf32>
    %315 = vector.shape_cast %314 : vector<1x1x256xf32> to vector<1x256xf32>
    %316 = vector.broadcast %315 : vector<1x256xf32> to vector<32x256xf32>
    %317 = arith.mulf %313, %316 : vector<32x256xf32>
    %c3_304 = arith.constant 3 : index
    %c8_305 = arith.constant 8 : index
    %c0_306 = arith.constant 0 : index
    %c0_307 = arith.constant 0 : index
    %318 = vector.load %arg2[%c3_304, %c8_305, %c0_306, %c0_307] : memref<4x9x32x32xf32, #tpu.memory_space<vmem>>, vector<1x1x32x32xf32>
    %319 = vector.shape_cast %318 : vector<1x1x32x32xf32> to vector<32x32xf32>
    %cst_308 = arith.constant dense<0.000000e+00> : vector<32x256xf32>
    %320 = tpu.matmul %319, %317, %cst_308 {dimension_numbers = #tpu.dot_dimension_numbers<[1], [0], [0], [1], [0, 0, 1, 1], [], []>} : vector<32x32xf32>, vector<32x256xf32>, vector<32x256xf32> -> vector<32x256xf32>
    %321 = arith.addf %312, %320 : vector<32x256xf32>
    %c0_309 = arith.constant 0 : index
    %c0_310 = arith.constant 0 : index
    %322 = vector.load %arg6[%c0_309, %c0_310] : memref<32x256xf32, #tpu.memory_space<vmem>>, vector<32x256xf32>
    %323 = arith.addf %321, %322 : vector<32x256xf32>
    %c0_311 = arith.constant 0 : index
    %c0_312 = arith.constant 0 : index
    %c0_313 = arith.constant 0 : index
    %324 = vector.load %arg5[%c0_311, %c0_312, %c0_313] : memref<1x32x256xf32, #tpu.memory_space<vmem>>, vector<1x32x256xf32>
    %325 = vector.shape_cast %324 : vector<1x32x256xf32> to vector<32x256xf32>
    %326 = vector.shape_cast %323 : vector<32x256xf32> to vector<1x32x256xf32>
    tpu.vector_store %arg5[%c0_311, %c0_312, %c0_313], %326 {strides = array<i32>} : memref<1x32x256xf32, #tpu.memory_space<vmem>>, vector<1x32x256xf32>,
    return
  }
  func.func @transform_0(%arg0: i32) -> (i32, i32, i32) {
    %c0_i32 = arith.constant 0 : i32
    %c0_i32_0 = arith.constant 0 : i32
    %c0_i32_1 = arith.constant 0 : i32
    return %arg0, %c0_i32, %c0_i32_0 : i32, i32, i32
  }
  func.func @transform_1(%arg0: i32) -> (i32, i32, i32, i32) {
    %c0_i32 = arith.constant 0 : i32
    %c0_i32_0 = arith.constant 0 : i32
    %c0_i32_1 = arith.constant 0 : i32
    %c0_i32_2 = arith.constant 0 : i32
    %c0_i32_3 = arith.constant 0 : i32
    return %c0_i32, %c0_i32_0, %c0_i32_1, %c0_i32_2 : i32, i32, i32, i32
  }
  func.func @transform_2(%arg0: i32) -> (i32, i32, i32) {
    %c0_i32 = arith.constant 0 : i32
    %c0_i32_0 = arith.constant 0 : i32
    %c0_i32_1 = arith.constant 0 : i32
    %c0_i32_2 = arith.constant 0 : i32
    return %c0_i32, %c0_i32_0, %c0_i32_1 : i32, i32, i32
  }
  func.func @transform_3(%arg0: i32) -> (i32, i32, i32) {
    %c0_i32 = arith.constant 0 : i32
    %c0_i32_0 = arith.constant 0 : i32
    %c0_i32_1 = arith.constant 0 : i32
    %c0_i32_2 = arith.constant 0 : i32
    return %c0_i32, %c0_i32_0, %c0_i32_1 : i32, i32, i32
  }
  func.func @transform_4(%arg0: i32) -> (i32, i32, i32) {
    %c0_i32 = arith.constant 0 : i32
    %c0_i32_0 = arith.constant 0 : i32
    %c0_i32_1 = arith.constant 0 : i32
    return %arg0, %c0_i32, %c0_i32_0 : i32, i32, i32
  }
}

</mosaic_0001>

<llo_original>
// kernel: rcu_forward.1
$region0: #{rcu_forward.1}
  #allocation0 [shape = 'u32[]', space=smem, size = 0x4, offset = 0x4, fixed_abs, tag = 'smem constant byte address 0x4 - core index']
  #allocation1 [shape = 'u32[72,128]{1,0:T(1,128)}', space=vmem, size = 0x9000, scoped, tag = 'internal scratch']
  #allocation2 [shape = 'f32[32,256]{1,0:T(8,128)}', space=vmem, size = 0x8000, scoped, tag = 'scratch operand']
  %s0 = inlined_call_operand.vmem [shape: f32[2,32,256], index: 0, kind: input, shape index: {}]
  %s1 = inlined_call_operand.vmem [shape: f32[4,9,32,32], index: 1, kind: input, shape index: {}]
  %s2 = inlined_call_operand.vmem [shape: f32[2,32,1], index: 2, kind: input, shape index: {}]
  %s3 = inlined_call_operand.vmem [shape: f32[9,1,256], index: 3, kind: input, shape index: {}]
  %s4 = inlined_call_operand.vmem [shape: f32[2,32,256], index: 4, kind: output, shape index: {}]
  %s5 = sld [smem:[#allocation0]]
  $region49: #{rcu_forward.1} parent=0
    _
  %s7 = ssub.s32 1, %s5
  %s8 = scalar_select 0, %s7, %s5
  loop: start=0, step=1, limit=4
  $region2: #{rcu_forward.1} parent=0 // loop_pre_header
    _
  $region3: #{rcu_forward.1} parent=0 // loop_header
    %s10 = sphi 0, %s14
    %p11 = scmp.ge.s32.totalorder %s10, 4
    %s20 = sphi 0, %s22
    %s23 = sphi 0, %s20
    %s24 = sphi 0, %s23
    %s40 = sphi 0, %s24
    %s44 = sphi 0, %s44
    %s46 = sphi 0, %s44
    %s47 = sphi 0, %s46
    %s61 = sphi 0, %s47
    %s65 = sphi 0, %s65
    %s67 = sphi 0, %s65
    %s68 = sphi 0, %s67
    %s82 = sphi 0, %s68
    %s86 = sphi 0, %s86
    %s88 = sphi 0, %s86
    %s89 = sphi 0, %s88
    %s103 = sphi 0, %s89
    %s109 = sphi 0, %s111
    %s112 = sphi 0, %s109
    %s113 = sphi 0, %s112
    %s129 = sphi 0, %s113
  $region4: #{rcu_forward.1} parent=0 // loop_header_branch
    %13 = sbr.rel (%p11) target = $region8
  $region5: #{rcu_forward.1} parent=0 // loop_body
    %s15 = ssub.s32 %s10, 1
    %s16 = ssub.s32 %s10, 2
    %s17 = sadd.s32 %s10, 1
    %s18 = ssub.s32 %s10, %s17
    %p19 = scmp.eq.s32.totalorder %s18, 0
    %s21 = sadd.s32 %s20, 1
    %s22 = scalar_select %p19, %s20, %s21
    %p25 = pneg %p19
    %p26 = scmp.eq.s32.totalorder %s10, 1
    %p27 = por %p25, %p26
    %p28 = scmp.ne.s32.totalorder %s20, %s23
    %p29 = scmp.eq.s32.totalorder %s10, 0
    %p30 = por %p28, %p29
    %p31 = scmp.ne.s32.totalorder %s20, %s23
    %p32 = scmp.eq.s32.totalorder %s15, 1
    %p33 = por %p31, %p32
    %p34 = scmp.ne.s32.totalorder %s23, %s24
    %p35 = scmp.eq.s32.totalorder %s15, 0
    %p36 = por %p34, %p35
    %p37 = scmp.ne.s32.totalorder %s23, %s24
    %p38 = scmp.eq.s32.totalorder %s16, 1
    %p39 = por %p37, %p38
    %p41 = scmp.ne.s32.totalorder %s24, %s40
    %p42 = scmp.eq.s32.totalorder %s16, 0
    %p43 = por %p41, %p42
    %s45 = sadd.s32 %s44, 1
    %p48 = scmp.eq.s32.totalorder %s10, 1
    %p49 = scmp.ne.s32.totalorder %s44, %s46
    %p50 = scmp.eq.s32.totalorder %s10, 0
    %p51 = por %p49, %p50
    %p52 = scmp.ne.s32.totalorder %s44, %s46
    %p53 = scmp.eq.s32.totalorder %s15, 1
    %p54 = por %p52, %p53
    %p55 = scmp.ne.s32.totalorder %s46, %s47
    %p56 = scmp.eq.s32.totalorder %s15, 0
    %p57 = por %p55, %p56
    %p58 = scmp.ne.s32.totalorder %s46, %s47
    %p59 = scmp.eq.s32.totalorder %s16, 1
    %p60 = por %p58, %p59
    %p62 = scmp.ne.s32.totalorder %s47, %s61
    %p63 = scmp.eq.s32.totalorder %s16, 0
    %p64 = por %p62, %p63
    %s66 = sadd.s32 %s65, 1
    %p69 = scmp.eq.s32.totalorder %s10, 1
    %p70 = scmp.ne.s32.totalorder %s65, %s67
    %p71 = scmp.eq.s32.totalorder %s10, 0
    %p72 = por %p70, %p71
    %p73 = scmp.ne.s32.totalorder %s65, %s67
    %p74 = scmp.eq.s32.totalorder %s15, 1
    %p75 = por %p73, %p74
    %p76 = scmp.ne.s32.totalorder %s67, %s68
    %p77 = scmp.eq.s32.totalorder %s15, 0
    %p78 = por %p76, %p77
    %p79 = scmp.ne.s32.totalorder %s67, %s68
    %p80 = scmp.eq.s32.totalorder %s16, 1
    %p81 = por %p79, %p80
    %p83 = scmp.ne.s32.totalorder %s68, %s82
    %p84 = scmp.eq.s32.totalorder %s16, 0
    %p85 = por %p83, %p84
    %s87 = sadd.s32 %s86, 1
    %p90 = scmp.eq.s32.totalorder %s10, 1
    %p91 = scmp.ne.s32.totalorder %s86, %s88
    %p92 = scmp.eq.s32.totalorder %s10, 0
    %p93 = por %p91, %p92
    %p94 = scmp.ne.s32.totalorder %s86, %s88
    %p95 = scmp.eq.s32.totalorder %s15, 1
    %p96 = por %p94, %p95
    %p97 = scmp.ne.s32.totalorder %s88, %s89
    %p98 = scmp.eq.s32.totalorder %s15, 0
    %p99 = por %p97, %p98
    %p100 = scmp.ne.s32.totalorder %s88, %s89
    %p101 = scmp.eq.s32.totalorder %s16, 1
    %p102 = por %p100, %p101
    %p104 = scmp.ne.s32.totalorder %s89, %s103
    %p105 = scmp.eq.s32.totalorder %s16, 0
    %p106 = por %p104, %p105
    %s107 = ssub.s32 %s10, %s17
    %p108 = scmp.eq.s32.totalorder %s107, 0
    %s110 = sadd.s32 %s109, 1
    %s111 = scalar_select %p108, %s109, %s110
    %p114 = pneg %p108
    %p115 = scmp.eq.s32.totalorder %s10, 1
    %p116 = por %p114, %p115
    %p117 = scmp.ne.s32.totalorder %s109, %s112
    %p118 = scmp.eq.s32.totalorder %s10, 0
    %p119 = por %p117, %p118
    %p120 = scmp.ne.s32.totalorder %s109, %s112
    %p121 = scmp.eq.s32.totalorder %s15, 1
    %p122 = por %p120, %p121
    %p123 = scmp.ne.s32.totalorder %s112, %s113
    %p124 = scmp.eq.s32.totalorder %s15, 0
    %p125 = por %p123, %p124
    %p126 = scmp.ne.s32.totalorder %s112, %s113
    %p127 = scmp.eq.s32.totalorder %s16, 1
    %p128 = por %p126, %p127
    %p130 = scmp.ne.s32.totalorder %s113, %s129
    %p131 = scmp.eq.s32.totalorder %s16, 0
    %p132 = por %p130, %p131
    %p133 = scmp.le.s32.totalorder 1, %s10
    %p134 = scmp.lt.s32.totalorder %s10, 3
    %p135 = pnand %p133, %p134
    %p136 = pneg %p135
    // Predicated region
    $region9: #{rcu_forward.1} parent=5 // pred_check
      _
    $region10: #{rcu_forward.1} parent=5 // pred_check_branch
      %138 = sbr.rel (%p135) target = $region12
    $region11: #{rcu_forward.1} parent=5 // pred_region
      %s139 = ssub.s32 %s10, 1
      // Predicated region
      $region13: #{rcu_forward.1} parent=11 // pred_check
        %p140 = pneg %p57
      $region14: #{rcu_forward.1} parent=11 // pred_check_branch
        %142 = sbr.rel (%p140) target = $region16
      $region15: #{rcu_forward.1} parent=11 // pred_region
        _
      $region16: #{rcu_forward.1} parent=11 // pred_fallthru
        _
      // Predicated region
      $region17: #{rcu_forward.1} parent=11 // pred_check
        %p143 = pneg %p78
      $region18: #{rcu_forward.1} parent=11 // pred_check_branch
        %145 = sbr.rel (%p143) target = $region20
      $region19: #{rcu_forward.1} parent=11 // pred_region
        _
      $region20: #{rcu_forward.1} parent=11 // pred_fallthru
        _
      // Predicated region
      $region21: #{rcu_forward.1} parent=11 // pred_check
        %p146 = pneg %p99
      $region22: #{rcu_forward.1} parent=11 // pred_check_branch
        %148 = sbr.rel (%p146) target = $region24
      $region23: #{rcu_forward.1} parent=11 // pred_region
        _
      $region24: #{rcu_forward.1} parent=11 // pred_fallthru
        _
    $region12: #{rcu_forward.1} parent=5 // pred_fallthru
      _
    %p149 = scmp.lt.s32.totalorder %s10, 2
    // Predicated region
    $region25: #{rcu_forward.1} parent=5 // pred_check
      %p150 = pneg %p149
    $region26: #{rcu_forward.1} parent=5 // pred_check_branch
      %152 = sbr.rel (%p150) target = $region28
    $region27: #{rcu_forward.1} parent=5 // pred_region
      // Predicated region
      $region29: #{rcu_forward.1} parent=27 // pred_check
        %p153 = pneg %p30
      $region30: #{rcu_forward.1} parent=27 // pred_check_branch
        %155 = sbr.rel (%p153) target = $region32
      $region31: #{rcu_forward.1} parent=27 // pred_region
        %p156 = scmp.lt.s32.totalorder %s10, 1
        %s157 = scalar_select %p156, %s10, 1
        %s158 = smul.addr %s157, 8
        %s159 = smul.addr %s158, 8
        %s160 = scalar_lea.vmem %s0, %s159
      $region32: #{rcu_forward.1} parent=27 // pred_fallthru
        _
    $region28: #{rcu_forward.1} parent=5 // pred_fallthru
      _
    %p161 = scmp.le.s32.totalorder 1, %s10
    %p162 = scmp.lt.s32.totalorder %s10, 3
    %p163 = pnand %p161, %p162
    %p164 = pneg %p163
    // Predicated region
    $region33: #{rcu_forward.1} parent=5 // pred_check
      _
    $region34: #{rcu_forward.1} parent=5 // pred_check_branch
      %166 = sbr.rel (%p163) target = $region36
    $region35: #{rcu_forward.1} parent=5 // pred_region
      %s167 = ssub.s32 %s10, 1
      %p168 = scmp.lt.s32.totalorder %s15, 1
      %s169 = scalar_select %p168, %s15, 1
      %s170 = smul.addr %s169, 8
      %s171 = smul.addr %s170, 8
      %s172 = scalar_lea.vmem %s0, %s171
      %p173 = pneg %p36
      %p174 = pneg %p33
      %p175 = pneg %p57
      %p176 = pneg %p54
      %p177 = pneg %p78
      %p178 = pneg %p75
      %p179 = pneg %p99
      %p180 = pneg %p96
      %p181 = pneg %p125
      %p182 = pneg %p122
      %p183 = scmp.lt.s32.totalorder %s15, 1
      %s184 = scalar_select %p183, %s15, 1
      %s185 = smul.addr %s184, 8
      %s186 = smul.addr %s185, 8
      %s187 = scalar_lea.vmem %s4, %s186
      %p188 = scmp.lt.s32.totalorder %s15, 1
      %s189 = scalar_select %p188, %s15, 1
      %s190 = smul.addr %s189, 8
      %s191 = smul.addr %s190, 8
      %s192 = scalar_lea.vmem %s0, %s191
      %p193 = scmp.lt.s32.totalorder %s15, 1
      %s194 = scalar_select %p193, %s15, 1
      %s195 = smul.addr %s194, 8
      %s196 = smul.addr %s195, 8
      %s197 = scalar_lea.vmem %s4, %s196
      %v198 = vld [vmem:[%s192] sm:$0xff]
      %v199 = vld [vmem:[%s192 + $0x8] sm:$0xff]
      %v200 = vld [vmem:[%s192 + $0x10] sm:$0xff]
      %v201 = vld [vmem:[%s192 + $0x18] sm:$0xff]
      %v202 = vld [vmem:[%s192 + $0x20] sm:$0xff]
      %v203 = vld [vmem:[%s192 + $0x28] sm:$0xff]
      %v204 = vld [vmem:[%s192 + $0x30] sm:$0xff]
      %v205 = vld [vmem:[%s192 + $0x38] sm:$0xff]
      %206 = vst [vmem:[#allocation2] sm:$0xff] %v198
      %207 = vst [vmem:[#allocation2 + $0x8] sm:$0xff] %v199
      %208 = vst [vmem:[#allocation2 + $0x10] sm:$0xff] %v200
      %209 = vst [vmem:[#allocation2 + $0x18] sm:$0xff] %v201
      %210 = vst [vmem:[#allocation2 + $0x20] sm:$0xff] %v202
      %211 = vst [vmem:[#allocation2 + $0x28] sm:$0xff] %v203
      %212 = vst [vmem:[#allocation2 + $0x30] sm:$0xff] %v204
      %213 = vst [vmem:[#allocation2 + $0x38] sm:$0xff] %v205
      %v214 = vmax.f32 %v198, 0.0
      %v215 = vmax.f32 %v199, 0.0
      %v216 = vmax.f32 %v200, 0.0
      %v217 = vmax.f32 %v201, 0.0
      %v218 = vmax.f32 %v202, 0.0
      %v219 = vmax.f32 %v203, 0.0
      %v220 = vmax.f32 %v204, 0.0
      %v221 = vmax.f32 %v205, 0.0
      %s222 = scalar_lea.vmem %s1, 128
      %v223 = vld [vmem:[%s222] sm:$0xff]
      %v224 = vld [vmem:[%s222 + $0x8] sm:$0xff]
      %v225 = vld [vmem:[%s222 + $0x10] sm:$0xff]
      %v226 = vld [vmem:[%s222 + $0x18] sm:$0xff]
      %227 = vrot.lane.b32.xlu0 %v214, 17
      %v228 = vpop.permute.xlu0 %227
      %229 = vrot.lane.b32.xlu0 %v216, 17
      %v230 = vpop.permute.xlu0 %229
      %231 = vrot.lane.b32.xlu0 %v218, 17
      %v232 = vpop.permute.xlu0 %231
      %233 = vrot.lane.b32.xlu0 %v220, 17
      %v234 = vpop.permute.xlu0 %233
      %235 = vrot.lane.b32.xlu0 %v215, 17
      %v236 = vpop.permute.xlu0 %235
      %237 = vrot.lane.b32.xlu0 %v217, 17
      %v238 = vpop.permute.xlu0 %237
      %239 = vrot.lane.b32.xlu0 %v219, 17
      %v240 = vpop.permute.xlu0 %239
      %241 = vrot.lane.b32.xlu0 %v221, 17
      %v242 = vpop.permute.xlu0 %241
      %v243 = vlaneseq
      %v244 = vand.u32 %v243, 127
      %vm245 = vcmp.lt.s32.totalorder %v244, 17
      %v246 = vsel %vm245, %v228, %v236
      %v247 = vsel %vm245, %v230, %v238
      %v248 = vsel %vm245, %v232, %v240
      %v249 = vsel %vm245, %v234, %v242
      %v250 = vsel %vm245, %v236, %v228
      %v251 = vsel %vm245, %v238, %v230
      %v252 = vsel %vm245, %v240, %v232
      %v253 = vsel %vm245, %v242, %v234
      %v254 = vld [vmem:[%s3] sm:$0x3]
      %v256 = vperm.slane %v254, 0
      %v257 = vperm.slane %v254, 1
      %v260 = vmul.f32 %v250, %v256
      %v261 = vmul.f32 %v246, %v257
      %v262 = vmul.f32 %v251, %v256
      %v263 = vmul.f32 %v247, %v257
      %v264 = vmul.f32 %v252, %v256
      %v265 = vmul.f32 %v248, %v257
      %v266 = vmul.f32 %v253, %v256
      %v267 = vmul.f32 %v249, %v257
      %v268 = vld [vmem:[%s1] sm:$0xff]
      %v269 = vld [vmem:[%s1 + $0x8] sm:$0xff]
      %v270 = vld [vmem:[%s1 + $0x10] sm:$0xff]
      %v271 = vld [vmem:[%s1 + $0x18] sm:$0xff]
      %vm272 = vcmask 261120
      %v274 = vsel %vm272, %v268, 0
      %v277 = vsel %vm272, %v269, 0
      %v280 = vsel %vm272, %v270, 0
      %v283 = vsel %vm272, %v271, 0
      %285 = vmatpush.msra.mxu0 0.0
      %286 = vmatpush.msra.mxu0 0.0
      %287 = vmatpush.msra.mxu0 0.0
      %288 = vmatpush.msra.mxu0 0.0
      %289 = vmatpush.msra.mxu0 0.0
      %290 = vmatpush.msra.mxu0 0.0
      %291 = vmatpush.msra.mxu0 0.0
      %292 = vmatpush.msra.mxu0 0.0
      %293 = vmatpush.msra.mxu0 0.0
      %294 = vmatpush.msra.mxu0 0.0
      %295 = vmatpush.msra.mxu0 0.0
      %296 = vmatpush.msra.mxu0 0.0
      %297 = vmatpush.msra.mxu0 %v266
      %298 = vmatpush.msra.mxu0 %v264
      %299 = vmatpush.msra.mxu0 %v262
      %300 = vmatpush.msra.mxu0 %v260
      %301 = vmatmul.f32.gmra.mxu0 %v274
      %v302 = vpop.f32.mrf.mxu0
      %v303 = vadd.f32 0.0, %v302
      %304 = vmatmul.f32.gmra.mxu0 %v277
      %v305 = vpop.f32.mrf.mxu0
      %v306 = vadd.f32 0.0, %v305
      %307 = vmatmul.f32.gmra.mxu0 %v280
      %v308 = vpop.f32.mrf.mxu0
      %v309 = vadd.f32 0.0, %v308
      %310 = vmatmul.f32.gmra.mxu0 %v283
      %v311 = vpop.f32.mrf.mxu0
      %v312 = vadd.f32 0.0, %v311
      %313 = vdwg.mxu0
      %314 = vmatpush.msra.mxu0 0.0
      %315 = vmatpush.msra.mxu0 0.0
      %316 = vmatpush.msra.mxu0 0.0
      %317 = vmatpush.msra.mxu0 0.0
      %318 = vmatpush.msra.mxu0 0.0
      %319 = vmatpush.msra.mxu0 0.0
      %320 = vmatpush.msra.mxu0 0.0
      %321 = vmatpush.msra.mxu0 0.0
      %322 = vmatpush.msra.mxu0 0.0
      %323 = vmatpush.msra.mxu0 0.0
      %324 = vmatpush.msra.mxu0 0.0
      %325 = vmatpush.msra.mxu0 0.0
      %326 = vmatpush.msra.mxu0 %v267
      %327 = vmatpush.msra.mxu0 %v265
      %328 = vmatpush.msra.mxu0 %v263
      %329 = vmatpush.msra.mxu0 %v261
      %330 = vmatmul.f32.gmra.mxu0 %v274
      %v331 = vpop.f32.mrf.mxu0
      %v332 = vadd.f32 0.0, %v331
      %333 = vmatmul.f32.gmra.mxu0 %v277
      %v334 = vpop.f32.mrf.mxu0
      %v335 = vadd.f32 0.0, %v334
      %336 = vmatmul.f32.gmra.mxu0 %v280
      %v337 = vpop.f32.mrf.mxu0
      %v338 = vadd.f32 0.0, %v337
      %339 = vmatmul.f32.gmra.mxu0 %v283
      %v340 = vpop.f32.mrf.mxu0
      %v341 = vadd.f32 0.0, %v340
      %342 = vdwg.mxu0
      %v344 = vsel %vm272, %v223, 0
      %v347 = vsel %vm272, %v224, 0
      %v350 = vsel %vm272, %v225, 0
      %v353 = vsel %vm272, %v226, 0
      %355 = vmatpush.msra.mxu0 0.0
      %356 = vmatpush.msra.mxu0 0.0
      %357 = vmatpush.msra.mxu0 0.0
      %358 = vmatpush.msra.mxu0 0.0
      %359 = vmatpush.msra.mxu0 0.0
      %360 = vmatpush.msra.mxu0 0.0
      %361 = vmatpush.msra.mxu0 0.0
      %362 = vmatpush.msra.mxu0 0.0
      %363 = vmatpush.msra.mxu0 0.0
      %364 = vmatpush.msra.mxu0 0.0
      %365 = vmatpush.msra.mxu0 0.0
      %366 = vmatpush.msra.mxu0 0.0
      %367 = vmatpush.msra.mxu0 %v220
      %368 = vmatpush.msra.mxu0 %v218
      %369 = vmatpush.msra.mxu0 %v216
      %370 = vmatpush.msra.mxu0 %v214
      %371 = vmatmul.f32.gmra.mxu0 %v344
      %v372 = vpop.f32.mrf.mxu0
      %v373 = vadd.f32 %v303, %v372
      %374 = vmatmul.f32.gmra.mxu0 %v347
      %v375 = vpop.f32.mrf.mxu0
      %v376 = vadd.f32 %v306, %v375
      %377 = vmatmul.f32.gmra.mxu0 %v350
      %v378 = vpop.f32.mrf.mxu0
      %v379 = vadd.f32 %v309, %v378
      %380 = vmatmul.f32.gmra.mxu0 %v353
      %v381 = vpop.f32.mrf.mxu0
      %v382 = vadd.f32 %v312, %v381
      %383 = vdwg.mxu0
      %384 = vmatpush.msra.mxu0 0.0
      %385 = vmatpush.msra.mxu0 0.0
      %386 = vmatpush.msra.mxu0 0.0
      %387 = vmatpush.msra.mxu0 0.0
      %388 = vmatpush.msra.mxu0 0.0
      %389 = vmatpush.msra.mxu0 0.0
      %390 = vmatpush.msra.mxu0 0.0
      %391 = vmatpush.msra.mxu0 0.0
      %392 = vmatpush.msra.mxu0 0.0
      %393 = vmatpush.msra.mxu0 0.0
      %394 = vmatpush.msra.mxu0 0.0
      %395 = vmatpush.msra.mxu0 0.0
      %396 = vmatpush.msra.mxu0 %v221
      %397 = vmatpush.msra.mxu0 %v219
      %398 = vmatpush.msra.mxu0 %v217
      %399 = vmatpush.msra.mxu0 %v215
      %400 = vmatmul.f32.gmra.mxu0 %v344
      %v401 = vpop.f32.mrf.mxu0
      %v402 = vadd.f32 %v332, %v401
      %403 = vmatmul.f32.gmra.mxu0 %v347
      %v404 = vpop.f32.mrf.mxu0
      %v405 = vadd.f32 %v335, %v404
      %406 = vmatmul.f32.gmra.mxu0 %v350
      %v407 = vpop.f32.mrf.mxu0
      %v408 = vadd.f32 %v338, %v407
      %409 = vmatmul.f32.gmra.mxu0 %v353
      %v410 = vpop.f32.mrf.mxu0
      %v411 = vadd.f32 %v341, %v410
      %412 = vdwg.mxu0
      %413 = vrot.lane.b32.xlu0 %v214, 16
      %v414 = vpop.permute.xlu0 %413
      %415 = vrot.lane.b32.xlu0 %v216, 16
      %v416 = vpop.permute.xlu0 %415
      %417 = vrot.lane.b32.xlu0 %v218, 16
      %v418 = vpop.permute.xlu0 %417
      %419 = vrot.lane.b32.xlu0 %v220, 16
      %v420 = vpop.permute.xlu0 %419
      %421 = vrot.lane.b32.xlu0 %v215, 16
      %v422 = vpop.permute.xlu0 %421
      %423 = vrot.lane.b32.xlu0 %v217, 16
      %v424 = vpop.permute.xlu0 %423
      %425 = vrot.lane.b32.xlu0 %v219, 16
      %v426 = vpop.permute.xlu0 %425
      %427 = vrot.lane.b32.xlu0 %v221, 16
      %v428 = vpop.permute.xlu0 %427
      %vm429 = vcmp.lt.s32.totalorder %v244, 16
      %v430 = vsel %vm429, %v414, %v422
      %v431 = vsel %vm429, %v416, %v424
      %v432 = vsel %vm429, %v418, %v426
      %v433 = vsel %vm429, %v420, %v428
      %v434 = vsel %vm429, %v422, %v414
      %v435 = vsel %vm429, %v424, %v416
      %v436 = vsel %vm429, %v426, %v418
      %v437 = vsel %vm429, %v428, %v420
      %s438 = scalar_lea.vmem %s3, 2
      %v439 = vld [vmem:[%s438] sm:$0x3]
      %v441 = vperm.slane %v439, 0
      %v442 = vperm.slane %v439, 1
      %v445 = vmul.f32 %v434, %v441
      %v446 = vmul.f32 %v430, %v442
      %v447 = vmul.f32 %v435, %v441
      %v448 = vmul.f32 %v431, %v442
      %v449 = vmul.f32 %v436, %v441
      %v450 = vmul.f32 %v432, %v442
      %v451 = vmul.f32 %v437, %v441
      %v452 = vmul.f32 %v433, %v442
      %s453 = scalar_lea.vmem %s1, 32
      %v454 = vld [vmem:[%s453] sm:$0xff]
      %v455 = vld [vmem:[%s453 + $0x8] sm:$0xff]
      %v456 = vld [vmem:[%s453 + $0x10] sm:$0xff]
      %v457 = vld [vmem:[%s453 + $0x18] sm:$0xff]
      %v459 = vsel %vm272, %v454, 0
      %v462 = vsel %vm272, %v455, 0
      %v465 = vsel %vm272, %v456, 0
      %v468 = vsel %vm272, %v457, 0
      %470 = vmatpush.msra.mxu0 0.0
      %471 = vmatpush.msra.mxu0 0.0
      %472 = vmatpush.msra.mxu0 0.0
      %473 = vmatpush.msra.mxu0 0.0
      %474 = vmatpush.msra.mxu0 0.0
      %475 = vmatpush.msra.mxu0 0.0
      %476 = vmatpush.msra.mxu0 0.0
      %477 = vmatpush.msra.mxu0 0.0
      %478 = vmatpush.msra.mxu0 0.0
      %479 = vmatpush.msra.mxu0 0.0
      %480 = vmatpush.msra.mxu0 0.0
      %481 = vmatpush.msra.mxu0 0.0
      %482 = vmatpush.msra.mxu0 %v451
      %483 = vmatpush.msra.mxu0 %v449
      %484 = vmatpush.msra.mxu0 %v447
      %485 = vmatpush.msra.mxu0 %v445
      %486 = vmatmul.f32.gmra.mxu0 %v459
      %v487 = vpop.f32.mrf.mxu0
      %v488 = vadd.f32 0.0, %v487
      %489 = vmatmul.f32.gmra.mxu0 %v462
      %v490 = vpop.f32.mrf.mxu0
      %v491 = vadd.f32 0.0, %v490
      %492 = vmatmul.f32.gmra.mxu0 %v465
      %v493 = vpop.f32.mrf.mxu0
      %v494 = vadd.f32 0.0, %v493
      %495 = vmatmul.f32.gmra.mxu0 %v468
      %v496 = vpop.f32.mrf.mxu0
      %v497 = vadd.f32 0.0, %v496
      %498 = vdwg.mxu0
      %499 = vmatpush.msra.mxu0 0.0
      %500 = vmatpush.msra.mxu0 0.0
      %501 = vmatpush.msra.mxu0 0.0
      %502 = vmatpush.msra.mxu0 0.0
      %503 = vmatpush.msra.mxu0 0.0
      %504 = vmatpush.msra.mxu0 0.0
      %505 = vmatpush.msra.mxu0 0.0
      %506 = vmatpush.msra.mxu0 0.0
      %507 = vmatpush.msra.mxu0 0.0
      %508 = vmatpush.msra.mxu0 0.0
      %509 = vmatpush.msra.mxu0 0.0
      %510 = vmatpush.msra.mxu0 0.0
      %511 = vmatpush.msra.mxu0 %v452
      %512 = vmatpush.msra.mxu0 %v450
      %513 = vmatpush.msra.mxu0 %v448
      %514 = vmatpush.msra.mxu0 %v446
      %515 = vmatmul.f32.gmra.mxu0 %v459
      %v516 = vpop.f32.mrf.mxu0
      %v517 = vadd.f32 0.0, %v516
      %518 = vmatmul.f32.gmra.mxu0 %v462
      %v519 = vpop.f32.mrf.mxu0
      %v520 = vadd.f32 0.0, %v519
      %521 = vmatmul.f32.gmra.mxu0 %v465
      %v522 = vpop.f32.mrf.mxu0
      %v523 = vadd.f32 0.0, %v522
      %524 = vmatmul.f32.gmra.mxu0 %v468
      %v525 = vpop.f32.mrf.mxu0
      %v526 = vadd.f32 0.0, %v525
      %527 = vdwg.mxu0
      %v528 = vadd.f32 %v373, %v488
      %v529 = vadd.f32 %v402, %v517
      %v530 = vadd.f32 %v376, %v491
      %v531 = vadd.f32 %v405, %v520
      %v532 = vadd.f32 %v379, %v494
      %v533 = vadd.f32 %v408, %v523
      %v534 = vadd.f32 %v382, %v497
      %v535 = vadd.f32 %v411, %v526
      %536 = vrot.lane.b32.xlu0 %v214, 15
      %v537 = vpop.permute.xlu0 %536
      %538 = vrot.lane.b32.xlu0 %v216, 15
      %v539 = vpop.permute.xlu0 %538
      %540 = vrot.lane.b32.xlu0 %v218, 15
      %v541 = vpop.permute.xlu0 %540
      %542 = vrot.lane.b32.xlu0 %v220, 15
      %v543 = vpop.permute.xlu0 %542
      %544 = vrot.lane.b32.xlu0 %v215, 15
      %v545 = vpop.permute.xlu0 %544
      %546 = vrot.lane.b32.xlu0 %v217, 15
      %v547 = vpop.permute.xlu0 %546
      %548 = vrot.lane.b32.xlu0 %v219, 15
      %v549 = vpop.permute.xlu0 %548
      %550 = vrot.lane.b32.xlu0 %v221, 15
      %v551 = vpop.permute.xlu0 %550
      %vm552 = vcmp.lt.s32.totalorder %v244, 15
      %v553 = vsel %vm552, %v537, %v545
      %v554 = vsel %vm552, %v539, %v547
      %v555 = vsel %vm552, %v541, %v549
      %v556 = vsel %vm552, %v543, %v551
      %v557 = vsel %vm552, %v545, %v537
      %v558 = vsel %vm552, %v547, %v539
      %v559 = vsel %vm552, %v549, %v541
      %v560 = vsel %vm552, %v551, %v543
      %s561 = scalar_lea.vmem %s3, 4
      %v562 = vld [vmem:[%s561] sm:$0x3]
      %v564 = vperm.slane %v562, 0
      %v565 = vperm.slane %v562, 1
      %v568 = vmul.f32 %v557, %v564
      %v569 = vmul.f32 %v553, %v565
      %v570 = vmul.f32 %v558, %v564
      %v571 = vmul.f32 %v554, %v565
      %v572 = vmul.f32 %v559, %v564
      %v573 = vmul.f32 %v555, %v565
      %v574 = vmul.f32 %v560, %v564
      %v575 = vmul.f32 %v556, %v565
      %s576 = scalar_lea.vmem %s1, 64
      %v577 = vld [vmem:[%s576] sm:$0xff]
      %v578 = vld [vmem:[%s576 + $0x8] sm:$0xff]
      %v579 = vld [vmem:[%s576 + $0x10] sm:$0xff]
      %v580 = vld [vmem:[%s576 + $0x18] sm:$0xff]
      %v582 = vsel %vm272, %v577, 0
      %v585 = vsel %vm272, %v578, 0
      %v588 = vsel %vm272, %v579, 0
      %v591 = vsel %vm272, %v580, 0
      %593 = vmatpush.msra.mxu0 0.0
      %594 = vmatpush.msra.mxu0 0.0
      %595 = vmatpush.msra.mxu0 0.0
      %596 = vmatpush.msra.mxu0 0.0
      %597 = vmatpush.msra.mxu0 0.0
      %598 = vmatpush.msra.mxu0 0.0
      %599 = vmatpush.msra.mxu0 0.0
      %600 = vmatpush.msra.mxu0 0.0
      %601 = vmatpush.msra.mxu0 0.0
      %602 = vmatpush.msra.mxu0 0.0
      %603 = vmatpush.msra.mxu0 0.0
      %604 = vmatpush.msra.mxu0 0.0
      %605 = vmatpush.msra.mxu0 %v574
      %606 = vmatpush.msra.mxu0 %v572
      %607 = vmatpush.msra.mxu0 %v570
      %608 = vmatpush.msra.mxu0 %v568
      %609 = vmatmul.f32.gmra.mxu0 %v582
      %v610 = vpop.f32.mrf.mxu0
      %v611 = vadd.f32 0.0, %v610
      %612 = vmatmul.f32.gmra.mxu0 %v585
      %v613 = vpop.f32.mrf.mxu0
      %v614 = vadd.f32 0.0, %v613
      %615 = vmatmul.f32.gmra.mxu0 %v588
      %v616 = vpop.f32.mrf.mxu0
      %v617 = vadd.f32 0.0, %v616
      %618 = vmatmul.f32.gmra.mxu0 %v591
      %v619 = vpop.f32.mrf.mxu0
      %v620 = vadd.f32 0.0, %v619
      %621 = vdwg.mxu0
      %622 = vmatpush.msra.mxu0 0.0
      %623 = vmatpush.msra.mxu0 0.0
      %624 = vmatpush.msra.mxu0 0.0
      %625 = vmatpush.msra.mxu0 0.0
      %626 = vmatpush.msra.mxu0 0.0
      %627 = vmatpush.msra.mxu0 0.0
      %628 = vmatpush.msra.mxu0 0.0
      %629 = vmatpush.msra.mxu0 0.0
      %630 = vmatpush.msra.mxu0 0.0
      %631 = vmatpush.msra.mxu0 0.0
      %632 = vmatpush.msra.mxu0 0.0
      %633 = vmatpush.msra.mxu0 0.0
      %634 = vmatpush.msra.mxu0 %v575
      %635 = vmatpush.msra.mxu0 %v573
      %636 = vmatpush.msra.mxu0 %v571
      %637 = vmatpush.msra.mxu0 %v569
      %638 = vmatmul.f32.gmra.mxu0 %v582
      %v639 = vpop.f32.mrf.mxu0
      %v640 = vadd.f32 0.0, %v639
      %641 = vmatmul.f32.gmra.mxu0 %v585
      %v642 = vpop.f32.mrf.mxu0
      %v643 = vadd.f32 0.0, %v642
      %644 = vmatmul.f32.gmra.mxu0 %v588
      %v645 = vpop.f32.mrf.mxu0
      %v646 = vadd.f32 0.0, %v645
      %647 = vmatmul.f32.gmra.mxu0 %v591
      %v648 = vpop.f32.mrf.mxu0
      %v649 = vadd.f32 0.0, %v648
      %650 = vdwg.mxu0
      %v651 = vadd.f32 %v528, %v611
      %v652 = vadd.f32 %v529, %v640
      %v653 = vadd.f32 %v530, %v614
      %v654 = vadd.f32 %v531, %v643
      %v655 = vadd.f32 %v532, %v617
      %v656 = vadd.f32 %v533, %v646
      %v657 = vadd.f32 %v534, %v620
      %v658 = vadd.f32 %v535, %v649
      %659 = vrot.lane.b32.xlu0 %v214, 1
      %v660 = vpop.permute.xlu0 %659
      %661 = vrot.lane.b32.xlu0 %v216, 1
      %v662 = vpop.permute.xlu0 %661
      %663 = vrot.lane.b32.xlu0 %v218, 1
      %v664 = vpop.permute.xlu0 %663
      %665 = vrot.lane.b32.xlu0 %v220, 1
      %v666 = vpop.permute.xlu0 %665
      %667 = vrot.lane.b32.xlu0 %v215, 1
      %v668 = vpop.permute.xlu0 %667
      %669 = vrot.lane.b32.xlu0 %v217, 1
      %v670 = vpop.permute.xlu0 %669
      %671 = vrot.lane.b32.xlu0 %v219, 1
      %v672 = vpop.permute.xlu0 %671
      %673 = vrot.lane.b32.xlu0 %v221, 1
      %v674 = vpop.permute.xlu0 %673
      %vm675 = vcmp.lt.s32.totalorder %v244, 1
      %v676 = vsel %vm675, %v660, %v668
      %v677 = vsel %vm675, %v662, %v670
      %v678 = vsel %vm675, %v664, %v672
      %v679 = vsel %vm675, %v666, %v674
      %v680 = vsel %vm675, %v668, %v660
      %v681 = vsel %vm675, %v670, %v662
      %v682 = vsel %vm675, %v672, %v664
      %v683 = vsel %vm675, %v674, %v666
      %s684 = scalar_lea.vmem %s3, 6
      %v685 = vld [vmem:[%s684] sm:$0x3]
      %v687 = vperm.slane %v685, 0
      %v688 = vperm.slane %v685, 1
      %v691 = vmul.f32 %v680, %v687
      %v692 = vmul.f32 %v676, %v688
      %v693 = vmul.f32 %v681, %v687
      %v694 = vmul.f32 %v677, %v688
      %v695 = vmul.f32 %v682, %v687
      %v696 = vmul.f32 %v678, %v688
      %v697 = vmul.f32 %v683, %v687
      %v698 = vmul.f32 %v679, %v688
      %s699 = scalar_lea.vmem %s1, 96
      %v700 = vld [vmem:[%s699] sm:$0xff]
      %v701 = vld [vmem:[%s699 + $0x8] sm:$0xff]
      %v702 = vld [vmem:[%s699 + $0x10] sm:$0xff]
      %v703 = vld [vmem:[%s699 + $0x18] sm:$0xff]
      %v705 = vsel %vm272, %v700, 0
      %v708 = vsel %vm272, %v701, 0
      %v711 = vsel %vm272, %v702, 0
      %v714 = vsel %vm272, %v703, 0
      %716 = vmatpush.msra.mxu0 0.0
      %717 = vmatpush.msra.mxu0 0.0
      %718 = vmatpush.msra.mxu0 0.0
      %719 = vmatpush.msra.mxu0 0.0
      %720 = vmatpush.msra.mxu0 0.0
      %721 = vmatpush.msra.mxu0 0.0
      %722 = vmatpush.msra.mxu0 0.0
      %723 = vmatpush.msra.mxu0 0.0
      %724 = vmatpush.msra.mxu0 0.0
      %725 = vmatpush.msra.mxu0 0.0
      %726 = vmatpush.msra.mxu0 0.0
      %727 = vmatpush.msra.mxu0 0.0
      %728 = vmatpush.msra.mxu0 %v697
      %729 = vmatpush.msra.mxu0 %v695
      %730 = vmatpush.msra.mxu0 %v693
      %731 = vmatpush.msra.mxu0 %v691
      %732 = vmatmul.f32.gmra.mxu0 %v705
      %v733 = vpop.f32.mrf.mxu0
      %v734 = vadd.f32 0.0, %v733
      %735 = vmatmul.f32.gmra.mxu0 %v708
      %v736 = vpop.f32.mrf.mxu0
      %v737 = vadd.f32 0.0, %v736
      %738 = vmatmul.f32.gmra.mxu0 %v711
      %v739 = vpop.f32.mrf.mxu0
      %v740 = vadd.f32 0.0, %v739
      %741 = vmatmul.f32.gmra.mxu0 %v714
      %v742 = vpop.f32.mrf.mxu0
      %v743 = vadd.f32 0.0, %v742
      %744 = vdwg.mxu0
      %745 = vmatpush.msra.mxu0 0.0
      %746 = vmatpush.msra.mxu0 0.0
      %747 = vmatpush.msra.mxu0 0.0
      %748 = vmatpush.msra.mxu0 0.0
      %749 = vmatpush.msra.mxu0 0.0
      %750 = vmatpush.msra.mxu0 0.0
      %751 = vmatpush.msra.mxu0 0.0
      %752 = vmatpush.msra.mxu0 0.0
      %753 = vmatpush.msra.mxu0 0.0
      %754 = vmatpush.msra.mxu0 0.0
      %755 = vmatpush.msra.mxu0 0.0
      %756 = vmatpush.msra.mxu0 0.0
      %757 = vmatpush.msra.mxu0 %v698
      %758 = vmatpush.msra.mxu0 %v696
      %759 = vmatpush.msra.mxu0 %v694
      %760 = vmatpush.msra.mxu0 %v692
      %761 = vmatmul.f32.gmra.mxu0 %v705
      %v762 = vpop.f32.mrf.mxu0
      %v763 = vadd.f32 0.0, %v762
      %764 = vmatmul.f32.gmra.mxu0 %v708
      %v765 = vpop.f32.mrf.mxu0
      %v766 = vadd.f32 0.0, %v765
      %767 = vmatmul.f32.gmra.mxu0 %v711
      %v768 = vpop.f32.mrf.mxu0
      %v769 = vadd.f32 0.0, %v768
      %770 = vmatmul.f32.gmra.mxu0 %v714
      %v771 = vpop.f32.mrf.mxu0
      %v772 = vadd.f32 0.0, %v771
      %773 = vdwg.mxu0
      %v774 = vadd.f32 %v651, %v734
      %v775 = vadd.f32 %v652, %v763
      %v776 = vadd.f32 %v653, %v737
      %v777 = vadd.f32 %v654, %v766
      %v778 = vadd.f32 %v655, %v740
      %v779 = vadd.f32 %v656, %v769
      %v780 = vadd.f32 %v657, %v743
      %v781 = vadd.f32 %v658, %v772
      %782 = vrot.lane.b32.xlu0 %v214, 127
      %v783 = vpop.permute.xlu0 %782
      %784 = vrot.lane.b32.xlu0 %v216, 127
      %v785 = vpop.permute.xlu0 %784
      %786 = vrot.lane.b32.xlu0 %v218, 127
      %v787 = vpop.permute.xlu0 %786
      %788 = vrot.lane.b32.xlu0 %v220, 127
      %v789 = vpop.permute.xlu0 %788
      %790 = vrot.lane.b32.xlu0 %v215, 127
      %v791 = vpop.permute.xlu0 %790
      %792 = vrot.lane.b32.xlu0 %v217, 127
      %v793 = vpop.permute.xlu0 %792
      %794 = vrot.lane.b32.xlu0 %v219, 127
      %v795 = vpop.permute.xlu0 %794
      %796 = vrot.lane.b32.xlu0 %v221, 127
      %v797 = vpop.permute.xlu0 %796
      %vm798 = vcmp.lt.s32.totalorder %v244, 127
      %v799 = vsel %vm798, %v783, %v791
      %v800 = vsel %vm798, %v785, %v793
      %v801 = vsel %vm798, %v787, %v795
      %v802 = vsel %vm798, %v789, %v797
      %v803 = vsel %vm798, %v791, %v783
      %v804 = vsel %vm798, %v793, %v785
      %v805 = vsel %vm798, %v795, %v787
      %v806 = vsel %vm798, %v797, %v789
      %s807 = scalar_lea.vmem %s3, 10
      %v808 = vld [vmem:[%s807] sm:$0x3]
      %v810 = vperm.slane %v808, 0
      %v811 = vperm.slane %v808, 1
      %v814 = vmul.f32 %v799, %v810
      %v815 = vmul.f32 %v803, %v811
      %v816 = vmul.f32 %v800, %v810
      %v817 = vmul.f32 %v804, %v811
      %v818 = vmul.f32 %v801, %v810
      %v819 = vmul.f32 %v805, %v811
      %v820 = vmul.f32 %v802, %v810
      %v821 = vmul.f32 %v806, %v811
      %s822 = scalar_lea.vmem %s1, 160
      %v823 = vld [vmem:[%s822] sm:$0xff]
      %v824 = vld [vmem:[%s822 + $0x8] sm:$0xff]
      %v825 = vld [vmem:[%s822 + $0x10] sm:$0xff]
      %v826 = vld [vmem:[%s822 + $0x18] sm:$0xff]
      %v828 = vsel %vm272, %v823, 0
      %v831 = vsel %vm272, %v824, 0
      %v834 = vsel %vm272, %v825, 0
      %v837 = vsel %vm272, %v826, 0
      %839 = vmatpush.msra.mxu0 0.0
      %840 = vmatpush.msra.mxu0 0.0
      %841 = vmatpush.msra.mxu0 0.0
      %842 = vmatpush.msra.mxu0 0.0
      %843 = vmatpush.msra.mxu0 0.0
      %844 = vmatpush.msra.mxu0 0.0
      %845 = vmatpush.msra.mxu0 0.0
      %846 = vmatpush.msra.mxu0 0.0
      %847 = vmatpush.msra.mxu0 0.0
      %848 = vmatpush.msra.mxu0 0.0
      %849 = vmatpush.msra.mxu0 0.0
      %850 = vmatpush.msra.mxu0 0.0
      %851 = vmatpush.msra.mxu0 %v820
      %852 = vmatpush.msra.mxu0 %v818
      %853 = vmatpush.msra.mxu0 %v816
      %854 = vmatpush.msra.mxu0 %v814
      %855 = vmatmul.f32.gmra.mxu0 %v828
      %v856 = vpop.f32.mrf.mxu0
      %v857 = vadd.f32 0.0, %v856
      %858 = vmatmul.f32.gmra.mxu0 %v831
      %v859 = vpop.f32.mrf.mxu0
      %v860 = vadd.f32 0.0, %v859
      %861 = vmatmul.f32.gmra.mxu0 %v834
      %v862 = vpop.f32.mrf.mxu0
      %v863 = vadd.f32 0.0, %v862
      %864 = vmatmul.f32.gmra.mxu0 %v837
      %v865 = vpop.f32.mrf.mxu0
      %v866 = vadd.f32 0.0, %v865
      %867 = vdwg.mxu0
      %868 = vmatpush.msra.mxu0 0.0
      %869 = vmatpush.msra.mxu0 0.0
      %870 = vmatpush.msra.mxu0 0.0
      %871 = vmatpush.msra.mxu0 0.0
      %872 = vmatpush.msra.mxu0 0.0
      %873 = vmatpush.msra.mxu0 0.0
      %874 = vmatpush.msra.mxu0 0.0
      %875 = vmatpush.msra.mxu0 0.0
      %876 = vmatpush.msra.mxu0 0.0
      %877 = vmatpush.msra.mxu0 0.0
      %878 = vmatpush.msra.mxu0 0.0
      %879 = vmatpush.msra.mxu0 0.0
      %880 = vmatpush.msra.mxu0 %v821
      %881 = vmatpush.msra.mxu0 %v819
      %882 = vmatpush.msra.mxu0 %v817
      %883 = vmatpush.msra.mxu0 %v815
      %884 = vmatmul.f32.gmra.mxu0 %v828
      %v885 = vpop.f32.mrf.mxu0
      %v886 = vadd.f32 0.0, %v885
      %887 = vmatmul.f32.gmra.mxu0 %v831
      %v888 = vpop.f32.mrf.mxu0
      %v889 = vadd.f32 0.0, %v888
      %890 = vmatmul.f32.gmra.mxu0 %v834
      %v891 = vpop.f32.mrf.mxu0
      %v892 = vadd.f32 0.0, %v891
      %893 = vmatmul.f32.gmra.mxu0 %v837
      %v894 = vpop.f32.mrf.mxu0
      %v895 = vadd.f32 0.0, %v894
      %896 = vdwg.mxu0
      %v897 = vadd.f32 %v774, %v857
      %v898 = vadd.f32 %v775, %v886
      %v899 = vadd.f32 %v776, %v860
      %v900 = vadd.f32 %v777, %v889
      %v901 = vadd.f32 %v778, %v863
      %v902 = vadd.f32 %v779, %v892
      %v903 = vadd.f32 %v780, %v866
      %v904 = vadd.f32 %v781, %v895
      %905 = vrot.lane.b32.xlu0 %v214, 113
      %v906 = vpop.permute.xlu0 %905
      %907 = vrot.lane.b32.xlu0 %v216, 113
      %v908 = vpop.permute.xlu0 %907
      %909 = vrot.lane.b32.xlu0 %v218, 113
      %v910 = vpop.permute.xlu0 %909
      %911 = vrot.lane.b32.xlu0 %v220, 113
      %v912 = vpop.permute.xlu0 %911
      %913 = vrot.lane.b32.xlu0 %v215, 113
      %v914 = vpop.permute.xlu0 %913
      %915 = vrot.lane.b32.xlu0 %v217, 113
      %v916 = vpop.permute.xlu0 %915
      %917 = vrot.lane.b32.xlu0 %v219, 113
      %v918 = vpop.permute.xlu0 %917
      %919 = vrot.lane.b32.xlu0 %v221, 113
      %v920 = vpop.permute.xlu0 %919
      %vm921 = vcmp.lt.s32.totalorder %v244, 113
      %v922 = vsel %vm921, %v906, %v914
      %v923 = vsel %vm921, %v908, %v916
      %v924 = vsel %vm921, %v910, %v918
      %v925 = vsel %vm921, %v912, %v920
      %v926 = vsel %vm921, %v914, %v906
      %v927 = vsel %vm921, %v916, %v908
      %v928 = vsel %vm921, %v918, %v910
      %v929 = vsel %vm921, %v920, %v912
      %s930 = scalar_lea.vmem %s3, 12
      %v931 = vld [vmem:[%s930] sm:$0x3]
      %v933 = vperm.slane %v931, 0
      %v934 = vperm.slane %v931, 1
      %v937 = vmul.f32 %v922, %v933
      %v938 = vmul.f32 %v926, %v934
      %v939 = vmul.f32 %v923, %v933
      %v940 = vmul.f32 %v927, %v934
      %v941 = vmul.f32 %v924, %v933
      %v942 = vmul.f32 %v928, %v934
      %v943 = vmul.f32 %v925, %v933
      %v944 = vmul.f32 %v929, %v934
      %s945 = scalar_lea.vmem %s1, 192
      %v946 = vld [vmem:[%s945] sm:$0xff]
      %v947 = vld [vmem:[%s945 + $0x8] sm:$0xff]
      %v948 = vld [vmem:[%s945 + $0x10] sm:$0xff]
      %v949 = vld [vmem:[%s945 + $0x18] sm:$0xff]
      %v951 = vsel %vm272, %v946, 0
      %v954 = vsel %vm272, %v947, 0
      %v957 = vsel %vm272, %v948, 0
      %v960 = vsel %vm272, %v949, 0
      %962 = vmatpush.msra.mxu0 0.0
      %963 = vmatpush.msra.mxu0 0.0
      %964 = vmatpush.msra.mxu0 0.0
      %965 = vmatpush.msra.mxu0 0.0
      %966 = vmatpush.msra.mxu0 0.0
      %967 = vmatpush.msra.mxu0 0.0
      %968 = vmatpush.msra.mxu0 0.0
      %969 = vmatpush.msra.mxu0 0.0
      %970 = vmatpush.msra.mxu0 0.0
      %971 = vmatpush.msra.mxu0 0.0
      %972 = vmatpush.msra.mxu0 0.0
      %973 = vmatpush.msra.mxu0 0.0
      %974 = vmatpush.msra.mxu0 %v943
      %975 = vmatpush.msra.mxu0 %v941
      %976 = vmatpush.msra.mxu0 %v939
      %977 = vmatpush.msra.mxu0 %v937
      %978 = vmatmul.f32.gmra.mxu0 %v951
      %v979 = vpop.f32.mrf.mxu0
      %v980 = vadd.f32 0.0, %v979
      %981 = vmatmul.f32.gmra.mxu0 %v954
      %v982 = vpop.f32.mrf.mxu0
      %v983 = vadd.f32 0.0, %v982
      %984 = vmatmul.f32.gmra.mxu0 %v957
      %v985 = vpop.f32.mrf.mxu0
      %v986 = vadd.f32 0.0, %v985
      %987 = vmatmul.f32.gmra.mxu0 %v960
      %v988 = vpop.f32.mrf.mxu0
      %v989 = vadd.f32 0.0, %v988
      %990 = vdwg.mxu0
      %991 = vmatpush.msra.mxu0 0.0
      %992 = vmatpush.msra.mxu0 0.0
      %993 = vmatpush.msra.mxu0 0.0
      %994 = vmatpush.msra.mxu0 0.0
      %995 = vmatpush.msra.mxu0 0.0
      %996 = vmatpush.msra.mxu0 0.0
      %997 = vmatpush.msra.mxu0 0.0
      %998 = vmatpush.msra.mxu0 0.0
      %999 = vmatpush.msra.mxu0 0.0
      %1000 = vmatpush.msra.mxu0 0.0
      %1001 = vmatpush.msra.mxu0 0.0
      %1002 = vmatpush.msra.mxu0 0.0
      %1003 = vmatpush.msra.mxu0 %v944
      %1004 = vmatpush.msra.mxu0 %v942
      %1005 = vmatpush.msra.mxu0 %v940
      %1006 = vmatpush.msra.mxu0 %v938
      %1007 = vmatmul.f32.gmra.mxu0 %v951
      %v1008 = vpop.f32.mrf.mxu0
      %v1009 = vadd.f32 0.0, %v1008
      %1010 = vmatmul.f32.gmra.mxu0 %v954
      %v1011 = vpop.f32.mrf.mxu0
      %v1012 = vadd.f32 0.0, %v1011
      %1013 = vmatmul.f32.gmra.mxu0 %v957
      %v1014 = vpop.f32.mrf.mxu0
      %v1015 = vadd.f32 0.0, %v1014
      %1016 = vmatmul.f32.gmra.mxu0 %v960
      %v1017 = vpop.f32.mrf.mxu0
      %v1018 = vadd.f32 0.0, %v1017
      %1019 = vdwg.mxu0
      %v1020 = vadd.f32 %v897, %v980
      %v1021 = vadd.f32 %v898, %v1009
      %v1022 = vadd.f32 %v899, %v983
      %v1023 = vadd.f32 %v900, %v1012
      %v1024 = vadd.f32 %v901, %v986
      %v1025 = vadd.f32 %v902, %v1015
      %v1026 = vadd.f32 %v903, %v989
      %v1027 = vadd.f32 %v904, %v1018
      %1028 = vrot.lane.b32.xlu0 %v214, 112
      %v1029 = vpop.permute.xlu0 %1028
      %1030 = vrot.lane.b32.xlu0 %v216, 112
      %v1031 = vpop.permute.xlu0 %1030
      %1032 = vrot.lane.b32.xlu0 %v218, 112
      %v1033 = vpop.permute.xlu0 %1032
      %1034 = vrot.lane.b32.xlu0 %v220, 112
      %v1035 = vpop.permute.xlu0 %1034
      %1036 = vrot.lane.b32.xlu0 %v215, 112
      %v1037 = vpop.permute.xlu0 %1036
      %1038 = vrot.lane.b32.xlu0 %v217, 112
      %v1039 = vpop.permute.xlu0 %1038
      %1040 = vrot.lane.b32.xlu0 %v219, 112
      %v1041 = vpop.permute.xlu0 %1040
      %1042 = vrot.lane.b32.xlu0 %v221, 112
      %v1043 = vpop.permute.xlu0 %1042
      %vm1044 = vcmp.lt.s32.totalorder %v244, 112
      %v1045 = vsel %vm1044, %v1029, %v1037
      %v1046 = vsel %vm1044, %v1031, %v1039
      %v1047 = vsel %vm1044, %v1033, %v1041
      %v1048 = vsel %vm1044, %v1035, %v1043
      %v1049 = vsel %vm1044, %v1037, %v1029
      %v1050 = vsel %vm1044, %v1039, %v1031
      %v1051 = vsel %vm1044, %v1041, %v1033
      %v1052 = vsel %vm1044, %v1043, %v1035
      %s1053 = scalar_lea.vmem %s3, 14
      %v1054 = vld [vmem:[%s1053] sm:$0x3]
      %v1056 = vperm.slane %v1054, 0
      %v1057 = vperm.slane %v1054, 1
      %v1060 = vmul.f32 %v1045, %v1056
      %v1061 = vmul.f32 %v1049, %v1057
      %v1062 = vmul.f32 %v1046, %v1056
      %v1063 = vmul.f32 %v1050, %v1057
      %v1064 = vmul.f32 %v1047, %v1056
      %v1065 = vmul.f32 %v1051, %v1057
      %v1066 = vmul.f32 %v1048, %v1056
      %v1067 = vmul.f32 %v1052, %v1057
      %s1068 = scalar_lea.vmem %s1, 224
      %v1069 = vld [vmem:[%s1068] sm:$0xff]
      %v1070 = vld [vmem:[%s1068 + $0x8] sm:$0xff]
      %v1071 = vld [vmem:[%s1068 + $0x10] sm:$0xff]
      %v1072 = vld [vmem:[%s1068 + $0x18] sm:$0xff]
      %v1074 = vsel %vm272, %v1069, 0
      %v1077 = vsel %vm272, %v1070, 0
      %v1080 = vsel %vm272, %v1071, 0
      %v1083 = vsel %vm272, %v1072, 0
      %1085 = vmatpush.msra.mxu0 0.0
      %1086 = vmatpush.msra.mxu0 0.0
      %1087 = vmatpush.msra.mxu0 0.0
      %1088 = vmatpush.msra.mxu0 0.0
      %1089 = vmatpush.msra.mxu0 0.0
      %1090 = vmatpush.msra.mxu0 0.0
      %1091 = vmatpush.msra.mxu0 0.0
      %1092 = vmatpush.msra.mxu0 0.0
      %1093 = vmatpush.msra.mxu0 0.0
      %1094 = vmatpush.msra.mxu0 0.0
      %1095 = vmatpush.msra.mxu0 0.0
      %1096 = vmatpush.msra.mxu0 0.0
      %1097 = vmatpush.msra.mxu0 %v1066
      %1098 = vmatpush.msra.mxu0 %v1064
      %1099 = vmatpush.msra.mxu0 %v1062
      %1100 = vmatpush.msra.mxu0 %v1060
      %1101 = vmatmul.f32.gmra.mxu0 %v1074
      %v1102 = vpop.f32.mrf.mxu0
      %v1103 = vadd.f32 0.0, %v1102
      %1104 = vmatmul.f32.gmra.mxu0 %v1077
      %v1105 = vpop.f32.mrf.mxu0
      %v1106 = vadd.f32 0.0, %v1105
      %1107 = vmatmul.f32.gmra.mxu0 %v1080
      %v1108 = vpop.f32.mrf.mxu0
      %v1109 = vadd.f32 0.0, %v1108
      %1110 = vmatmul.f32.gmra.mxu0 %v1083
      %v1111 = vpop.f32.mrf.mxu0
      %v1112 = vadd.f32 0.0, %v1111
      %1113 = vdwg.mxu0
      %1114 = vmatpush.msra.mxu0 0.0
      %1115 = vmatpush.msra.mxu0 0.0
      %1116 = vmatpush.msra.mxu0 0.0
      %1117 = vmatpush.msra.mxu0 0.0
      %1118 = vmatpush.msra.mxu0 0.0
      %1119 = vmatpush.msra.mxu0 0.0
      %1120 = vmatpush.msra.mxu0 0.0
      %1121 = vmatpush.msra.mxu0 0.0
      %1122 = vmatpush.msra.mxu0 0.0
      %1123 = vmatpush.msra.mxu0 0.0
      %1124 = vmatpush.msra.mxu0 0.0
      %1125 = vmatpush.msra.mxu0 0.0
      %1126 = vmatpush.msra.mxu0 %v1067
      %1127 = vmatpush.msra.mxu0 %v1065
      %1128 = vmatpush.msra.mxu0 %v1063
      %1129 = vmatpush.msra.mxu0 %v1061
      %1130 = vmatmul.f32.gmra.mxu0 %v1074
      %v1131 = vpop.f32.mrf.mxu0
      %v1132 = vadd.f32 0.0, %v1131
      %1133 = vmatmul.f32.gmra.mxu0 %v1077
      %v1134 = vpop.f32.mrf.mxu0
      %v1135 = vadd.f32 0.0, %v1134
      %1136 = vmatmul.f32.gmra.mxu0 %v1080
      %v1137 = vpop.f32.mrf.mxu0
      %v1138 = vadd.f32 0.0, %v1137
      %1139 = vmatmul.f32.gmra.mxu0 %v1083
      %v1140 = vpop.f32.mrf.mxu0
      %v1141 = vadd.f32 0.0, %v1140
      %1142 = vdwg.mxu0
      %v1143 = vadd.f32 %v1020, %v1103
      %v1144 = vadd.f32 %v1021, %v1132
      %v1145 = vadd.f32 %v1022, %v1106
      %v1146 = vadd.f32 %v1023, %v1135
      %v1147 = vadd.f32 %v1024, %v1109
      %v1148 = vadd.f32 %v1025, %v1138
      %v1149 = vadd.f32 %v1026, %v1112
      %v1150 = vadd.f32 %v1027, %v1141
      %1151 = vrot.lane.b32.xlu0 %v214, 111
      %v1152 = vpop.permute.xlu0 %1151
      %1153 = vrot.lane.b32.xlu0 %v216, 111
      %v1154 = vpop.permute.xlu0 %1153
      %1155 = vrot.lane.b32.xlu0 %v218, 111
      %v1156 = vpop.permute.xlu0 %1155
      %1157 = vrot.lane.b32.xlu0 %v220, 111
      %v1158 = vpop.permute.xlu0 %1157
      %1159 = vrot.lane.b32.xlu0 %v215, 111
      %v1160 = vpop.permute.xlu0 %1159
      %1161 = vrot.lane.b32.xlu0 %v217, 111
      %v1162 = vpop.permute.xlu0 %1161
      %1163 = vrot.lane.b32.xlu0 %v219, 111
      %v1164 = vpop.permute.xlu0 %1163
      %1165 = vrot.lane.b32.xlu0 %v221, 111
      %v1166 = vpop.permute.xlu0 %1165
      %vm1167 = vcmp.lt.s32.totalorder %v244, 111
      %v1168 = vsel %vm1167, %v1152, %v1160
      %v1169 = vsel %vm1167, %v1154, %v1162
      %v1170 = vsel %vm1167, %v1156, %v1164
      %v1171 = vsel %vm1167, %v1158, %v1166
      %v1172 = vsel %vm1167, %v1160, %v1152
      %v1173 = vsel %vm1167, %v1162, %v1154
      %v1174 = vsel %vm1167, %v1164, %v1156
      %v1175 = vsel %vm1167, %v1166, %v1158
      %s1176 = scalar_lea.vmem %s3, 16
      %v1177 = vld [vmem:[%s1176] sm:$0x3]
      %v1179 = vperm.slane %v1177, 0
      %v1180 = vperm.slane %v1177, 1
      %v1183 = vmul.f32 %v1168, %v1179
      %v1184 = vmul.f32 %v1172, %v1180
      %v1185 = vmul.f32 %v1169, %v1179
      %v1186 = vmul.f32 %v1173, %v1180
      %v1187 = vmul.f32 %v1170, %v1179
      %v1188 = vmul.f32 %v1174, %v1180
      %v1189 = vmul.f32 %v1171, %v1179
      %v1190 = vmul.f32 %v1175, %v1180
      %s1191 = scalar_lea.vmem %s1, 256
      %v1192 = vld [vmem:[%s1191] sm:$0xff]
      %v1193 = vld [vmem:[%s1191 + $0x8] sm:$0xff]
      %v1194 = vld [vmem:[%s1191 + $0x10] sm:$0xff]
      %v1195 = vld [vmem:[%s1191 + $0x18] sm:$0xff]
      %v1197 = vsel %vm272, %v1192, 0
      %v1200 = vsel %vm272, %v1193, 0
      %v1203 = vsel %vm272, %v1194, 0
      %v1206 = vsel %vm272, %v1195, 0
      %1208 = vmatpush.msra.mxu0 0.0
      %1209 = vmatpush.msra.mxu0 0.0
      %1210 = vmatpush.msra.mxu0 0.0
      %1211 = vmatpush.msra.mxu0 0.0
      %1212 = vmatpush.msra.mxu0 0.0
      %1213 = vmatpush.msra.mxu0 0.0
      %1214 = vmatpush.msra.mxu0 0.0
      %1215 = vmatpush.msra.mxu0 0.0
      %1216 = vmatpush.msra.mxu0 0.0
      %1217 = vmatpush.msra.mxu0 0.0
      %1218 = vmatpush.msra.mxu0 0.0
      %1219 = vmatpush.msra.mxu0 0.0
      %1220 = vmatpush.msra.mxu0 %v1189
      %1221 = vmatpush.msra.mxu0 %v1187
      %1222 = vmatpush.msra.mxu0 %v1185
      %1223 = vmatpush.msra.mxu0 %v1183
      %1224 = vmatmul.f32.gmra.mxu0 %v1197
      %v1225 = vpop.f32.mrf.mxu0
      %v1226 = vadd.f32 0.0, %v1225
      %1227 = vmatmul.f32.gmra.mxu0 %v1200
      %v1228 = vpop.f32.mrf.mxu0
      %v1229 = vadd.f32 0.0, %v1228
      %1230 = vmatmul.f32.gmra.mxu0 %v1203
      %v1231 = vpop.f32.mrf.mxu0
      %v1232 = vadd.f32 0.0, %v1231
      %1233 = vmatmul.f32.gmra.mxu0 %v1206
      %v1234 = vpop.f32.mrf.mxu0
      %v1235 = vadd.f32 0.0, %v1234
      %1236 = vdwg.mxu0
      %1237 = vmatpush.msra.mxu0 0.0
      %1238 = vmatpush.msra.mxu0 0.0
      %1239 = vmatpush.msra.mxu0 0.0
      %1240 = vmatpush.msra.mxu0 0.0
      %1241 = vmatpush.msra.mxu0 0.0
      %1242 = vmatpush.msra.mxu0 0.0
      %1243 = vmatpush.msra.mxu0 0.0
      %1244 = vmatpush.msra.mxu0 0.0
      %1245 = vmatpush.msra.mxu0 0.0
      %1246 = vmatpush.msra.mxu0 0.0
      %1247 = vmatpush.msra.mxu0 0.0
      %1248 = vmatpush.msra.mxu0 0.0
      %1249 = vmatpush.msra.mxu0 %v1190
      %1250 = vmatpush.msra.mxu0 %v1188
      %1251 = vmatpush.msra.mxu0 %v1186
      %1252 = vmatpush.msra.mxu0 %v1184
      %1253 = vmatmul.f32.gmra.mxu0 %v1197
      %v1254 = vpop.f32.mrf.mxu0
      %v1255 = vadd.f32 0.0, %v1254
      %1256 = vmatmul.f32.gmra.mxu0 %v1200
      %v1257 = vpop.f32.mrf.mxu0
      %v1258 = vadd.f32 0.0, %v1257
      %1259 = vmatmul.f32.gmra.mxu0 %v1203
      %v1260 = vpop.f32.mrf.mxu0
      %v1261 = vadd.f32 0.0, %v1260
      %1262 = vmatmul.f32.gmra.mxu0 %v1206
      %v1263 = vpop.f32.mrf.mxu0
      %v1264 = vadd.f32 0.0, %v1263
      %1265 = vdwg.mxu0
      %v1266 = vadd.f32 %v1143, %v1226
      %v1267 = vadd.f32 %v1144, %v1255
      %v1268 = vadd.f32 %v1145, %v1229
      %v1269 = vadd.f32 %v1146, %v1258
      %v1270 = vadd.f32 %v1147, %v1232
      %v1271 = vadd.f32 %v1148, %v1261
      %v1272 = vadd.f32 %v1149, %v1235
      %v1273 = vadd.f32 %v1150, %v1264
      %v1274 = vld [vmem:[%s2] sm:$0xff]
      %v1275 = vld [vmem:[%s2 + $0x8] sm:$0xff]
      %v1276 = vld [vmem:[%s2 + $0x10] sm:$0xff]
      %v1277 = vld [vmem:[%s2 + $0x18] sm:$0xff]
      %1279 = vset.pattern.permute.xlu0 0
      %1280 = vperm.xlu0 %1279, %v1274
      %v1281 = vpop.permute.xlu0 %1280
      %1284 = vset.pattern.permute.xlu0 0
      %1285 = vperm.xlu0 %1284, %v1275
      %v1286 = vpop.permute.xlu0 %1285
      %1289 = vset.pattern.permute.xlu0 0
      %1290 = vperm.xlu0 %1289, %v1276
      %v1291 = vpop.permute.xlu0 %1290
      %1294 = vset.pattern.permute.xlu0 0
      %1295 = vperm.xlu0 %1294, %v1277
      %v1296 = vpop.permute.xlu0 %1295
      %v1298 = vadd.f32 %v1266, %v1281
      %v1299 = vadd.f32 %v1267, %v1281
      %v1300 = vadd.f32 %v1268, %v1286
      %v1301 = vadd.f32 %v1269, %v1286
      %v1302 = vadd.f32 %v1270, %v1291
      %v1303 = vadd.f32 %v1271, %v1291
      %v1304 = vadd.f32 %v1272, %v1296
      %v1305 = vadd.f32 %v1273, %v1296
      %v1306 = vmax.f32 %v1298, 0.0
      %v1307 = vmax.f32 %v1299, 0.0
      %v1308 = vmax.f32 %v1300, 0.0
      %v1309 = vmax.f32 %v1301, 0.0
      %v1310 = vmax.f32 %v1302, 0.0
      %v1311 = vmax.f32 %v1303, 0.0
      %v1312 = vmax.f32 %v1304, 0.0
      %v1313 = vmax.f32 %v1305, 0.0
      %s1314 = scalar_lea.vmem %s1, 416
      %v1315 = vld [vmem:[%s1314] sm:$0xff]
      %v1316 = vld [vmem:[%s1314 + $0x8] sm:$0xff]
      %v1317 = vld [vmem:[%s1314 + $0x10] sm:$0xff]
      %v1318 = vld [vmem:[%s1314 + $0x18] sm:$0xff]
      %1319 = vrot.lane.b32.xlu0 %v1306, 17
      %v1320 = vpop.permute.xlu0 %1319
      %1321 = vrot.lane.b32.xlu0 %v1308, 17
      %v1322 = vpop.permute.xlu0 %1321
      %1323 = vrot.lane.b32.xlu0 %v1310, 17
      %v1324 = vpop.permute.xlu0 %1323
      %1325 = vrot.lane.b32.xlu0 %v1312, 17
      %v1326 = vpop.permute.xlu0 %1325
      %1327 = vrot.lane.b32.xlu0 %v1307, 17
      %v1328 = vpop.permute.xlu0 %1327
      %1329 = vrot.lane.b32.xlu0 %v1309, 17
      %v1330 = vpop.permute.xlu0 %1329
      %1331 = vrot.lane.b32.xlu0 %v1311, 17
      %v1332 = vpop.permute.xlu0 %1331
      %1333 = vrot.lane.b32.xlu0 %v1313, 17
      %v1334 = vpop.permute.xlu0 %1333
      %v1335 = vsel %vm245, %v1320, %v1328
      %v1336 = vsel %vm245, %v1322, %v1330
      %v1337 = vsel %vm245, %v1324, %v1332
      %v1338 = vsel %vm245, %v1326, %v1334
      %v1339 = vsel %vm245, %v1328, %v1320
      %v1340 = vsel %vm245, %v1330, %v1322
      %v1341 = vsel %vm245, %v1332, %v1324
      %v1342 = vsel %vm245, %v1334, %v1326
      %v1343 = vmul.f32 %v1339, %v256
      %v1344 = vmul.f32 %v1335, %v257
      %v1345 = vmul.f32 %v1340, %v256
      %v1346 = vmul.f32 %v1336, %v257
      %v1347 = vmul.f32 %v1341, %v256
      %v1348 = vmul.f32 %v1337, %v257
      %v1349 = vmul.f32 %v1342, %v256
      %v1350 = vmul.f32 %v1338, %v257
      %s1351 = scalar_lea.vmem %s1, 288
      %v1352 = vld [vmem:[%s1351] sm:$0xff]
      %v1353 = vld [vmem:[%s1351 + $0x8] sm:$0xff]
      %v1354 = vld [vmem:[%s1351 + $0x10] sm:$0xff]
      %v1355 = vld [vmem:[%s1351 + $0x18] sm:$0xff]
      %v1357 = vsel %vm272, %v1352, 0
      %v1360 = vsel %vm272, %v1353, 0
      %v1363 = vsel %vm272, %v1354, 0
      %v1366 = vsel %vm272, %v1355, 0
      %1368 = vmatpush.msra.mxu0 0.0
      %1369 = vmatpush.msra.mxu0 0.0
      %1370 = vmatpush.msra.mxu0 0.0
      %1371 = vmatpush.msra.mxu0 0.0
      %1372 = vmatpush.msra.mxu0 0.0
      %1373 = vmatpush.msra.mxu0 0.0
      %1374 = vmatpush.msra.mxu0 0.0
      %1375 = vmatpush.msra.mxu0 0.0
      %1376 = vmatpush.msra.mxu0 0.0
      %1377 = vmatpush.msra.mxu0 0.0
      %1378 = vmatpush.msra.mxu0 0.0
      %1379 = vmatpush.msra.mxu0 0.0
      %1380 = vmatpush.msra.mxu0 %v1349
      %1381 = vmatpush.msra.mxu0 %v1347
      %1382 = vmatpush.msra.mxu0 %v1345
      %1383 = vmatpush.msra.mxu0 %v1343
      %1384 = vmatmul.f32.gmra.mxu0 %v1357
      %v1385 = vpop.f32.mrf.mxu0
      %v1386 = vadd.f32 0.0, %v1385
      %1387 = vmatmul.f32.gmra.mxu0 %v1360
      %v1388 = vpop.f32.mrf.mxu0
      %v1389 = vadd.f32 0.0, %v1388
      %1390 = vmatmul.f32.gmra.mxu0 %v1363
      %v1391 = vpop.f32.mrf.mxu0
      %v1392 = vadd.f32 0.0, %v1391
      %1393 = vmatmul.f32.gmra.mxu0 %v1366
      %v1394 = vpop.f32.mrf.mxu0
      %v1395 = vadd.f32 0.0, %v1394
      %1396 = vdwg.mxu0
      %1397 = vmatpush.msra.mxu0 0.0
      %1398 = vmatpush.msra.mxu0 0.0
      %1399 = vmatpush.msra.mxu0 0.0
      %1400 = vmatpush.msra.mxu0 0.0
      %1401 = vmatpush.msra.mxu0 0.0
      %1402 = vmatpush.msra.mxu0 0.0
      %1403 = vmatpush.msra.mxu0 0.0
      %1404 = vmatpush.msra.mxu0 0.0
      %1405 = vmatpush.msra.mxu0 0.0
      %1406 = vmatpush.msra.mxu0 0.0
      %1407 = vmatpush.msra.mxu0 0.0
      %1408 = vmatpush.msra.mxu0 0.0
      %1409 = vmatpush.msra.mxu0 %v1350
      %1410 = vmatpush.msra.mxu0 %v1348
      %1411 = vmatpush.msra.mxu0 %v1346
      %1412 = vmatpush.msra.mxu0 %v1344
      %1413 = vmatmul.f32.gmra.mxu0 %v1357
      %v1414 = vpop.f32.mrf.mxu0
      %v1415 = vadd.f32 0.0, %v1414
      %1416 = vmatmul.f32.gmra.mxu0 %v1360
      %v1417 = vpop.f32.mrf.mxu0
      %v1418 = vadd.f32 0.0, %v1417
      %1419 = vmatmul.f32.gmra.mxu0 %v1363
      %v1420 = vpop.f32.mrf.mxu0
      %v1421 = vadd.f32 0.0, %v1420
      %1422 = vmatmul.f32.gmra.mxu0 %v1366
      %v1423 = vpop.f32.mrf.mxu0
      %v1424 = vadd.f32 0.0, %v1423
      %1425 = vdwg.mxu0
      %v1427 = vsel %vm272, %v1315, 0
      %v1430 = vsel %vm272, %v1316, 0
      %v1433 = vsel %vm272, %v1317, 0
      %v1436 = vsel %vm272, %v1318, 0
      %1438 = vmatpush.msra.mxu0 0.0
      %1439 = vmatpush.msra.mxu0 0.0
      %1440 = vmatpush.msra.mxu0 0.0
      %1441 = vmatpush.msra.mxu0 0.0
      %1442 = vmatpush.msra.mxu0 0.0
      %1443 = vmatpush.msra.mxu0 0.0
      %1444 = vmatpush.msra.mxu0 0.0
      %1445 = vmatpush.msra.mxu0 0.0
      %1446 = vmatpush.msra.mxu0 0.0
      %1447 = vmatpush.msra.mxu0 0.0
      %1448 = vmatpush.msra.mxu0 0.0
      %1449 = vmatpush.msra.mxu0 0.0
      %1450 = vmatpush.msra.mxu0 %v1312
      %1451 = vmatpush.msra.mxu0 %v1310
      %1452 = vmatpush.msra.mxu0 %v1308
      %1453 = vmatpush.msra.mxu0 %v1306
      %1454 = vmatmul.f32.gmra.mxu0 %v1427
      %v1455 = vpop.f32.mrf.mxu0
      %v1456 = vadd.f32 %v1386, %v1455
      %1457 = vmatmul.f32.gmra.mxu0 %v1430
      %v1458 = vpop.f32.mrf.mxu0
      %v1459 = vadd.f32 %v1389, %v1458
      %1460 = vmatmul.f32.gmra.mxu0 %v1433
      %v1461 = vpop.f32.mrf.mxu0
      %v1462 = vadd.f32 %v1392, %v1461
      %1463 = vmatmul.f32.gmra.mxu0 %v1436
      %v1464 = vpop.f32.mrf.mxu0
      %v1465 = vadd.f32 %v1395, %v1464
      %1466 = vdwg.mxu0
      %1467 = vmatpush.msra.mxu0 0.0
      %1468 = vmatpush.msra.mxu0 0.0
      %1469 = vmatpush.msra.mxu0 0.0
      %1470 = vmatpush.msra.mxu0 0.0
      %1471 = vmatpush.msra.mxu0 0.0
      %1472 = vmatpush.msra.mxu0 0.0
      %1473 = vmatpush.msra.mxu0 0.0
      %1474 = vmatpush.msra.mxu0 0.0
      %1475 = vmatpush.msra.mxu0 0.0
      %1476 = vmatpush.msra.mxu0 0.0
      %1477 = vmatpush.msra.mxu0 0.0
      %1478 = vmatpush.msra.mxu0 0.0
      %1479 = vmatpush.msra.mxu0 %v1313
      %1480 = vmatpush.msra.mxu0 %v1311
      %1481 = vmatpush.msra.mxu0 %v1309
      %1482 = vmatpush.msra.mxu0 %v1307
      %1483 = vmatmul.f32.gmra.mxu0 %v1427
      %v1484 = vpop.f32.mrf.mxu0
      %v1485 = vadd.f32 %v1415, %v1484
      %1486 = vmatmul.f32.gmra.mxu0 %v1430
      %v1487 = vpop.f32.mrf.mxu0
      %v1488 = vadd.f32 %v1418, %v1487
      %1489 = vmatmul.f32.gmra.mxu0 %v1433
      %v1490 = vpop.f32.mrf.mxu0
      %v1491 = vadd.f32 %v1421, %v1490
      %1492 = vmatmul.f32.gmra.mxu0 %v1436
      %v1493 = vpop.f32.mrf.mxu0
      %v1494 = vadd.f32 %v1424, %v1493
      %1495 = vdwg.mxu0
      %1496 = vrot.lane.b32.xlu0 %v1306, 16
      %v1497 = vpop.permute.xlu0 %1496
      %1498 = vrot.lane.b32.xlu0 %v1308, 16
      %v1499 = vpop.permute.xlu0 %1498
      %1500 = vrot.lane.b32.xlu0 %v1310, 16
      %v1501 = vpop.permute.xlu0 %1500
      %1502 = vrot.lane.b32.xlu0 %v1312, 16
      %v1503 = vpop.permute.xlu0 %1502
      %1504 = vrot.lane.b32.xlu0 %v1307, 16
      %v1505 = vpop.permute.xlu0 %1504
      %1506 = vrot.lane.b32.xlu0 %v1309, 16
      %v1507 = vpop.permute.xlu0 %1506
      %1508 = vrot.lane.b32.xlu0 %v1311, 16
      %v1509 = vpop.permute.xlu0 %1508
      %1510 = vrot.lane.b32.xlu0 %v1313, 16
      %v1511 = vpop.permute.xlu0 %1510
      %v1512 = vsel %vm429, %v1497, %v1505
      %v1513 = vsel %vm429, %v1499, %v1507
      %v1514 = vsel %vm429, %v1501, %v1509
      %v1515 = vsel %vm429, %v1503, %v1511
      %v1516 = vsel %vm429, %v1505, %v1497
      %v1517 = vsel %vm429, %v1507, %v1499
      %v1518 = vsel %vm429, %v1509, %v1501
      %v1519 = vsel %vm429, %v1511, %v1503
      %v1520 = vmul.f32 %v1516, %v441
      %v1521 = vmul.f32 %v1512, %v442
      %v1522 = vmul.f32 %v1517, %v441
      %v1523 = vmul.f32 %v1513, %v442
      %v1524 = vmul.f32 %v1518, %v441
      %v1525 = vmul.f32 %v1514, %v442
      %v1526 = vmul.f32 %v1519, %v441
      %v1527 = vmul.f32 %v1515, %v442
      %s1528 = scalar_lea.vmem %s1, 320
      %v1529 = vld [vmem:[%s1528] sm:$0xff]
      %v1530 = vld [vmem:[%s1528 + $0x8] sm:$0xff]
      %v1531 = vld [vmem:[%s1528 + $0x10] sm:$0xff]
      %v1532 = vld [vmem:[%s1528 + $0x18] sm:$0xff]
      %v1534 = vsel %vm272, %v1529, 0
      %v1537 = vsel %vm272, %v1530, 0
      %v1540 = vsel %vm272, %v1531, 0
      %v1543 = vsel %vm272, %v1532, 0
      %1545 = vmatpush.msra.mxu0 0.0
      %1546 = vmatpush.msra.mxu0 0.0
      %1547 = vmatpush.msra.mxu0 0.0
      %1548 = vmatpush.msra.mxu0 0.0
      %1549 = vmatpush.msra.mxu0 0.0
      %1550 = vmatpush.msra.mxu0 0.0
      %1551 = vmatpush.msra.mxu0 0.0
      %1552 = vmatpush.msra.mxu0 0.0
      %1553 = vmatpush.msra.mxu0 0.0
      %1554 = vmatpush.msra.mxu0 0.0
      %1555 = vmatpush.msra.mxu0 0.0
      %1556 = vmatpush.msra.mxu0 0.0
      %1557 = vmatpush.msra.mxu0 %v1526
      %1558 = vmatpush.msra.mxu0 %v1524
      %1559 = vmatpush.msra.mxu0 %v1522
      %1560 = vmatpush.msra.mxu0 %v1520
      %1561 = vmatmul.f32.gmra.mxu0 %v1534
      %v1562 = vpop.f32.mrf.mxu0
      %v1563 = vadd.f32 0.0, %v1562
      %1564 = vmatmul.f32.gmra.mxu0 %v1537
      %v1565 = vpop.f32.mrf.mxu0
      %v1566 = vadd.f32 0.0, %v1565
      %1567 = vmatmul.f32.gmra.mxu0 %v1540
      %v1568 = vpop.f32.mrf.mxu0
      %v1569 = vadd.f32 0.0, %v1568
      %1570 = vmatmul.f32.gmra.mxu0 %v1543
      %v1571 = vpop.f32.mrf.mxu0
      %v1572 = vadd.f32 0.0, %v1571
      %1573 = vdwg.mxu0
      %1574 = vmatpush.msra.mxu0 0.0
      %1575 = vmatpush.msra.mxu0 0.0
      %1576 = vmatpush.msra.mxu0 0.0
      %1577 = vmatpush.msra.mxu0 0.0
      %1578 = vmatpush.msra.mxu0 0.0
      %1579 = vmatpush.msra.mxu0 0.0
      %1580 = vmatpush.msra.mxu0 0.0
      %1581 = vmatpush.msra.mxu0 0.0
      %1582 = vmatpush.msra.mxu0 0.0
      %1583 = vmatpush.msra.mxu0 0.0
      %1584 = vmatpush.msra.mxu0 0.0
      %1585 = vmatpush.msra.mxu0 0.0
      %1586 = vmatpush.msra.mxu0 %v1527
      %1587 = vmatpush.msra.mxu0 %v1525
      %1588 = vmatpush.msra.mxu0 %v1523
      %1589 = vmatpush.msra.mxu0 %v1521
      %1590 = vmatmul.f32.gmra.mxu0 %v1534
      %v1591 = vpop.f32.mrf.mxu0
      %v1592 = vadd.f32 0.0, %v1591
      %1593 = vmatmul.f32.gmra.mxu0 %v1537
      %v1594 = vpop.f32.mrf.mxu0
      %v1595 = vadd.f32 0.0, %v1594
      %1596 = vmatmul.f32.gmra.mxu0 %v1540
      %v1597 = vpop.f32.mrf.mxu0
      %v1598 = vadd.f32 0.0, %v1597
      %1599 = vmatmul.f32.gmra.mxu0 %v1543
      %v1600 = vpop.f32.mrf.mxu0
      %v1601 = vadd.f32 0.0, %v1600
      %1602 = vdwg.mxu0
      %v1603 = vadd.f32 %v1456, %v1563
      %v1604 = vadd.f32 %v1485, %v1592
      %v1605 = vadd.f32 %v1459, %v1566
      %v1606 = vadd.f32 %v1488, %v1595
      %v1607 = vadd.f32 %v1462, %v1569
      %v1608 = vadd.f32 %v1491, %v1598
      %v1609 = vadd.f32 %v1465, %v1572
      %v1610 = vadd.f32 %v1494, %v1601
      %1611 = vrot.lane.b32.xlu0 %v1306, 15
      %v1612 = vpop.permute.xlu0 %1611
      %1613 = vrot.lane.b32.xlu0 %v1308, 15
      %v1614 = vpop.permute.xlu0 %1613
      %1615 = vrot.lane.b32.xlu0 %v1310, 15
      %v1616 = vpop.permute.xlu0 %1615
      %1617 = vrot.lane.b32.xlu0 %v1312, 15
      %v1618 = vpop.permute.xlu0 %1617
      %1619 = vrot.lane.b32.xlu0 %v1307, 15
      %v1620 = vpop.permute.xlu0 %1619
      %1621 = vrot.lane.b32.xlu0 %v1309, 15
      %v1622 = vpop.permute.xlu0 %1621
      %1623 = vrot.lane.b32.xlu0 %v1311, 15
      %v1624 = vpop.permute.xlu0 %1623
      %1625 = vrot.lane.b32.xlu0 %v1313, 15
      %v1626 = vpop.permute.xlu0 %1625
      %v1627 = vsel %vm552, %v1612, %v1620
      %v1628 = vsel %vm552, %v1614, %v1622
      %v1629 = vsel %vm552, %v1616, %v1624
      %v1630 = vsel %vm552, %v1618, %v1626
      %v1631 = vsel %vm552, %v1620, %v1612
      %v1632 = vsel %vm552, %v1622, %v1614
      %v1633 = vsel %vm552, %v1624, %v1616
      %v1634 = vsel %vm552, %v1626, %v1618
      %v1635 = vmul.f32 %v1631, %v564
      %v1636 = vmul.f32 %v1627, %v565
      %v1637 = vmul.f32 %v1632, %v564
      %v1638 = vmul.f32 %v1628, %v565
      %v1639 = vmul.f32 %v1633, %v564
      %v1640 = vmul.f32 %v1629, %v565
      %v1641 = vmul.f32 %v1634, %v564
      %v1642 = vmul.f32 %v1630, %v565
      %s1643 = scalar_lea.vmem %s1, 352
      %v1644 = vld [vmem:[%s1643] sm:$0xff]
      %v1645 = vld [vmem:[%s1643 + $0x8] sm:$0xff]
      %v1646 = vld [vmem:[%s1643 + $0x10] sm:$0xff]
      %v1647 = vld [vmem:[%s1643 + $0x18] sm:$0xff]
      %v1649 = vsel %vm272, %v1644, 0
      %v1652 = vsel %vm272, %v1645, 0
      %v1655 = vsel %vm272, %v1646, 0
      %v1658 = vsel %vm272, %v1647, 0
      %1660 = vmatpush.msra.mxu0 0.0
      %1661 = vmatpush.msra.mxu0 0.0
      %1662 = vmatpush.msra.mxu0 0.0
      %1663 = vmatpush.msra.mxu0 0.0
      %1664 = vmatpush.msra.mxu0 0.0
      %1665 = vmatpush.msra.mxu0 0.0
      %1666 = vmatpush.msra.mxu0 0.0
      %1667 = vmatpush.msra.mxu0 0.0
      %1668 = vmatpush.msra.mxu0 0.0
      %1669 = vmatpush.msra.mxu0 0.0
      %1670 = vmatpush.msra.mxu0 0.0
      %1671 = vmatpush.msra.mxu0 0.0
      %1672 = vmatpush.msra.mxu0 %v1641
      %1673 = vmatpush.msra.mxu0 %v1639
      %1674 = vmatpush.msra.mxu0 %v1637
      %1675 = vmatpush.msra.mxu0 %v1635
      %1676 = vmatmul.f32.gmra.mxu0 %v1649
      %v1677 = vpop.f32.mrf.mxu0
      %v1678 = vadd.f32 0.0, %v1677
      %1679 = vmatmul.f32.gmra.mxu0 %v1652
      %v1680 = vpop.f32.mrf.mxu0
      %v1681 = vadd.f32 0.0, %v1680
      %1682 = vmatmul.f32.gmra.mxu0 %v1655
      %v1683 = vpop.f32.mrf.mxu0
      %v1684 = vadd.f32 0.0, %v1683
      %1685 = vmatmul.f32.gmra.mxu0 %v1658
      %v1686 = vpop.f32.mrf.mxu0
      %v1687 = vadd.f32 0.0, %v1686
      %1688 = vdwg.mxu0
      %1689 = vmatpush.msra.mxu0 0.0
      %1690 = vmatpush.msra.mxu0 0.0
      %1691 = vmatpush.msra.mxu0 0.0
      %1692 = vmatpush.msra.mxu0 0.0
      %1693 = vmatpush.msra.mxu0 0.0
      %1694 = vmatpush.msra.mxu0 0.0
      %1695 = vmatpush.msra.mxu0 0.0
      %1696 = vmatpush.msra.mxu0 0.0
      %1697 = vmatpush.msra.mxu0 0.0
      %1698 = vmatpush.msra.mxu0 0.0
      %1699 = vmatpush.msra.mxu0 0.0
      %1700 = vmatpush.msra.mxu0 0.0
      %1701 = vmatpush.msra.mxu0 %v1642
      %1702 = vmatpush.msra.mxu0 %v1640
      %1703 = vmatpush.msra.mxu0 %v1638
      %1704 = vmatpush.msra.mxu0 %v1636
      %1705 = vmatmul.f32.gmra.mxu0 %v1649
      %v1706 = vpop.f32.mrf.mxu0
      %v1707 = vadd.f32 0.0, %v1706
      %1708 = vmatmul.f32.gmra.mxu0 %v1652
      %v1709 = vpop.f32.mrf.mxu0
      %v1710 = vadd.f32 0.0, %v1709
      %1711 = vmatmul.f32.gmra.mxu0 %v1655
      %v1712 = vpop.f32.mrf.mxu0
      %v1713 = vadd.f32 0.0, %v1712
      %1714 = vmatmul.f32.gmra.mxu0 %v1658
      %v1715 = vpop.f32.mrf.mxu0
      %v1716 = vadd.f32 0.0, %v1715
      %1717 = vdwg.mxu0
      %v1718 = vadd.f32 %v1603, %v1678
      %v1719 = vadd.f32 %v1604, %v1707
      %v1720 = vadd.f32 %v1605, %v1681
      %v1721 = vadd.f32 %v1606, %v1710
      %v1722 = vadd.f32 %v1607, %v1684
      %v1723 = vadd.f32 %v1608, %v1713
      %v1724 = vadd.f32 %v1609, %v1687
      %v1725 = vadd.f32 %v1610, %v1716
      %1726 = vrot.lane.b32.xlu0 %v1306, 1
      %v1727 = vpop.permute.xlu0 %1726
      %1728 = vrot.lane.b32.xlu0 %v1308, 1
      %v1729 = vpop.permute.xlu0 %1728
      %1730 = vrot.lane.b32.xlu0 %v1310, 1
      %v1731 = vpop.permute.xlu0 %1730
      %1732 = vrot.lane.b32.xlu0 %v1312, 1
      %v1733 = vpop.permute.xlu0 %1732
      %1734 = vrot.lane.b32.xlu0 %v1307, 1
      %v1735 = vpop.permute.xlu0 %1734
      %1736 = vrot.lane.b32.xlu0 %v1309, 1
      %v1737 = vpop.permute.xlu0 %1736
      %1738 = vrot.lane.b32.xlu0 %v1311, 1
      %v1739 = vpop.permute.xlu0 %1738
      %1740 = vrot.lane.b32.xlu0 %v1313, 1
      %v1741 = vpop.permute.xlu0 %1740
      %v1742 = vsel %vm675, %v1727, %v1735
      %v1743 = vsel %vm675, %v1729, %v1737
      %v1744 = vsel %vm675, %v1731, %v1739
      %v1745 = vsel %vm675, %v1733, %v1741
      %v1746 = vsel %vm675, %v1735, %v1727
      %v1747 = vsel %vm675, %v1737, %v1729
      %v1748 = vsel %vm675, %v1739, %v1731
      %v1749 = vsel %vm675, %v1741, %v1733
      %v1750 = vmul.f32 %v1746, %v687
      %v1751 = vmul.f32 %v1742, %v688
      %v1752 = vmul.f32 %v1747, %v687
      %v1753 = vmul.f32 %v1743, %v688
      %v1754 = vmul.f32 %v1748, %v687
      %v1755 = vmul.f32 %v1744, %v688
      %v1756 = vmul.f32 %v1749, %v687
      %v1757 = vmul.f32 %v1745, %v688
      %s1758 = scalar_lea.vmem %s1, 384
      %v1759 = vld [vmem:[%s1758] sm:$0xff]
      %v1760 = vld [vmem:[%s1758 + $0x8] sm:$0xff]
      %v1761 = vld [vmem:[%s1758 + $0x10] sm:$0xff]
      %v1762 = vld [vmem:[%s1758 + $0x18] sm:$0xff]
      %v1764 = vsel %vm272, %v1759, 0
      %v1767 = vsel %vm272, %v1760, 0
      %v1770 = vsel %vm272, %v1761, 0
      %v1773 = vsel %vm272, %v1762, 0
      %1775 = vmatpush.msra.mxu0 0.0
      %1776 = vmatpush.msra.mxu0 0.0
      %1777 = vmatpush.msra.mxu0 0.0
      %1778 = vmatpush.msra.mxu0 0.0
      %1779 = vmatpush.msra.mxu0 0.0
      %1780 = vmatpush.msra.mxu0 0.0
      %1781 = vmatpush.msra.mxu0 0.0
      %1782 = vmatpush.msra.mxu0 0.0
      %1783 = vmatpush.msra.mxu0 0.0
      %1784 = vmatpush.msra.mxu0 0.0
      %1785 = vmatpush.msra.mxu0 0.0
      %1786 = vmatpush.msra.mxu0 0.0
      %1787 = vmatpush.msra.mxu0 %v1756
      %1788 = vmatpush.msra.mxu0 %v1754
      %1789 = vmatpush.msra.mxu0 %v1752
      %1790 = vmatpush.msra.mxu0 %v1750
      %1791 = vmatmul.f32.gmra.mxu0 %v1764
      %v1792 = vpop.f32.mrf.mxu0
      %v1793 = vadd.f32 0.0, %v1792
      %1794 = vmatmul.f32.gmra.mxu0 %v1767
      %v1795 = vpop.f32.mrf.mxu0
      %v1796 = vadd.f32 0.0, %v1795
      %1797 = vmatmul.f32.gmra.mxu0 %v1770
      %v1798 = vpop.f32.mrf.mxu0
      %v1799 = vadd.f32 0.0, %v1798
      %1800 = vmatmul.f32.gmra.mxu0 %v1773
      %v1801 = vpop.f32.mrf.mxu0
      %v1802 = vadd.f32 0.0, %v1801
      %1803 = vdwg.mxu0
      %1804 = vmatpush.msra.mxu0 0.0
      %1805 = vmatpush.msra.mxu0 0.0
      %1806 = vmatpush.msra.mxu0 0.0
      %1807 = vmatpush.msra.mxu0 0.0
      %1808 = vmatpush.msra.mxu0 0.0
      %1809 = vmatpush.msra.mxu0 0.0
      %1810 = vmatpush.msra.mxu0 0.0
      %1811 = vmatpush.msra.mxu0 0.0
      %1812 = vmatpush.msra.mxu0 0.0
      %1813 = vmatpush.msra.mxu0 0.0
      %1814 = vmatpush.msra.mxu0 0.0
      %1815 = vmatpush.msra.mxu0 0.0
      %1816 = vmatpush.msra.mxu0 %v1757
      %1817 = vmatpush.msra.mxu0 %v1755
      %1818 = vmatpush.msra.mxu0 %v1753
      %1819 = vmatpush.msra.mxu0 %v1751
      %1820 = vmatmul.f32.gmra.mxu0 %v1764
      %v1821 = vpop.f32.mrf.mxu0
      %v1822 = vadd.f32 0.0, %v1821
      %1823 = vmatmul.f32.gmra.mxu0 %v1767
      %v1824 = vpop.f32.mrf.mxu0
      %v1825 = vadd.f32 0.0, %v1824
      %1826 = vmatmul.f32.gmra.mxu0 %v1770
      %v1827 = vpop.f32.mrf.mxu0
      %v1828 = vadd.f32 0.0, %v1827
      %1829 = vmatmul.f32.gmra.mxu0 %v1773
      %v1830 = vpop.f32.mrf.mxu0
      %v1831 = vadd.f32 0.0, %v1830
      %1832 = vdwg.mxu0
      %v1833 = vadd.f32 %v1718, %v1793
      %v1834 = vadd.f32 %v1719, %v1822
      %v1835 = vadd.f32 %v1720, %v1796
      %v1836 = vadd.f32 %v1721, %v1825
      %v1837 = vadd.f32 %v1722, %v1799
      %v1838 = vadd.f32 %v1723, %v1828
      %v1839 = vadd.f32 %v1724, %v1802
      %v1840 = vadd.f32 %v1725, %v1831
      %1841 = vrot.lane.b32.xlu0 %v1306, 127
      %v1842 = vpop.permute.xlu0 %1841
      %1843 = vrot.lane.b32.xlu0 %v1308, 127
      %v1844 = vpop.permute.xlu0 %1843
      %1845 = vrot.lane.b32.xlu0 %v1310, 127
      %v1846 = vpop.permute.xlu0 %1845
      %1847 = vrot.lane.b32.xlu0 %v1312, 127
      %v1848 = vpop.permute.xlu0 %1847
      %1849 = vrot.lane.b32.xlu0 %v1307, 127
      %v1850 = vpop.permute.xlu0 %1849
      %1851 = vrot.lane.b32.xlu0 %v1309, 127
      %v1852 = vpop.permute.xlu0 %1851
      %1853 = vrot.lane.b32.xlu0 %v1311, 127
      %v1854 = vpop.permute.xlu0 %1853
      %1855 = vrot.lane.b32.xlu0 %v1313, 127
      %v1856 = vpop.permute.xlu0 %1855
      %v1857 = vsel %vm798, %v1842, %v1850
      %v1858 = vsel %vm798, %v1844, %v1852
      %v1859 = vsel %vm798, %v1846, %v1854
      %v1860 = vsel %vm798, %v1848, %v1856
      %v1861 = vsel %vm798, %v1850, %v1842
      %v1862 = vsel %vm798, %v1852, %v1844
      %v1863 = vsel %vm798, %v1854, %v1846
      %v1864 = vsel %vm798, %v1856, %v1848
      %v1865 = vmul.f32 %v1857, %v810
      %v1866 = vmul.f32 %v1861, %v811
      %v1867 = vmul.f32 %v1858, %v810
      %v1868 = vmul.f32 %v1862, %v811
      %v1869 = vmul.f32 %v1859, %v810
      %v1870 = vmul.f32 %v1863, %v811
      %v1871 = vmul.f32 %v1860, %v810
      %v1872 = vmul.f32 %v1864, %v811
      %s1873 = scalar_lea.vmem %s1, 448
      %v1874 = vld [vmem:[%s1873] sm:$0xff]
      %v1875 = vld [vmem:[%s1873 + $0x8] sm:$0xff]
      %v1876 = vld [vmem:[%s1873 + $0x10] sm:$0xff]
      %v1877 = vld [vmem:[%s1873 + $0x18] sm:$0xff]
      %v1879 = vsel %vm272, %v1874, 0
      %v1882 = vsel %vm272, %v1875, 0
      %v1885 = vsel %vm272, %v1876, 0
      %v1888 = vsel %vm272, %v1877, 0
      %1890 = vmatpush.msra.mxu0 0.0
      %1891 = vmatpush.msra.mxu0 0.0
      %1892 = vmatpush.msra.mxu0 0.0
      %1893 = vmatpush.msra.mxu0 0.0
      %1894 = vmatpush.msra.mxu0 0.0
      %1895 = vmatpush.msra.mxu0 0.0
      %1896 = vmatpush.msra.mxu0 0.0
      %1897 = vmatpush.msra.mxu0 0.0
      %1898 = vmatpush.msra.mxu0 0.0
      %1899 = vmatpush.msra.mxu0 0.0
      %1900 = vmatpush.msra.mxu0 0.0
      %1901 = vmatpush.msra.mxu0 0.0
      %1902 = vmatpush.msra.mxu0 %v1871
      %1903 = vmatpush.msra.mxu0 %v1869
      %1904 = vmatpush.msra.mxu0 %v1867
      %1905 = vmatpush.msra.mxu0 %v1865
      %1906 = vmatmul.f32.gmra.mxu0 %v1879
      %v1907 = vpop.f32.mrf.mxu0
      %v1908 = vadd.f32 0.0, %v1907
      %1909 = vmatmul.f32.gmra.mxu0 %v1882
      %v1910 = vpop.f32.mrf.mxu0
      %v1911 = vadd.f32 0.0, %v1910
      %1912 = vmatmul.f32.gmra.mxu0 %v1885
      %v1913 = vpop.f32.mrf.mxu0
      %v1914 = vadd.f32 0.0, %v1913
      %1915 = vmatmul.f32.gmra.mxu0 %v1888
      %v1916 = vpop.f32.mrf.mxu0
      %v1917 = vadd.f32 0.0, %v1916
      %1918 = vdwg.mxu0
      %1919 = vmatpush.msra.mxu0 0.0
      %1920 = vmatpush.msra.mxu0 0.0
      %1921 = vmatpush.msra.mxu0 0.0
      %1922 = vmatpush.msra.mxu0 0.0
      %1923 = vmatpush.msra.mxu0 0.0
      %1924 = vmatpush.msra.mxu0 0.0
      %1925 = vmatpush.msra.mxu0 0.0
      %1926 = vmatpush.msra.mxu0 0.0
      %1927 = vmatpush.msra.mxu0 0.0
      %1928 = vmatpush.msra.mxu0 0.0
      %1929 = vmatpush.msra.mxu0 0.0
      %1930 = vmatpush.msra.mxu0 0.0
      %1931 = vmatpush.msra.mxu0 %v1872
      %1932 = vmatpush.msra.mxu0 %v1870
      %1933 = vmatpush.msra.mxu0 %v1868
      %1934 = vmatpush.msra.mxu0 %v1866
      %1935 = vmatmul.f32.gmra.mxu0 %v1879
      %v1936 = vpop.f32.mrf.mxu0
      %v1937 = vadd.f32 0.0, %v1936
      %1938 = vmatmul.f32.gmra.mxu0 %v1882
      %v1939 = vpop.f32.mrf.mxu0
      %v1940 = vadd.f32 0.0, %v1939
      %1941 = vmatmul.f32.gmra.mxu0 %v1885
      %v1942 = vpop.f32.mrf.mxu0
      %v1943 = vadd.f32 0.0, %v1942
      %1944 = vmatmul.f32.gmra.mxu0 %v1888
      %v1945 = vpop.f32.mrf.mxu0
      %v1946 = vadd.f32 0.0, %v1945
      %1947 = vdwg.mxu0
      %v1948 = vadd.f32 %v1833, %v1908
      %v1949 = vadd.f32 %v1834, %v1937
      %v1950 = vadd.f32 %v1835, %v1911
      %v1951 = vadd.f32 %v1836, %v1940
      %v1952 = vadd.f32 %v1837, %v1914
      %v1953 = vadd.f32 %v1838, %v1943
      %v1954 = vadd.f32 %v1839, %v1917
      %v1955 = vadd.f32 %v1840, %v1946
      %1956 = vrot.lane.b32.xlu0 %v1306, 113
      %v1957 = vpop.permute.xlu0 %1956
      %1958 = vrot.lane.b32.xlu0 %v1308, 113
      %v1959 = vpop.permute.xlu0 %1958
      %1960 = vrot.lane.b32.xlu0 %v1310, 113
      %v1961 = vpop.permute.xlu0 %1960
      %1962 = vrot.lane.b32.xlu0 %v1312, 113
      %v1963 = vpop.permute.xlu0 %1962
      %1964 = vrot.lane.b32.xlu0 %v1307, 113
      %v1965 = vpop.permute.xlu0 %1964
      %1966 = vrot.lane.b32.xlu0 %v1309, 113
      %v1967 = vpop.permute.xlu0 %1966
      %1968 = vrot.lane.b32.xlu0 %v1311, 113
      %v1969 = vpop.permute.xlu0 %1968
      %1970 = vrot.lane.b32.xlu0 %v1313, 113
      %v1971 = vpop.permute.xlu0 %1970
      %v1972 = vsel %vm921, %v1957, %v1965
      %v1973 = vsel %vm921, %v1959, %v1967
      %v1974 = vsel %vm921, %v1961, %v1969
      %v1975 = vsel %vm921, %v1963, %v1971
      %v1976 = vsel %vm921, %v1965, %v1957
      %v1977 = vsel %vm921, %v1967, %v1959
      %v1978 = vsel %vm921, %v1969, %v1961
      %v1979 = vsel %vm921, %v1971, %v1963
      %v1980 = vmul.f32 %v1972, %v933
      %v1981 = vmul.f32 %v1976, %v934
      %v1982 = vmul.f32 %v1973, %v933
      %v1983 = vmul.f32 %v1977, %v934
      %v1984 = vmul.f32 %v1974, %v933
      %v1985 = vmul.f32 %v1978, %v934
      %v1986 = vmul.f32 %v1975, %v933
      %v1987 = vmul.f32 %v1979, %v934
      %s1988 = scalar_lea.vmem %s1, 480
      %v1989 = vld [vmem:[%s1988] sm:$0xff]
      %v1990 = vld [vmem:[%s1988 + $0x8] sm:$0xff]
      %v1991 = vld [vmem:[%s1988 + $0x10] sm:$0xff]
      %v1992 = vld [vmem:[%s1988 + $0x18] sm:$0xff]
      %v1994 = vsel %vm272, %v1989, 0
      %v1997 = vsel %vm272, %v1990, 0
      %v2000 = vsel %vm272, %v1991, 0
      %v2003 = vsel %vm272, %v1992, 0
      %2005 = vmatpush.msra.mxu0 0.0
      %2006 = vmatpush.msra.mxu0 0.0
      %2007 = vmatpush.msra.mxu0 0.0
      %2008 = vmatpush.msra.mxu0 0.0
      %2009 = vmatpush.msra.mxu0 0.0
      %2010 = vmatpush.msra.mxu0 0.0
      %2011 = vmatpush.msra.mxu0 0.0
      %2012 = vmatpush.msra.mxu0 0.0
      %2013 = vmatpush.msra.mxu0 0.0
      %2014 = vmatpush.msra.mxu0 0.0
      %2015 = vmatpush.msra.mxu0 0.0
      %2016 = vmatpush.msra.mxu0 0.0
      %2017 = vmatpush.msra.mxu0 %v1986
      %2018 = vmatpush.msra.mxu0 %v1984
      %2019 = vmatpush.msra.mxu0 %v1982
      %2020 = vmatpush.msra.mxu0 %v1980
      %2021 = vmatmul.f32.gmra.mxu0 %v1994
      %v2022 = vpop.f32.mrf.mxu0
      %v2023 = vadd.f32 0.0, %v2022
      %2024 = vmatmul.f32.gmra.mxu0 %v1997
      %v2025 = vpop.f32.mrf.mxu0
      %v2026 = vadd.f32 0.0, %v2025
      %2027 = vmatmul.f32.gmra.mxu0 %v2000
      %v2028 = vpop.f32.mrf.mxu0
      %v2029 = vadd.f32 0.0, %v2028
      %2030 = vmatmul.f32.gmra.mxu0 %v2003
      %v2031 = vpop.f32.mrf.mxu0
      %v2032 = vadd.f32 0.0, %v2031
      %2033 = vdwg.mxu0
      %2034 = vmatpush.msra.mxu0 0.0
      %2035 = vmatpush.msra.mxu0 0.0
      %2036 = vmatpush.msra.mxu0 0.0
      %2037 = vmatpush.msra.mxu0 0.0
      %2038 = vmatpush.msra.mxu0 0.0
      %2039 = vmatpush.msra.mxu0 0.0
      %2040 = vmatpush.msra.mxu0 0.0
      %2041 = vmatpush.msra.mxu0 0.0
      %2042 = vmatpush.msra.mxu0 0.0
      %2043 = vmatpush.msra.mxu0 0.0
      %2044 = vmatpush.msra.mxu0 0.0
      %2045 = vmatpush.msra.mxu0 0.0
      %2046 = vmatpush.msra.mxu0 %v1987
      %2047 = vmatpush.msra.mxu0 %v1985
      %2048 = vmatpush.msra.mxu0 %v1983
      %2049 = vmatpush.msra.mxu0 %v1981
      %2050 = vmatmul.f32.gmra.mxu0 %v1994
      %v2051 = vpop.f32.mrf.mxu0
      %v2052 = vadd.f32 0.0, %v2051
      %2053 = vmatmul.f32.gmra.mxu0 %v1997
      %v2054 = vpop.f32.mrf.mxu0
      %v2055 = vadd.f32 0.0, %v2054
      %2056 = vmatmul.f32.gmra.mxu0 %v2000
      %v2057 = vpop.f32.mrf.mxu0
      %v2058 = vadd.f32 0.0, %v2057
      %2059 = vmatmul.f32.gmra.mxu0 %v2003
      %v2060 = vpop.f32.mrf.mxu0
      %v2061 = vadd.f32 0.0, %v2060
      %2062 = vdwg.mxu0
      %v2063 = vadd.f32 %v1948, %v2023
      %v2064 = vadd.f32 %v1949, %v2052
      %v2065 = vadd.f32 %v1950, %v2026
      %v2066 = vadd.f32 %v1951, %v2055
      %v2067 = vadd.f32 %v1952, %v2029
      %v2068 = vadd.f32 %v1953, %v2058
      %v2069 = vadd.f32 %v1954, %v2032
      %v2070 = vadd.f32 %v1955, %v2061
      %2071 = vrot.lane.b32.xlu0 %v1306, 112
      %v2072 = vpop.permute.xlu0 %2071
      %2073 = vrot.lane.b32.xlu0 %v1308, 112
      %v2074 = vpop.permute.xlu0 %2073
      %2075 = vrot.lane.b32.xlu0 %v1310, 112
      %v2076 = vpop.permute.xlu0 %2075
      %2077 = vrot.lane.b32.xlu0 %v1312, 112
      %v2078 = vpop.permute.xlu0 %2077
      %2079 = vrot.lane.b32.xlu0 %v1307, 112
      %v2080 = vpop.permute.xlu0 %2079
      %2081 = vrot.lane.b32.xlu0 %v1309, 112
      %v2082 = vpop.permute.xlu0 %2081
      %2083 = vrot.lane.b32.xlu0 %v1311, 112
      %v2084 = vpop.permute.xlu0 %2083
      %2085 = vrot.lane.b32.xlu0 %v1313, 112
      %v2086 = vpop.permute.xlu0 %2085
      %v2087 = vsel %vm1044, %v2072, %v2080
      %v2088 = vsel %vm1044, %v2074, %v2082
      %v2089 = vsel %vm1044, %v2076, %v2084
      %v2090 = vsel %vm1044, %v2078, %v2086
      %v2091 = vsel %vm1044, %v2080, %v2072
      %v2092 = vsel %vm1044, %v2082, %v2074
      %v2093 = vsel %vm1044, %v2084, %v2076
      %v2094 = vsel %vm1044, %v2086, %v2078
      %v2095 = vmul.f32 %v2087, %v1056
      %v2096 = vmul.f32 %v2091, %v1057
      %v2097 = vmul.f32 %v2088, %v1056
      %v2098 = vmul.f32 %v2092, %v1057
      %v2099 = vmul.f32 %v2089, %v1056
      %v2100 = vmul.f32 %v2093, %v1057
      %v2101 = vmul.f32 %v2090, %v1056
      %v2102 = vmul.f32 %v2094, %v1057
      %s2103 = scalar_lea.vmem %s1, 512
      %v2104 = vld [vmem:[%s2103] sm:$0xff]
      %v2105 = vld [vmem:[%s2103 + $0x8] sm:$0xff]
      %v2106 = vld [vmem:[%s2103 + $0x10] sm:$0xff]
      %v2107 = vld [vmem:[%s2103 + $0x18] sm:$0xff]
      %v2109 = vsel %vm272, %v2104, 0
      %v2112 = vsel %vm272, %v2105, 0
      %v2115 = vsel %vm272, %v2106, 0
      %v2118 = vsel %vm272, %v2107, 0
      %2120 = vmatpush.msra.mxu0 0.0
      %2121 = vmatpush.msra.mxu0 0.0
      %2122 = vmatpush.msra.mxu0 0.0
      %2123 = vmatpush.msra.mxu0 0.0
      %2124 = vmatpush.msra.mxu0 0.0
      %2125 = vmatpush.msra.mxu0 0.0
      %2126 = vmatpush.msra.mxu0 0.0
      %2127 = vmatpush.msra.mxu0 0.0
      %2128 = vmatpush.msra.mxu0 0.0
      %2129 = vmatpush.msra.mxu0 0.0
      %2130 = vmatpush.msra.mxu0 0.0
      %2131 = vmatpush.msra.mxu0 0.0
      %2132 = vmatpush.msra.mxu0 %v2101
      %2133 = vmatpush.msra.mxu0 %v2099
      %2134 = vmatpush.msra.mxu0 %v2097
      %2135 = vmatpush.msra.mxu0 %v2095
      %2136 = vmatmul.f32.gmra.mxu0 %v2109
      %v2137 = vpop.f32.mrf.mxu0
      %v2138 = vadd.f32 0.0, %v2137
      %2139 = vmatmul.f32.gmra.mxu0 %v2112
      %v2140 = vpop.f32.mrf.mxu0
      %v2141 = vadd.f32 0.0, %v2140
      %2142 = vmatmul.f32.gmra.mxu0 %v2115
      %v2143 = vpop.f32.mrf.mxu0
      %v2144 = vadd.f32 0.0, %v2143
      %2145 = vmatmul.f32.gmra.mxu0 %v2118
      %v2146 = vpop.f32.mrf.mxu0
      %v2147 = vadd.f32 0.0, %v2146
      %2148 = vdwg.mxu0
      %2149 = vmatpush.msra.mxu0 0.0
      %2150 = vmatpush.msra.mxu0 0.0
      %2151 = vmatpush.msra.mxu0 0.0
      %2152 = vmatpush.msra.mxu0 0.0
      %2153 = vmatpush.msra.mxu0 0.0
      %2154 = vmatpush.msra.mxu0 0.0
      %2155 = vmatpush.msra.mxu0 0.0
      %2156 = vmatpush.msra.mxu0 0.0
      %2157 = vmatpush.msra.mxu0 0.0
      %2158 = vmatpush.msra.mxu0 0.0
      %2159 = vmatpush.msra.mxu0 0.0
      %2160 = vmatpush.msra.mxu0 0.0
      %2161 = vmatpush.msra.mxu0 %v2102
      %2162 = vmatpush.msra.mxu0 %v2100
      %2163 = vmatpush.msra.mxu0 %v2098
      %2164 = vmatpush.msra.mxu0 %v2096
      %2165 = vmatmul.f32.gmra.mxu0 %v2109
      %v2166 = vpop.f32.mrf.mxu0
      %v2167 = vadd.f32 0.0, %v2166
      %2168 = vmatmul.f32.gmra.mxu0 %v2112
      %v2169 = vpop.f32.mrf.mxu0
      %v2170 = vadd.f32 0.0, %v2169
      %2171 = vmatmul.f32.gmra.mxu0 %v2115
      %v2172 = vpop.f32.mrf.mxu0
      %v2173 = vadd.f32 0.0, %v2172
      %2174 = vmatmul.f32.gmra.mxu0 %v2118
      %v2175 = vpop.f32.mrf.mxu0
      %v2176 = vadd.f32 0.0, %v2175
      %2177 = vdwg.mxu0
      %v2178 = vadd.f32 %v2063, %v2138
      %v2179 = vadd.f32 %v2064, %v2167
      %v2180 = vadd.f32 %v2065, %v2141
      %v2181 = vadd.f32 %v2066, %v2170
      %v2182 = vadd.f32 %v2067, %v2144
      %v2183 = vadd.f32 %v2068, %v2173
      %v2184 = vadd.f32 %v2069, %v2147
      %v2185 = vadd.f32 %v2070, %v2176
      %2186 = vrot.lane.b32.xlu0 %v1306, 111
      %v2187 = vpop.permute.xlu0 %2186
      %2188 = vrot.lane.b32.xlu0 %v1308, 111
      %v2189 = vpop.permute.xlu0 %2188
      %2190 = vrot.lane.b32.xlu0 %v1310, 111
      %v2191 = vpop.permute.xlu0 %2190
      %2192 = vrot.lane.b32.xlu0 %v1312, 111
      %v2193 = vpop.permute.xlu0 %2192
      %2194 = vrot.lane.b32.xlu0 %v1307, 111
      %v2195 = vpop.permute.xlu0 %2194
      %2196 = vrot.lane.b32.xlu0 %v1309, 111
      %v2197 = vpop.permute.xlu0 %2196
      %2198 = vrot.lane.b32.xlu0 %v1311, 111
      %v2199 = vpop.permute.xlu0 %2198
      %2200 = vrot.lane.b32.xlu0 %v1313, 111
      %v2201 = vpop.permute.xlu0 %2200
      %v2202 = vsel %vm1167, %v2187, %v2195
      %v2203 = vsel %vm1167, %v2189, %v2197
      %v2204 = vsel %vm1167, %v2191, %v2199
      %v2205 = vsel %vm1167, %v2193, %v2201
      %v2206 = vsel %vm1167, %v2195, %v2187
      %v2207 = vsel %vm1167, %v2197, %v2189
      %v2208 = vsel %vm1167, %v2199, %v2191
      %v2209 = vsel %vm1167, %v2201, %v2193
      %v2210 = vmul.f32 %v2202, %v1179
      %v2211 = vmul.f32 %v2206, %v1180
      %v2212 = vmul.f32 %v2203, %v1179
      %v2213 = vmul.f32 %v2207, %v1180
      %v2214 = vmul.f32 %v2204, %v1179
      %v2215 = vmul.f32 %v2208, %v1180
      %v2216 = vmul.f32 %v2205, %v1179
      %v2217 = vmul.f32 %v2209, %v1180
      %s2218 = scalar_lea.vmem %s1, 544
      %v2219 = vld [vmem:[%s2218] sm:$0xff]
      %v2220 = vld [vmem:[%s2218 + $0x8] sm:$0xff]
      %v2221 = vld [vmem:[%s2218 + $0x10] sm:$0xff]
      %v2222 = vld [vmem:[%s2218 + $0x18] sm:$0xff]
      %v2224 = vsel %vm272, %v2219, 0
      %v2227 = vsel %vm272, %v2220, 0
      %v2230 = vsel %vm272, %v2221, 0
      %v2233 = vsel %vm272, %v2222, 0
      %2235 = vmatpush.msra.mxu0 0.0
      %2236 = vmatpush.msra.mxu0 0.0
      %2237 = vmatpush.msra.mxu0 0.0
      %2238 = vmatpush.msra.mxu0 0.0
      %2239 = vmatpush.msra.mxu0 0.0
      %2240 = vmatpush.msra.mxu0 0.0
      %2241 = vmatpush.msra.mxu0 0.0
      %2242 = vmatpush.msra.mxu0 0.0
      %2243 = vmatpush.msra.mxu0 0.0
      %2244 = vmatpush.msra.mxu0 0.0
      %2245 = vmatpush.msra.mxu0 0.0
      %2246 = vmatpush.msra.mxu0 0.0
      %2247 = vmatpush.msra.mxu0 %v2216
      %2248 = vmatpush.msra.mxu0 %v2214
      %2249 = vmatpush.msra.mxu0 %v2212
      %2250 = vmatpush.msra.mxu0 %v2210
      %2251 = vmatmul.f32.gmra.mxu0 %v2224
      %v2252 = vpop.f32.mrf.mxu0
      %v2253 = vadd.f32 0.0, %v2252
      %2254 = vmatmul.f32.gmra.mxu0 %v2227
      %v2255 = vpop.f32.mrf.mxu0
      %v2256 = vadd.f32 0.0, %v2255
      %2257 = vmatmul.f32.gmra.mxu0 %v2230
      %v2258 = vpop.f32.mrf.mxu0
      %v2259 = vadd.f32 0.0, %v2258
      %2260 = vmatmul.f32.gmra.mxu0 %v2233
      %v2261 = vpop.f32.mrf.mxu0
      %v2262 = vadd.f32 0.0, %v2261
      %2263 = vdwg.mxu0
      %2264 = vmatpush.msra.mxu0 0.0
      %2265 = vmatpush.msra.mxu0 0.0
      %2266 = vmatpush.msra.mxu0 0.0
      %2267 = vmatpush.msra.mxu0 0.0
      %2268 = vmatpush.msra.mxu0 0.0
      %2269 = vmatpush.msra.mxu0 0.0
      %2270 = vmatpush.msra.mxu0 0.0
      %2271 = vmatpush.msra.mxu0 0.0
      %2272 = vmatpush.msra.mxu0 0.0
      %2273 = vmatpush.msra.mxu0 0.0
      %2274 = vmatpush.msra.mxu0 0.0
      %2275 = vmatpush.msra.mxu0 0.0
      %2276 = vmatpush.msra.mxu0 %v2217
      %2277 = vmatpush.msra.mxu0 %v2215
      %2278 = vmatpush.msra.mxu0 %v2213
      %2279 = vmatpush.msra.mxu0 %v2211
      %2280 = vmatmul.f32.gmra.mxu0 %v2224
      %v2281 = vpop.f32.mrf.mxu0
      %v2282 = vadd.f32 0.0, %v2281
      %2283 = vmatmul.f32.gmra.mxu0 %v2227
      %v2284 = vpop.f32.mrf.mxu0
      %v2285 = vadd.f32 0.0, %v2284
      %2286 = vmatmul.f32.gmra.mxu0 %v2230
      %v2287 = vpop.f32.mrf.mxu0
      %v2288 = vadd.f32 0.0, %v2287
      %2289 = vmatmul.f32.gmra.mxu0 %v2233
      %v2290 = vpop.f32.mrf.mxu0
      %v2291 = vadd.f32 0.0, %v2290
      %2292 = vdwg.mxu0
      %v2293 = vadd.f32 %v2178, %v2253
      %v2294 = vadd.f32 %v2179, %v2282
      %v2295 = vadd.f32 %v2180, %v2256
      %v2296 = vadd.f32 %v2181, %v2285
      %v2297 = vadd.f32 %v2182, %v2259
      %v2298 = vadd.f32 %v2183, %v2288
      %v2299 = vadd.f32 %v2184, %v2262
      %v2300 = vadd.f32 %v2185, %v2291
      %v2301 = vld [vmem:[#allocation2] sm:$0xff]
      %v2302 = vld [vmem:[#allocation2 + $0x8] sm:$0xff]
      %v2303 = vld [vmem:[#allocation2 + $0x10] sm:$0xff]
      %v2304 = vld [vmem:[#allocation2 + $0x18] sm:$0xff]
      %v2305 = vld [vmem:[#allocation2 + $0x20] sm:$0xff]
      %v2306 = vld [vmem:[#allocation2 + $0x28] sm:$0xff]
      %v2307 = vld [vmem:[#allocation2 + $0x30] sm:$0xff]
      %v2308 = vld [vmem:[#allocation2 + $0x38] sm:$0xff]
      %v2309 = vadd.f32 %v2293, %v2301
      %v2310 = vadd.f32 %v2294, %v2302
      %v2311 = vadd.f32 %v2295, %v2303
      %v2312 = vadd.f32 %v2296, %v2304
      %v2313 = vadd.f32 %v2297, %v2305
      %v2314 = vadd.f32 %v2298, %v2306
      %v2315 = vadd.f32 %v2299, %v2307
      %v2316 = vadd.f32 %v2300, %v2308
      %2317 = vst [vmem:[#allocation2] sm:$0xff] %v2309
      %2318 = vst [vmem:[#allocation2 + $0x8] sm:$0xff] %v2310
      %2319 = vst [vmem:[#allocation2 + $0x10] sm:$0xff] %v2311
      %2320 = vst [vmem:[#allocation2 + $0x18] sm:$0xff] %v2312
      %2321 = vst [vmem:[#allocation2 + $0x20] sm:$0xff] %v2313
      %2322 = vst [vmem:[#allocation2 + $0x28] sm:$0xff] %v2314
      %2323 = vst [vmem:[#allocation2 + $0x30] sm:$0xff] %v2315
      %2324 = vst [vmem:[#allocation2 + $0x38] sm:$0xff] %v2316
      %v2325 = vmax.f32 %v2309, 0.0
      %v2326 = vmax.f32 %v2310, 0.0
      %v2327 = vmax.f32 %v2311, 0.0
      %v2328 = vmax.f32 %v2312, 0.0
      %v2329 = vmax.f32 %v2313, 0.0
      %v2330 = vmax.f32 %v2314, 0.0
      %v2331 = vmax.f32 %v2315, 0.0
      %v2332 = vmax.f32 %v2316, 0.0
      %s2333 = scalar_lea.vmem %s1, 704
      %v2334 = vld [vmem:[%s2333] sm:$0xff]
      %v2335 = vld [vmem:[%s2333 + $0x8] sm:$0xff]
      %v2336 = vld [vmem:[%s2333 + $0x10] sm:$0xff]
      %v2337 = vld [vmem:[%s2333 + $0x18] sm:$0xff]
      %2338 = vrot.lane.b32.xlu0 %v2325, 17
      %v2339 = vpop.permute.xlu0 %2338
      %2340 = vrot.lane.b32.xlu0 %v2327, 17
      %v2341 = vpop.permute.xlu0 %2340
      %2342 = vrot.lane.b32.xlu0 %v2329, 17
      %v2343 = vpop.permute.xlu0 %2342
      %2344 = vrot.lane.b32.xlu0 %v2331, 17
      %v2345 = vpop.permute.xlu0 %2344
      %2346 = vrot.lane.b32.xlu0 %v2326, 17
      %v2347 = vpop.permute.xlu0 %2346
      %2348 = vrot.lane.b32.xlu0 %v2328, 17
      %v2349 = vpop.permute.xlu0 %2348
      %2350 = vrot.lane.b32.xlu0 %v2330, 17
      %v2351 = vpop.permute.xlu0 %2350
      %2352 = vrot.lane.b32.xlu0 %v2332, 17
      %v2353 = vpop.permute.xlu0 %2352
      %v2354 = vsel %vm245, %v2339, %v2347
      %v2355 = vsel %vm245, %v2341, %v2349
      %v2356 = vsel %vm245, %v2343, %v2351
      %v2357 = vsel %vm245, %v2345, %v2353
      %v2358 = vsel %vm245, %v2347, %v2339
      %v2359 = vsel %vm245, %v2349, %v2341
      %v2360 = vsel %vm245, %v2351, %v2343
      %v2361 = vsel %vm245, %v2353, %v2345
      %v2362 = vld [vmem:[%s3] sm:$0x3]
      %v2364 = vperm.slane %v2362, 0
      %v2365 = vperm.slane %v2362, 1
      %v2368 = vmul.f32 %v2358, %v2364
      %v2369 = vmul.f32 %v2354, %v2365
      %v2370 = vmul.f32 %v2359, %v2364
      %v2371 = vmul.f32 %v2355, %v2365
      %v2372 = vmul.f32 %v2360, %v2364
      %v2373 = vmul.f32 %v2356, %v2365
      %v2374 = vmul.f32 %v2361, %v2364
      %v2375 = vmul.f32 %v2357, %v2365
      %s2376 = scalar_lea.vmem %s1, 576
      %v2377 = vld [vmem:[%s2376] sm:$0xff]
      %v2378 = vld [vmem:[%s2376 + $0x8] sm:$0xff]
      %v2379 = vld [vmem:[%s2376 + $0x10] sm:$0xff]
      %v2380 = vld [vmem:[%s2376 + $0x18] sm:$0xff]
      %v2382 = vsel %vm272, %v2377, 0
      %v2385 = vsel %vm272, %v2378, 0
      %v2388 = vsel %vm272, %v2379, 0
      %v2391 = vsel %vm272, %v2380, 0
      %2393 = vmatpush.msra.mxu0 0.0
      %2394 = vmatpush.msra.mxu0 0.0
      %2395 = vmatpush.msra.mxu0 0.0
      %2396 = vmatpush.msra.mxu0 0.0
      %2397 = vmatpush.msra.mxu0 0.0
      %2398 = vmatpush.msra.mxu0 0.0
      %2399 = vmatpush.msra.mxu0 0.0
      %2400 = vmatpush.msra.mxu0 0.0
      %2401 = vmatpush.msra.mxu0 0.0
      %2402 = vmatpush.msra.mxu0 0.0
      %2403 = vmatpush.msra.mxu0 0.0
      %2404 = vmatpush.msra.mxu0 0.0
      %2405 = vmatpush.msra.mxu0 %v2374
      %2406 = vmatpush.msra.mxu0 %v2372
      %2407 = vmatpush.msra.mxu0 %v2370
      %2408 = vmatpush.msra.mxu0 %v2368
      %2409 = vmatmul.f32.gmra.mxu0 %v2382
      %v2410 = vpop.f32.mrf.mxu0
      %v2411 = vadd.f32 0.0, %v2410
      %2412 = vmatmul.f32.gmra.mxu0 %v2385
      %v2413 = vpop.f32.mrf.mxu0
      %v2414 = vadd.f32 0.0, %v2413
      %2415 = vmatmul.f32.gmra.mxu0 %v2388
      %v2416 = vpop.f32.mrf.mxu0
      %v2417 = vadd.f32 0.0, %v2416
      %2418 = vmatmul.f32.gmra.mxu0 %v2391
      %v2419 = vpop.f32.mrf.mxu0
      %v2420 = vadd.f32 0.0, %v2419
      %2421 = vdwg.mxu0
      %2422 = vmatpush.msra.mxu0 0.0
      %2423 = vmatpush.msra.mxu0 0.0
      %2424 = vmatpush.msra.mxu0 0.0
      %2425 = vmatpush.msra.mxu0 0.0
      %2426 = vmatpush.msra.mxu0 0.0
      %2427 = vmatpush.msra.mxu0 0.0
      %2428 = vmatpush.msra.mxu0 0.0
      %2429 = vmatpush.msra.mxu0 0.0
      %2430 = vmatpush.msra.mxu0 0.0
      %2431 = vmatpush.msra.mxu0 0.0
      %2432 = vmatpush.msra.mxu0 0.0
      %2433 = vmatpush.msra.mxu0 0.0
      %2434 = vmatpush.msra.mxu0 %v2375
      %2435 = vmatpush.msra.mxu0 %v2373
      %2436 = vmatpush.msra.mxu0 %v2371
      %2437 = vmatpush.msra.mxu0 %v2369
      %2438 = vmatmul.f32.gmra.mxu0 %v2382
      %v2439 = vpop.f32.mrf.mxu0
      %v2440 = vadd.f32 0.0, %v2439
      %2441 = vmatmul.f32.gmra.mxu0 %v2385
      %v2442 = vpop.f32.mrf.mxu0
      %v2443 = vadd.f32 0.0, %v2442
      %2444 = vmatmul.f32.gmra.mxu0 %v2388
      %v2445 = vpop.f32.mrf.mxu0
      %v2446 = vadd.f32 0.0, %v2445
      %2447 = vmatmul.f32.gmra.mxu0 %v2391
      %v2448 = vpop.f32.mrf.mxu0
      %v2449 = vadd.f32 0.0, %v2448
      %2450 = vdwg.mxu0
      %v2452 = vsel %vm272, %v2334, 0
      %v2455 = vsel %vm272, %v2335, 0
      %v2458 = vsel %vm272, %v2336, 0
      %v2461 = vsel %vm272, %v2337, 0
      %2463 = vmatpush.msra.mxu0 0.0
      %2464 = vmatpush.msra.mxu0 0.0
      %2465 = vmatpush.msra.mxu0 0.0
      %2466 = vmatpush.msra.mxu0 0.0
      %2467 = vmatpush.msra.mxu0 0.0
      %2468 = vmatpush.msra.mxu0 0.0
      %2469 = vmatpush.msra.mxu0 0.0
      %2470 = vmatpush.msra.mxu0 0.0
      %2471 = vmatpush.msra.mxu0 0.0
      %2472 = vmatpush.msra.mxu0 0.0
      %2473 = vmatpush.msra.mxu0 0.0
      %2474 = vmatpush.msra.mxu0 0.0
      %2475 = vmatpush.msra.mxu0 %v2331
      %2476 = vmatpush.msra.mxu0 %v2329
      %2477 = vmatpush.msra.mxu0 %v2327
      %2478 = vmatpush.msra.mxu0 %v2325
      %2479 = vmatmul.f32.gmra.mxu0 %v2452
      %v2480 = vpop.f32.mrf.mxu0
      %v2481 = vadd.f32 %v2411, %v2480
      %2482 = vmatmul.f32.gmra.mxu0 %v2455
      %v2483 = vpop.f32.mrf.mxu0
      %v2484 = vadd.f32 %v2414, %v2483
      %2485 = vmatmul.f32.gmra.mxu0 %v2458
      %v2486 = vpop.f32.mrf.mxu0
      %v2487 = vadd.f32 %v2417, %v2486
      %2488 = vmatmul.f32.gmra.mxu0 %v2461
      %v2489 = vpop.f32.mrf.mxu0
      %v2490 = vadd.f32 %v2420, %v2489
      %2491 = vdwg.mxu0
      %2492 = vmatpush.msra.mxu0 0.0
      %2493 = vmatpush.msra.mxu0 0.0
      %2494 = vmatpush.msra.mxu0 0.0
      %2495 = vmatpush.msra.mxu0 0.0
      %2496 = vmatpush.msra.mxu0 0.0
      %2497 = vmatpush.msra.mxu0 0.0
      %2498 = vmatpush.msra.mxu0 0.0
      %2499 = vmatpush.msra.mxu0 0.0
      %2500 = vmatpush.msra.mxu0 0.0
      %2501 = vmatpush.msra.mxu0 0.0
      %2502 = vmatpush.msra.mxu0 0.0
      %2503 = vmatpush.msra.mxu0 0.0
      %2504 = vmatpush.msra.mxu0 %v2332
      %2505 = vmatpush.msra.mxu0 %v2330
      %2506 = vmatpush.msra.mxu0 %v2328
      %2507 = vmatpush.msra.mxu0 %v2326
      %2508 = vmatmul.f32.gmra.mxu0 %v2452
      %v2509 = vpop.f32.mrf.mxu0
      %v2510 = vadd.f32 %v2440, %v2509
      %2511 = vmatmul.f32.gmra.mxu0 %v2455
      %v2512 = vpop.f32.mrf.mxu0
      %v2513 = vadd.f32 %v2443, %v2512
      %2514 = vmatmul.f32.gmra.mxu0 %v2458
      %v2515 = vpop.f32.mrf.mxu0
      %v2516 = vadd.f32 %v2446, %v2515
      %2517 = vmatmul.f32.gmra.mxu0 %v2461
      %v2518 = vpop.f32.mrf.mxu0
      %v2519 = vadd.f32 %v2449, %v2518
      %2520 = vdwg.mxu0
      %2521 = vrot.lane.b32.xlu0 %v2325, 16
      %v2522 = vpop.permute.xlu0 %2521
      %2523 = vrot.lane.b32.xlu0 %v2327, 16
      %v2524 = vpop.permute.xlu0 %2523
      %2525 = vrot.lane.b32.xlu0 %v2329, 16
      %v2526 = vpop.permute.xlu0 %2525
      %2527 = vrot.lane.b32.xlu0 %v2331, 16
      %v2528 = vpop.permute.xlu0 %2527
      %2529 = vrot.lane.b32.xlu0 %v2326, 16
      %v2530 = vpop.permute.xlu0 %2529
      %2531 = vrot.lane.b32.xlu0 %v2328, 16
      %v2532 = vpop.permute.xlu0 %2531
      %2533 = vrot.lane.b32.xlu0 %v2330, 16
      %v2534 = vpop.permute.xlu0 %2533
      %2535 = vrot.lane.b32.xlu0 %v2332, 16
      %v2536 = vpop.permute.xlu0 %2535
      %v2537 = vsel %vm429, %v2522, %v2530
      %v2538 = vsel %vm429, %v2524, %v2532
      %v2539 = vsel %vm429, %v2526, %v2534
      %v2540 = vsel %vm429, %v2528, %v2536
      %v2541 = vsel %vm429, %v2530, %v2522
      %v2542 = vsel %vm429, %v2532, %v2524
      %v2543 = vsel %vm429, %v2534, %v2526
      %v2544 = vsel %vm429, %v2536, %v2528
      %v2545 = vld [vmem:[%s438] sm:$0x3]
      %v2547 = vperm.slane %v2545, 0
      %v2548 = vperm.slane %v2545, 1
      %v2551 = vmul.f32 %v2541, %v2547
      %v2552 = vmul.f32 %v2537, %v2548
      %v2553 = vmul.f32 %v2542, %v2547
      %v2554 = vmul.f32 %v2538, %v2548
      %v2555 = vmul.f32 %v2543, %v2547
      %v2556 = vmul.f32 %v2539, %v2548
      %v2557 = vmul.f32 %v2544, %v2547
      %v2558 = vmul.f32 %v2540, %v2548
      %s2559 = scalar_lea.vmem %s1, 608
      %v2560 = vld [vmem:[%s2559] sm:$0xff]
      %v2561 = vld [vmem:[%s2559 + $0x8] sm:$0xff]
      %v2562 = vld [vmem:[%s2559 + $0x10] sm:$0xff]
      %v2563 = vld [vmem:[%s2559 + $0x18] sm:$0xff]
      %v2565 = vsel %vm272, %v2560, 0
      %v2568 = vsel %vm272, %v2561, 0
      %v2571 = vsel %vm272, %v2562, 0
      %v2574 = vsel %vm272, %v2563, 0
      %2576 = vmatpush.msra.mxu0 0.0
      %2577 = vmatpush.msra.mxu0 0.0
      %2578 = vmatpush.msra.mxu0 0.0
      %2579 = vmatpush.msra.mxu0 0.0
      %2580 = vmatpush.msra.mxu0 0.0
      %2581 = vmatpush.msra.mxu0 0.0
      %2582 = vmatpush.msra.mxu0 0.0
      %2583 = vmatpush.msra.mxu0 0.0
      %2584 = vmatpush.msra.mxu0 0.0
      %2585 = vmatpush.msra.mxu0 0.0
      %2586 = vmatpush.msra.mxu0 0.0
      %2587 = vmatpush.msra.mxu0 0.0
      %2588 = vmatpush.msra.mxu0 %v2557
      %2589 = vmatpush.msra.mxu0 %v2555
      %2590 = vmatpush.msra.mxu0 %v2553
      %2591 = vmatpush.msra.mxu0 %v2551
      %2592 = vmatmul.f32.gmra.mxu0 %v2565
      %v2593 = vpop.f32.mrf.mxu0
      %v2594 = vadd.f32 0.0, %v2593
      %2595 = vmatmul.f32.gmra.mxu0 %v2568
      %v2596 = vpop.f32.mrf.mxu0
      %v2597 = vadd.f32 0.0, %v2596
      %2598 = vmatmul.f32.gmra.mxu0 %v2571
      %v2599 = vpop.f32.mrf.mxu0
      %v2600 = vadd.f32 0.0, %v2599
      %2601 = vmatmul.f32.gmra.mxu0 %v2574
      %v2602 = vpop.f32.mrf.mxu0
      %v2603 = vadd.f32 0.0, %v2602
      %2604 = vdwg.mxu0
      %2605 = vmatpush.msra.mxu0 0.0
      %2606 = vmatpush.msra.mxu0 0.0
      %2607 = vmatpush.msra.mxu0 0.0
      %2608 = vmatpush.msra.mxu0 0.0
      %2609 = vmatpush.msra.mxu0 0.0
      %2610 = vmatpush.msra.mxu0 0.0
      %2611 = vmatpush.msra.mxu0 0.0
      %2612 = vmatpush.msra.mxu0 0.0
      %2613 = vmatpush.msra.mxu0 0.0
      %2614 = vmatpush.msra.mxu0 0.0
      %2615 = vmatpush.msra.mxu0 0.0
      %2616 = vmatpush.msra.mxu0 0.0
      %2617 = vmatpush.msra.mxu0 %v2558
      %2618 = vmatpush.msra.mxu0 %v2556
      %2619 = vmatpush.msra.mxu0 %v2554
      %2620 = vmatpush.msra.mxu0 %v2552
      %2621 = vmatmul.f32.gmra.mxu0 %v2565
      %v2622 = vpop.f32.mrf.mxu0
      %v2623 = vadd.f32 0.0, %v2622
      %2624 = vmatmul.f32.gmra.mxu0 %v2568
      %v2625 = vpop.f32.mrf.mxu0
      %v2626 = vadd.f32 0.0, %v2625
      %2627 = vmatmul.f32.gmra.mxu0 %v2571
      %v2628 = vpop.f32.mrf.mxu0
      %v2629 = vadd.f32 0.0, %v2628
      %2630 = vmatmul.f32.gmra.mxu0 %v2574
      %v2631 = vpop.f32.mrf.mxu0
      %v2632 = vadd.f32 0.0, %v2631
      %2633 = vdwg.mxu0
      %v2634 = vadd.f32 %v2481, %v2594
      %v2635 = vadd.f32 %v2510, %v2623
      %v2636 = vadd.f32 %v2484, %v2597
      %v2637 = vadd.f32 %v2513, %v2626
      %v2638 = vadd.f32 %v2487, %v2600
      %v2639 = vadd.f32 %v2516, %v2629
      %v2640 = vadd.f32 %v2490, %v2603
      %v2641 = vadd.f32 %v2519, %v2632
      %2642 = vrot.lane.b32.xlu0 %v2325, 15
      %v2643 = vpop.permute.xlu0 %2642
      %2644 = vrot.lane.b32.xlu0 %v2327, 15
      %v2645 = vpop.permute.xlu0 %2644
      %2646 = vrot.lane.b32.xlu0 %v2329, 15
      %v2647 = vpop.permute.xlu0 %2646
      %2648 = vrot.lane.b32.xlu0 %v2331, 15
      %v2649 = vpop.permute.xlu0 %2648
      %2650 = vrot.lane.b32.xlu0 %v2326, 15
      %v2651 = vpop.permute.xlu0 %2650
      %2652 = vrot.lane.b32.xlu0 %v2328, 15
      %v2653 = vpop.permute.xlu0 %2652
      %2654 = vrot.lane.b32.xlu0 %v2330, 15
      %v2655 = vpop.permute.xlu0 %2654
      %2656 = vrot.lane.b32.xlu0 %v2332, 15
      %v2657 = vpop.permute.xlu0 %2656
      %v2658 = vsel %vm552, %v2643, %v2651
      %v2659 = vsel %vm552, %v2645, %v2653
      %v2660 = vsel %vm552, %v2647, %v2655
      %v2661 = vsel %vm552, %v2649, %v2657
      %v2662 = vsel %vm552, %v2651, %v2643
      %v2663 = vsel %vm552, %v2653, %v2645
      %v2664 = vsel %vm552, %v2655, %v2647
      %v2665 = vsel %vm552, %v2657, %v2649
      %v2666 = vld [vmem:[%s561] sm:$0x3]
      %v2668 = vperm.slane %v2666, 0
      %v2669 = vperm.slane %v2666, 1
      %v2672 = vmul.f32 %v2662, %v2668
      %v2673 = vmul.f32 %v2658, %v2669
      %v2674 = vmul.f32 %v2663, %v2668
      %v2675 = vmul.f32 %v2659, %v2669
      %v2676 = vmul.f32 %v2664, %v2668
      %v2677 = vmul.f32 %v2660, %v2669
      %v2678 = vmul.f32 %v2665, %v2668
      %v2679 = vmul.f32 %v2661, %v2669
      %s2680 = scalar_lea.vmem %s1, 640
      %v2681 = vld [vmem:[%s2680] sm:$0xff]
      %v2682 = vld [vmem:[%s2680 + $0x8] sm:$0xff]
      %v2683 = vld [vmem:[%s2680 + $0x10] sm:$0xff]
      %v2684 = vld [vmem:[%s2680 + $0x18] sm:$0xff]
      %v2686 = vsel %vm272, %v2681, 0
      %v2689 = vsel %vm272, %v2682, 0
      %v2692 = vsel %vm272, %v2683, 0
      %v2695 = vsel %vm272, %v2684, 0
      %2697 = vmatpush.msra.mxu0 0.0
      %2698 = vmatpush.msra.mxu0 0.0
      %2699 = vmatpush.msra.mxu0 0.0
      %2700 = vmatpush.msra.mxu0 0.0
      %2701 = vmatpush.msra.mxu0 0.0
      %2702 = vmatpush.msra.mxu0 0.0
      %2703 = vmatpush.msra.mxu0 0.0
      %2704 = vmatpush.msra.mxu0 0.0
      %2705 = vmatpush.msra.mxu0 0.0
      %2706 = vmatpush.msra.mxu0 0.0
      %2707 = vmatpush.msra.mxu0 0.0
      %2708 = vmatpush.msra.mxu0 0.0
      %2709 = vmatpush.msra.mxu0 %v2678
      %2710 = vmatpush.msra.mxu0 %v2676
      %2711 = vmatpush.msra.mxu0 %v2674
      %2712 = vmatpush.msra.mxu0 %v2672
      %2713 = vmatmul.f32.gmra.mxu0 %v2686
      %v2714 = vpop.f32.mrf.mxu0
      %v2715 = vadd.f32 0.0, %v2714
      %2716 = vmatmul.f32.gmra.mxu0 %v2689
      %v2717 = vpop.f32.mrf.mxu0
      %v2718 = vadd.f32 0.0, %v2717
      %2719 = vmatmul.f32.gmra.mxu0 %v2692
      %v2720 = vpop.f32.mrf.mxu0
      %v2721 = vadd.f32 0.0, %v2720
      %2722 = vmatmul.f32.gmra.mxu0 %v2695
      %v2723 = vpop.f32.mrf.mxu0
      %v2724 = vadd.f32 0.0, %v2723
      %2725 = vdwg.mxu0
      %2726 = vmatpush.msra.mxu0 0.0
      %2727 = vmatpush.msra.mxu0 0.0
      %2728 = vmatpush.msra.mxu0 0.0
      %2729 = vmatpush.msra.mxu0 0.0
      %2730 = vmatpush.msra.mxu0 0.0
      %2731 = vmatpush.msra.mxu0 0.0
      %2732 = vmatpush.msra.mxu0 0.0
      %2733 = vmatpush.msra.mxu0 0.0
      %2734 = vmatpush.msra.mxu0 0.0
      %2735 = vmatpush.msra.mxu0 0.0
      %2736 = vmatpush.msra.mxu0 0.0
      %2737 = vmatpush.msra.mxu0 0.0
      %2738 = vmatpush.msra.mxu0 %v2679
      %2739 = vmatpush.msra.mxu0 %v2677
      %2740 = vmatpush.msra.mxu0 %v2675
      %2741 = vmatpush.msra.mxu0 %v2673
      %2742 = vmatmul.f32.gmra.mxu0 %v2686
      %v2743 = vpop.f32.mrf.mxu0
      %v2744 = vadd.f32 0.0, %v2743
      %2745 = vmatmul.f32.gmra.mxu0 %v2689
      %v2746 = vpop.f32.mrf.mxu0
      %v2747 = vadd.f32 0.0, %v2746
      %2748 = vmatmul.f32.gmra.mxu0 %v2692
      %v2749 = vpop.f32.mrf.mxu0
      %v2750 = vadd.f32 0.0, %v2749
      %2751 = vmatmul.f32.gmra.mxu0 %v2695
      %v2752 = vpop.f32.mrf.mxu0
      %v2753 = vadd.f32 0.0, %v2752
      %2754 = vdwg.mxu0
      %v2755 = vadd.f32 %v2634, %v2715
      %v2756 = vadd.f32 %v2635, %v2744
      %v2757 = vadd.f32 %v2636, %v2718
      %v2758 = vadd.f32 %v2637, %v2747
      %v2759 = vadd.f32 %v2638, %v2721
      %v2760 = vadd.f32 %v2639, %v2750
      %v2761 = vadd.f32 %v2640, %v2724
      %v2762 = vadd.f32 %v2641, %v2753
      %2763 = vrot.lane.b32.xlu0 %v2325, 1
      %v2764 = vpop.permute.xlu0 %2763
      %2765 = vrot.lane.b32.xlu0 %v2327, 1
      %v2766 = vpop.permute.xlu0 %2765
      %2767 = vrot.lane.b32.xlu0 %v2329, 1
      %v2768 = vpop.permute.xlu0 %2767
      %2769 = vrot.lane.b32.xlu0 %v2331, 1
      %v2770 = vpop.permute.xlu0 %2769
      %2771 = vrot.lane.b32.xlu0 %v2326, 1
      %v2772 = vpop.permute.xlu0 %2771
      %2773 = vrot.lane.b32.xlu0 %v2328, 1
      %v2774 = vpop.permute.xlu0 %2773
      %2775 = vrot.lane.b32.xlu0 %v2330, 1
      %v2776 = vpop.permute.xlu0 %2775
      %2777 = vrot.lane.b32.xlu0 %v2332, 1
      %v2778 = vpop.permute.xlu0 %2777
      %v2779 = vsel %vm675, %v2764, %v2772
      %v2780 = vsel %vm675, %v2766, %v2774
      %v2781 = vsel %vm675, %v2768, %v2776
      %v2782 = vsel %vm675, %v2770, %v2778
      %v2783 = vsel %vm675, %v2772, %v2764
      %v2784 = vsel %vm675, %v2774, %v2766
      %v2785 = vsel %vm675, %v2776, %v2768
      %v2786 = vsel %vm675, %v2778, %v2770
      %v2787 = vld [vmem:[%s684] sm:$0x3]
      %v2789 = vperm.slane %v2787, 0
      %v2790 = vperm.slane %v2787, 1
      %v2793 = vmul.f32 %v2783, %v2789
      %v2794 = vmul.f32 %v2779, %v2790
      %v2795 = vmul.f32 %v2784, %v2789
      %v2796 = vmul.f32 %v2780, %v2790
      %v2797 = vmul.f32 %v2785, %v2789
      %v2798 = vmul.f32 %v2781, %v2790
      %v2799 = vmul.f32 %v2786, %v2789
      %v2800 = vmul.f32 %v2782, %v2790
      %s2801 = scalar_lea.vmem %s1, 672
      %v2802 = vld [vmem:[%s2801] sm:$0xff]
      %v2803 = vld [vmem:[%s2801 + $0x8] sm:$0xff]
      %v2804 = vld [vmem:[%s2801 + $0x10] sm:$0xff]
      %v2805 = vld [vmem:[%s2801 + $0x18] sm:$0xff]
      %v2807 = vsel %vm272, %v2802, 0
      %v2810 = vsel %vm272, %v2803, 0
      %v2813 = vsel %vm272, %v2804, 0
      %v2816 = vsel %vm272, %v2805, 0
      %2818 = vmatpush.msra.mxu0 0.0
      %2819 = vmatpush.msra.mxu0 0.0
      %2820 = vmatpush.msra.mxu0 0.0
      %2821 = vmatpush.msra.mxu0 0.0
      %2822 = vmatpush.msra.mxu0 0.0
      %2823 = vmatpush.msra.mxu0 0.0
      %2824 = vmatpush.msra.mxu0 0.0
      %2825 = vmatpush.msra.mxu0 0.0
      %2826 = vmatpush.msra.mxu0 0.0
      %2827 = vmatpush.msra.mxu0 0.0
      %2828 = vmatpush.msra.mxu0 0.0
      %2829 = vmatpush.msra.mxu0 0.0
      %2830 = vmatpush.msra.mxu0 %v2799
      %2831 = vmatpush.msra.mxu0 %v2797
      %2832 = vmatpush.msra.mxu0 %v2795
      %2833 = vmatpush.msra.mxu0 %v2793
      %2834 = vmatmul.f32.gmra.mxu0 %v2807
      %v2835 = vpop.f32.mrf.mxu0
      %v2836 = vadd.f32 0.0, %v2835
      %2837 = vmatmul.f32.gmra.mxu0 %v2810
      %v2838 = vpop.f32.mrf.mxu0
      %v2839 = vadd.f32 0.0, %v2838
      %2840 = vmatmul.f32.gmra.mxu0 %v2813
      %v2841 = vpop.f32.mrf.mxu0
      %v2842 = vadd.f32 0.0, %v2841
      %2843 = vmatmul.f32.gmra.mxu0 %v2816
      %v2844 = vpop.f32.mrf.mxu0
      %v2845 = vadd.f32 0.0, %v2844
      %2846 = vdwg.mxu0
      %2847 = vmatpush.msra.mxu0 0.0
      %2848 = vmatpush.msra.mxu0 0.0
      %2849 = vmatpush.msra.mxu0 0.0
      %2850 = vmatpush.msra.mxu0 0.0
      %2851 = vmatpush.msra.mxu0 0.0
      %2852 = vmatpush.msra.mxu0 0.0
      %2853 = vmatpush.msra.mxu0 0.0
      %2854 = vmatpush.msra.mxu0 0.0
      %2855 = vmatpush.msra.mxu0 0.0
      %2856 = vmatpush.msra.mxu0 0.0
      %2857 = vmatpush.msra.mxu0 0.0
      %2858 = vmatpush.msra.mxu0 0.0
      %2859 = vmatpush.msra.mxu0 %v2800
      %2860 = vmatpush.msra.mxu0 %v2798
      %2861 = vmatpush.msra.mxu0 %v2796
      %2862 = vmatpush.msra.mxu0 %v2794
      %2863 = vmatmul.f32.gmra.mxu0 %v2807
      %v2864 = vpop.f32.mrf.mxu0
      %v2865 = vadd.f32 0.0, %v2864
      %2866 = vmatmul.f32.gmra.mxu0 %v2810
      %v2867 = vpop.f32.mrf.mxu0
      %v2868 = vadd.f32 0.0, %v2867
      %2869 = vmatmul.f32.gmra.mxu0 %v2813
      %v2870 = vpop.f32.mrf.mxu0
      %v2871 = vadd.f32 0.0, %v2870
      %2872 = vmatmul.f32.gmra.mxu0 %v2816
      %v2873 = vpop.f32.mrf.mxu0
      %v2874 = vadd.f32 0.0, %v2873
      %2875 = vdwg.mxu0
      %v2876 = vadd.f32 %v2755, %v2836
      %v2877 = vadd.f32 %v2756, %v2865
      %v2878 = vadd.f32 %v2757, %v2839
      %v2879 = vadd.f32 %v2758, %v2868
      %v2880 = vadd.f32 %v2759, %v2842
      %v2881 = vadd.f32 %v2760, %v2871
      %v2882 = vadd.f32 %v2761, %v2845
      %v2883 = vadd.f32 %v2762, %v2874
      %2884 = vrot.lane.b32.xlu0 %v2325, 127
      %v2885 = vpop.permute.xlu0 %2884
      %2886 = vrot.lane.b32.xlu0 %v2327, 127
      %v2887 = vpop.permute.xlu0 %2886
      %2888 = vrot.lane.b32.xlu0 %v2329, 127
      %v2889 = vpop.permute.xlu0 %2888
      %2890 = vrot.lane.b32.xlu0 %v2331, 127
      %v2891 = vpop.permute.xlu0 %2890
      %2892 = vrot.lane.b32.xlu0 %v2326, 127
      %v2893 = vpop.permute.xlu0 %2892
      %2894 = vrot.lane.b32.xlu0 %v2328, 127
      %v2895 = vpop.permute.xlu0 %2894
      %2896 = vrot.lane.b32.xlu0 %v2330, 127
      %v2897 = vpop.permute.xlu0 %2896
      %2898 = vrot.lane.b32.xlu0 %v2332, 127
      %v2899 = vpop.permute.xlu0 %2898
      %v2900 = vsel %vm798, %v2885, %v2893
      %v2901 = vsel %vm798, %v2887, %v2895
      %v2902 = vsel %vm798, %v2889, %v2897
      %v2903 = vsel %vm798, %v2891, %v2899
      %v2904 = vsel %vm798, %v2893, %v2885
      %v2905 = vsel %vm798, %v2895, %v2887
      %v2906 = vsel %vm798, %v2897, %v2889
      %v2907 = vsel %vm798, %v2899, %v2891
      %v2908 = vld [vmem:[%s807] sm:$0x3]
      %v2910 = vperm.slane %v2908, 0
      %v2911 = vperm.slane %v2908, 1
      %v2914 = vmul.f32 %v2900, %v2910
      %v2915 = vmul.f32 %v2904, %v2911
      %v2916 = vmul.f32 %v2901, %v2910
      %v2917 = vmul.f32 %v2905, %v2911
      %v2918 = vmul.f32 %v2902, %v2910
      %v2919 = vmul.f32 %v2906, %v2911
      %v2920 = vmul.f32 %v2903, %v2910
      %v2921 = vmul.f32 %v2907, %v2911
      %s2922 = scalar_lea.vmem %s1, 736
      %v2923 = vld [vmem:[%s2922] sm:$0xff]
      %v2924 = vld [vmem:[%s2922 + $0x8] sm:$0xff]
      %v2925 = vld [vmem:[%s2922 + $0x10] sm:$0xff]
      %v2926 = vld [vmem:[%s2922 + $0x18] sm:$0xff]
      %v2928 = vsel %vm272, %v2923, 0
      %v2931 = vsel %vm272, %v2924, 0
      %v2934 = vsel %vm272, %v2925, 0
      %v2937 = vsel %vm272, %v2926, 0
      %2939 = vmatpush.msra.mxu0 0.0
      %2940 = vmatpush.msra.mxu0 0.0
      %2941 = vmatpush.msra.mxu0 0.0
      %2942 = vmatpush.msra.mxu0 0.0
      %2943 = vmatpush.msra.mxu0 0.0
      %2944 = vmatpush.msra.mxu0 0.0
      %2945 = vmatpush.msra.mxu0 0.0
      %2946 = vmatpush.msra.mxu0 0.0
      %2947 = vmatpush.msra.mxu0 0.0
      %2948 = vmatpush.msra.mxu0 0.0
      %2949 = vmatpush.msra.mxu0 0.0
      %2950 = vmatpush.msra.mxu0 0.0
      %2951 = vmatpush.msra.mxu0 %v2920
      %2952 = vmatpush.msra.mxu0 %v2918
      %2953 = vmatpush.msra.mxu0 %v2916
      %2954 = vmatpush.msra.mxu0 %v2914
      %2955 = vmatmul.f32.gmra.mxu0 %v2928
      %v2956 = vpop.f32.mrf.mxu0
      %v2957 = vadd.f32 0.0, %v2956
      %2958 = vmatmul.f32.gmra.mxu0 %v2931
      %v2959 = vpop.f32.mrf.mxu0
      %v2960 = vadd.f32 0.0, %v2959
      %2961 = vmatmul.f32.gmra.mxu0 %v2934
      %v2962 = vpop.f32.mrf.mxu0
      %v2963 = vadd.f32 0.0, %v2962
      %2964 = vmatmul.f32.gmra.mxu0 %v2937
      %v2965 = vpop.f32.mrf.mxu0
      %v2966 = vadd.f32 0.0, %v2965
      %2967 = vdwg.mxu0
      %2968 = vmatpush.msra.mxu0 0.0
      %2969 = vmatpush.msra.mxu0 0.0
      %2970 = vmatpush.msra.mxu0 0.0
      %2971 = vmatpush.msra.mxu0 0.0
      %2972 = vmatpush.msra.mxu0 0.0
      %2973 = vmatpush.msra.mxu0 0.0
      %2974 = vmatpush.msra.mxu0 0.0
      %2975 = vmatpush.msra.mxu0 0.0
      %2976 = vmatpush.msra.mxu0 0.0
      %2977 = vmatpush.msra.mxu0 0.0
      %2978 = vmatpush.msra.mxu0 0.0
      %2979 = vmatpush.msra.mxu0 0.0
      %2980 = vmatpush.msra.mxu0 %v2921
      %2981 = vmatpush.msra.mxu0 %v2919
      %2982 = vmatpush.msra.mxu0 %v2917
      %2983 = vmatpush.msra.mxu0 %v2915
      %2984 = vmatmul.f32.gmra.mxu0 %v2928
      %v2985 = vpop.f32.mrf.mxu0
      %v2986 = vadd.f32 0.0, %v2985
      %2987 = vmatmul.f32.gmra.mxu0 %v2931
      %v2988 = vpop.f32.mrf.mxu0
      %v2989 = vadd.f32 0.0, %v2988
      %2990 = vmatmul.f32.gmra.mxu0 %v2934
      %v2991 = vpop.f32.mrf.mxu0
      %v2992 = vadd.f32 0.0, %v2991
      %2993 = vmatmul.f32.gmra.mxu0 %v2937
      %v2994 = vpop.f32.mrf.mxu0
      %v2995 = vadd.f32 0.0, %v2994
      %2996 = vdwg.mxu0
      %v2997 = vadd.f32 %v2876, %v2957
      %v2998 = vadd.f32 %v2877, %v2986
      %v2999 = vadd.f32 %v2878, %v2960
      %v3000 = vadd.f32 %v2879, %v2989
      %v3001 = vadd.f32 %v2880, %v2963
      %v3002 = vadd.f32 %v2881, %v2992
      %v3003 = vadd.f32 %v2882, %v2966
      %v3004 = vadd.f32 %v2883, %v2995
      %3005 = vrot.lane.b32.xlu0 %v2325, 113
      %v3006 = vpop.permute.xlu0 %3005
      %3007 = vrot.lane.b32.xlu0 %v2327, 113
      %v3008 = vpop.permute.xlu0 %3007
      %3009 = vrot.lane.b32.xlu0 %v2329, 113
      %v3010 = vpop.permute.xlu0 %3009
      %3011 = vrot.lane.b32.xlu0 %v2331, 113
      %v3012 = vpop.permute.xlu0 %3011
      %3013 = vrot.lane.b32.xlu0 %v2326, 113
      %v3014 = vpop.permute.xlu0 %3013
      %3015 = vrot.lane.b32.xlu0 %v2328, 113
      %v3016 = vpop.permute.xlu0 %3015
      %3017 = vrot.lane.b32.xlu0 %v2330, 113
      %v3018 = vpop.permute.xlu0 %3017
      %3019 = vrot.lane.b32.xlu0 %v2332, 113
      %v3020 = vpop.permute.xlu0 %3019
      %v3021 = vsel %vm921, %v3006, %v3014
      %v3022 = vsel %vm921, %v3008, %v3016
      %v3023 = vsel %vm921, %v3010, %v3018
      %v3024 = vsel %vm921, %v3012, %v3020
      %v3025 = vsel %vm921, %v3014, %v3006
      %v3026 = vsel %vm921, %v3016, %v3008
      %v3027 = vsel %vm921, %v3018, %v3010
      %v3028 = vsel %vm921, %v3020, %v3012
      %v3029 = vld [vmem:[%s930] sm:$0x3]
      %v3031 = vperm.slane %v3029, 0
      %v3032 = vperm.slane %v3029, 1
      %v3035 = vmul.f32 %v3021, %v3031
      %v3036 = vmul.f32 %v3025, %v3032
      %v3037 = vmul.f32 %v3022, %v3031
      %v3038 = vmul.f32 %v3026, %v3032
      %v3039 = vmul.f32 %v3023, %v3031
      %v3040 = vmul.f32 %v3027, %v3032
      %v3041 = vmul.f32 %v3024, %v3031
      %v3042 = vmul.f32 %v3028, %v3032
      %s3043 = scalar_lea.vmem %s1, 768
      %v3044 = vld [vmem:[%s3043] sm:$0xff]
      %v3045 = vld [vmem:[%s3043 + $0x8] sm:$0xff]
      %v3046 = vld [vmem:[%s3043 + $0x10] sm:$0xff]
      %v3047 = vld [vmem:[%s3043 + $0x18] sm:$0xff]
      %v3049 = vsel %vm272, %v3044, 0
      %v3052 = vsel %vm272, %v3045, 0
      %v3055 = vsel %vm272, %v3046, 0
      %v3058 = vsel %vm272, %v3047, 0
      %3060 = vmatpush.msra.mxu0 0.0
      %3061 = vmatpush.msra.mxu0 0.0
      %3062 = vmatpush.msra.mxu0 0.0
      %3063 = vmatpush.msra.mxu0 0.0
      %3064 = vmatpush.msra.mxu0 0.0
      %3065 = vmatpush.msra.mxu0 0.0
      %3066 = vmatpush.msra.mxu0 0.0
      %3067 = vmatpush.msra.mxu0 0.0
      %3068 = vmatpush.msra.mxu0 0.0
      %3069 = vmatpush.msra.mxu0 0.0
      %3070 = vmatpush.msra.mxu0 0.0
      %3071 = vmatpush.msra.mxu0 0.0
      %3072 = vmatpush.msra.mxu0 %v3041
      %3073 = vmatpush.msra.mxu0 %v3039
      %3074 = vmatpush.msra.mxu0 %v3037
      %3075 = vmatpush.msra.mxu0 %v3035
      %3076 = vmatmul.f32.gmra.mxu0 %v3049
      %v3077 = vpop.f32.mrf.mxu0
      %v3078 = vadd.f32 0.0, %v3077
      %3079 = vmatmul.f32.gmra.mxu0 %v3052
      %v3080 = vpop.f32.mrf.mxu0
      %v3081 = vadd.f32 0.0, %v3080
      %3082 = vmatmul.f32.gmra.mxu0 %v3055
      %v3083 = vpop.f32.mrf.mxu0
      %v3084 = vadd.f32 0.0, %v3083
      %3085 = vmatmul.f32.gmra.mxu0 %v3058
      %v3086 = vpop.f32.mrf.mxu0
      %v3087 = vadd.f32 0.0, %v3086
      %3088 = vdwg.mxu0
      %3089 = vmatpush.msra.mxu0 0.0
      %3090 = vmatpush.msra.mxu0 0.0
      %3091 = vmatpush.msra.mxu0 0.0
      %3092 = vmatpush.msra.mxu0 0.0
      %3093 = vmatpush.msra.mxu0 0.0
      %3094 = vmatpush.msra.mxu0 0.0
      %3095 = vmatpush.msra.mxu0 0.0
      %3096 = vmatpush.msra.mxu0 0.0
      %3097 = vmatpush.msra.mxu0 0.0
      %3098 = vmatpush.msra.mxu0 0.0
      %3099 = vmatpush.msra.mxu0 0.0
      %3100 = vmatpush.msra.mxu0 0.0
      %3101 = vmatpush.msra.mxu0 %v3042
      %3102 = vmatpush.msra.mxu0 %v3040
      %3103 = vmatpush.msra.mxu0 %v3038
      %3104 = vmatpush.msra.mxu0 %v3036
      %3105 = vmatmul.f32.gmra.mxu0 %v3049
      %v3106 = vpop.f32.mrf.mxu0
      %v3107 = vadd.f32 0.0, %v3106
      %3108 = vmatmul.f32.gmra.mxu0 %v3052
      %v3109 = vpop.f32.mrf.mxu0
      %v3110 = vadd.f32 0.0, %v3109
      %3111 = vmatmul.f32.gmra.mxu0 %v3055
      %v3112 = vpop.f32.mrf.mxu0
      %v3113 = vadd.f32 0.0, %v3112
      %3114 = vmatmul.f32.gmra.mxu0 %v3058
      %v3115 = vpop.f32.mrf.mxu0
      %v3116 = vadd.f32 0.0, %v3115
      %3117 = vdwg.mxu0
      %v3118 = vadd.f32 %v2997, %v3078
      %v3119 = vadd.f32 %v2998, %v3107
      %v3120 = vadd.f32 %v2999, %v3081
      %v3121 = vadd.f32 %v3000, %v3110
      %v3122 = vadd.f32 %v3001, %v3084
      %v3123 = vadd.f32 %v3002, %v3113
      %v3124 = vadd.f32 %v3003, %v3087
      %v3125 = vadd.f32 %v3004, %v3116
      %3126 = vrot.lane.b32.xlu0 %v2325, 112
      %v3127 = vpop.permute.xlu0 %3126
      %3128 = vrot.lane.b32.xlu0 %v2327, 112
      %v3129 = vpop.permute.xlu0 %3128
      %3130 = vrot.lane.b32.xlu0 %v2329, 112
      %v3131 = vpop.permute.xlu0 %3130
      %3132 = vrot.lane.b32.xlu0 %v2331, 112
      %v3133 = vpop.permute.xlu0 %3132
      %3134 = vrot.lane.b32.xlu0 %v2326, 112
      %v3135 = vpop.permute.xlu0 %3134
      %3136 = vrot.lane.b32.xlu0 %v2328, 112
      %v3137 = vpop.permute.xlu0 %3136
      %3138 = vrot.lane.b32.xlu0 %v2330, 112
      %v3139 = vpop.permute.xlu0 %3138
      %3140 = vrot.lane.b32.xlu0 %v2332, 112
      %v3141 = vpop.permute.xlu0 %3140
      %v3142 = vsel %vm1044, %v3127, %v3135
      %v3143 = vsel %vm1044, %v3129, %v3137
      %v3144 = vsel %vm1044, %v3131, %v3139
      %v3145 = vsel %vm1044, %v3133, %v3141
      %v3146 = vsel %vm1044, %v3135, %v3127
      %v3147 = vsel %vm1044, %v3137, %v3129
      %v3148 = vsel %vm1044, %v3139, %v3131
      %v3149 = vsel %vm1044, %v3141, %v3133
      %v3150 = vld [vmem:[%s1053] sm:$0x3]
      %v3152 = vperm.slane %v3150, 0
      %v3153 = vperm.slane %v3150, 1
      %v3156 = vmul.f32 %v3142, %v3152
      %v3157 = vmul.f32 %v3146, %v3153
      %v3158 = vmul.f32 %v3143, %v3152
      %v3159 = vmul.f32 %v3147, %v3153
      %v3160 = vmul.f32 %v3144, %v3152
      %v3161 = vmul.f32 %v3148, %v3153
      %v3162 = vmul.f32 %v3145, %v3152
      %v3163 = vmul.f32 %v3149, %v3153
      %s3164 = scalar_lea.vmem %s1, 800
      %v3165 = vld [vmem:[%s3164] sm:$0xff]
      %v3166 = vld [vmem:[%s3164 + $0x8] sm:$0xff]
      %v3167 = vld [vmem:[%s3164 + $0x10] sm:$0xff]
      %v3168 = vld [vmem:[%s3164 + $0x18] sm:$0xff]
      %v3170 = vsel %vm272, %v3165, 0
      %v3173 = vsel %vm272, %v3166, 0
      %v3176 = vsel %vm272, %v3167, 0
      %v3179 = vsel %vm272, %v3168, 0
      %3181 = vmatpush.msra.mxu0 0.0
      %3182 = vmatpush.msra.mxu0 0.0
      %3183 = vmatpush.msra.mxu0 0.0
      %3184 = vmatpush.msra.mxu0 0.0
      %3185 = vmatpush.msra.mxu0 0.0
      %3186 = vmatpush.msra.mxu0 0.0
      %3187 = vmatpush.msra.mxu0 0.0
      %3188 = vmatpush.msra.mxu0 0.0
      %3189 = vmatpush.msra.mxu0 0.0
      %3190 = vmatpush.msra.mxu0 0.0
      %3191 = vmatpush.msra.mxu0 0.0
      %3192 = vmatpush.msra.mxu0 0.0
      %3193 = vmatpush.msra.mxu0 %v3162
      %3194 = vmatpush.msra.mxu0 %v3160
      %3195 = vmatpush.msra.mxu0 %v3158
      %3196 = vmatpush.msra.mxu0 %v3156
      %3197 = vmatmul.f32.gmra.mxu0 %v3170
      %v3198 = vpop.f32.mrf.mxu0
      %v3199 = vadd.f32 0.0, %v3198
      %3200 = vmatmul.f32.gmra.mxu0 %v3173
      %v3201 = vpop.f32.mrf.mxu0
      %v3202 = vadd.f32 0.0, %v3201
      %3203 = vmatmul.f32.gmra.mxu0 %v3176
      %v3204 = vpop.f32.mrf.mxu0
      %v3205 = vadd.f32 0.0, %v3204
      %3206 = vmatmul.f32.gmra.mxu0 %v3179
      %v3207 = vpop.f32.mrf.mxu0
      %v3208 = vadd.f32 0.0, %v3207
      %3209 = vdwg.mxu0
      %3210 = vmatpush.msra.mxu0 0.0
      %3211 = vmatpush.msra.mxu0 0.0
      %3212 = vmatpush.msra.mxu0 0.0
      %3213 = vmatpush.msra.mxu0 0.0
      %3214 = vmatpush.msra.mxu0 0.0
      %3215 = vmatpush.msra.mxu0 0.0
      %3216 = vmatpush.msra.mxu0 0.0
      %3217 = vmatpush.msra.mxu0 0.0
      %3218 = vmatpush.msra.mxu0 0.0
      %3219 = vmatpush.msra.mxu0 0.0
      %3220 = vmatpush.msra.mxu0 0.0
      %3221 = vmatpush.msra.mxu0 0.0
      %3222 = vmatpush.msra.mxu0 %v3163
      %3223 = vmatpush.msra.mxu0 %v3161
      %3224 = vmatpush.msra.mxu0 %v3159
      %3225 = vmatpush.msra.mxu0 %v3157
      %3226 = vmatmul.f32.gmra.mxu0 %v3170
      %v3227 = vpop.f32.mrf.mxu0
      %v3228 = vadd.f32 0.0, %v3227
      %3229 = vmatmul.f32.gmra.mxu0 %v3173
      %v3230 = vpop.f32.mrf.mxu0
      %v3231 = vadd.f32 0.0, %v3230
      %3232 = vmatmul.f32.gmra.mxu0 %v3176
      %v3233 = vpop.f32.mrf.mxu0
      %v3234 = vadd.f32 0.0, %v3233
      %3235 = vmatmul.f32.gmra.mxu0 %v3179
      %v3236 = vpop.f32.mrf.mxu0
      %v3237 = vadd.f32 0.0, %v3236
      %3238 = vdwg.mxu0
      %v3239 = vadd.f32 %v3118, %v3199
      %v3240 = vadd.f32 %v3119, %v3228
      %v3241 = vadd.f32 %v3120, %v3202
      %v3242 = vadd.f32 %v3121, %v3231
      %v3243 = vadd.f32 %v3122, %v3205
      %v3244 = vadd.f32 %v3123, %v3234
      %v3245 = vadd.f32 %v3124, %v3208
      %v3246 = vadd.f32 %v3125, %v3237
      %3247 = vrot.lane.b32.xlu0 %v2325, 111
      %v3248 = vpop.permute.xlu0 %3247
      %3249 = vrot.lane.b32.xlu0 %v2327, 111
      %v3250 = vpop.permute.xlu0 %3249
      %3251 = vrot.lane.b32.xlu0 %v2329, 111
      %v3252 = vpop.permute.xlu0 %3251
      %3253 = vrot.lane.b32.xlu0 %v2331, 111
      %v3254 = vpop.permute.xlu0 %3253
      %3255 = vrot.lane.b32.xlu0 %v2326, 111
      %v3256 = vpop.permute.xlu0 %3255
      %3257 = vrot.lane.b32.xlu0 %v2328, 111
      %v3258 = vpop.permute.xlu0 %3257
      %3259 = vrot.lane.b32.xlu0 %v2330, 111
      %v3260 = vpop.permute.xlu0 %3259
      %3261 = vrot.lane.b32.xlu0 %v2332, 111
      %v3262 = vpop.permute.xlu0 %3261
      %v3263 = vsel %vm1167, %v3248, %v3256
      %v3264 = vsel %vm1167, %v3250, %v3258
      %v3265 = vsel %vm1167, %v3252, %v3260
      %v3266 = vsel %vm1167, %v3254, %v3262
      %v3267 = vsel %vm1167, %v3256, %v3248
      %v3268 = vsel %vm1167, %v3258, %v3250
      %v3269 = vsel %vm1167, %v3260, %v3252
      %v3270 = vsel %vm1167, %v3262, %v3254
      %v3271 = vld [vmem:[%s1176] sm:$0x3]
      %v3273 = vperm.slane %v3271, 0
      %v3274 = vperm.slane %v3271, 1
      %v3277 = vmul.f32 %v3263, %v3273
      %v3278 = vmul.f32 %v3267, %v3274
      %v3279 = vmul.f32 %v3264, %v3273
      %v3280 = vmul.f32 %v3268, %v3274
      %v3281 = vmul.f32 %v3265, %v3273
      %v3282 = vmul.f32 %v3269, %v3274
      %v3283 = vmul.f32 %v3266, %v3273
      %v3284 = vmul.f32 %v3270, %v3274
      %s3285 = scalar_lea.vmem %s1, 832
      %v3286 = vld [vmem:[%s3285] sm:$0xff]
      %v3287 = vld [vmem:[%s3285 + $0x8] sm:$0xff]
      %v3288 = vld [vmem:[%s3285 + $0x10] sm:$0xff]
      %v3289 = vld [vmem:[%s3285 + $0x18] sm:$0xff]
      %v3291 = vsel %vm272, %v3286, 0
      %v3294 = vsel %vm272, %v3287, 0
      %v3297 = vsel %vm272, %v3288, 0
      %v3300 = vsel %vm272, %v3289, 0
      %3302 = vmatpush.msra.mxu0 0.0
      %3303 = vmatpush.msra.mxu0 0.0
      %3304 = vmatpush.msra.mxu0 0.0
      %3305 = vmatpush.msra.mxu0 0.0
      %3306 = vmatpush.msra.mxu0 0.0
      %3307 = vmatpush.msra.mxu0 0.0
      %3308 = vmatpush.msra.mxu0 0.0
      %3309 = vmatpush.msra.mxu0 0.0
      %3310 = vmatpush.msra.mxu0 0.0
      %3311 = vmatpush.msra.mxu0 0.0
      %3312 = vmatpush.msra.mxu0 0.0
      %3313 = vmatpush.msra.mxu0 0.0
      %3314 = vmatpush.msra.mxu0 %v3283
      %3315 = vmatpush.msra.mxu0 %v3281
      %3316 = vmatpush.msra.mxu0 %v3279
      %3317 = vmatpush.msra.mxu0 %v3277
      %3318 = vmatmul.f32.gmra.mxu0 %v3291
      %v3319 = vpop.f32.mrf.mxu0
      %v3320 = vadd.f32 0.0, %v3319
      %3321 = vmatmul.f32.gmra.mxu0 %v3294
      %v3322 = vpop.f32.mrf.mxu0
      %v3323 = vadd.f32 0.0, %v3322
      %3324 = vmatmul.f32.gmra.mxu0 %v3297
      %v3325 = vpop.f32.mrf.mxu0
      %v3326 = vadd.f32 0.0, %v3325
      %3327 = vmatmul.f32.gmra.mxu0 %v3300
      %v3328 = vpop.f32.mrf.mxu0
      %v3329 = vadd.f32 0.0, %v3328
      %3330 = vdwg.mxu0
      %3331 = vmatpush.msra.mxu0 0.0
      %3332 = vmatpush.msra.mxu0 0.0
      %3333 = vmatpush.msra.mxu0 0.0
      %3334 = vmatpush.msra.mxu0 0.0
      %3335 = vmatpush.msra.mxu0 0.0
      %3336 = vmatpush.msra.mxu0 0.0
      %3337 = vmatpush.msra.mxu0 0.0
      %3338 = vmatpush.msra.mxu0 0.0
      %3339 = vmatpush.msra.mxu0 0.0
      %3340 = vmatpush.msra.mxu0 0.0
      %3341 = vmatpush.msra.mxu0 0.0
      %3342 = vmatpush.msra.mxu0 0.0
      %3343 = vmatpush.msra.mxu0 %v3284
      %3344 = vmatpush.msra.mxu0 %v3282
      %3345 = vmatpush.msra.mxu0 %v3280
      %3346 = vmatpush.msra.mxu0 %v3278
      %3347 = vmatmul.f32.gmra.mxu0 %v3291
      %v3348 = vpop.f32.mrf.mxu0
      %v3349 = vadd.f32 0.0, %v3348
      %3350 = vmatmul.f32.gmra.mxu0 %v3294
      %v3351 = vpop.f32.mrf.mxu0
      %v3352 = vadd.f32 0.0, %v3351
      %3353 = vmatmul.f32.gmra.mxu0 %v3297
      %v3354 = vpop.f32.mrf.mxu0
      %v3355 = vadd.f32 0.0, %v3354
      %3356 = vmatmul.f32.gmra.mxu0 %v3300
      %v3357 = vpop.f32.mrf.mxu0
      %v3358 = vadd.f32 0.0, %v3357
      %3359 = vdwg.mxu0
      %v3360 = vadd.f32 %v3239, %v3320
      %v3361 = vadd.f32 %v3240, %v3349
      %v3362 = vadd.f32 %v3241, %v3323
      %v3363 = vadd.f32 %v3242, %v3352
      %v3364 = vadd.f32 %v3243, %v3326
      %v3365 = vadd.f32 %v3244, %v3355
      %v3366 = vadd.f32 %v3245, %v3329
      %v3367 = vadd.f32 %v3246, %v3358
      %s3368 = scalar_lea.vmem %s2, 32
      %v3369 = vld [vmem:[%s3368] sm:$0xff]
      %v3370 = vld [vmem:[%s3368 + $0x8] sm:$0xff]
      %v3371 = vld [vmem:[%s3368 + $0x10] sm:$0xff]
      %v3372 = vld [vmem:[%s3368 + $0x18] sm:$0xff]
      %3374 = vset.pattern.permute.xlu0 0
      %3375 = vperm.xlu0 %3374, %v3369
      %v3376 = vpop.permute.xlu0 %3375
      %3379 = vset.pattern.permute.xlu0 0
      %3380 = vperm.xlu0 %3379, %v3370
      %v3381 = vpop.permute.xlu0 %3380
      %3384 = vset.pattern.permute.xlu0 0
      %3385 = vperm.xlu0 %3384, %v3371
      %v3386 = vpop.permute.xlu0 %3385
      %3389 = vset.pattern.permute.xlu0 0
      %3390 = vperm.xlu0 %3389, %v3372
      %v3391 = vpop.permute.xlu0 %3390
      %v3393 = vadd.f32 %v3360, %v3376
      %v3394 = vadd.f32 %v3361, %v3376
      %v3395 = vadd.f32 %v3362, %v3381
      %v3396 = vadd.f32 %v3363, %v3381
      %v3397 = vadd.f32 %v3364, %v3386
      %v3398 = vadd.f32 %v3365, %v3386
      %v3399 = vadd.f32 %v3366, %v3391
      %v3400 = vadd.f32 %v3367, %v3391
      %v3401 = vmax.f32 %v3393, 0.0
      %v3402 = vmax.f32 %v3394, 0.0
      %v3403 = vmax.f32 %v3395, 0.0
      %v3404 = vmax.f32 %v3396, 0.0
      %v3405 = vmax.f32 %v3397, 0.0
      %v3406 = vmax.f32 %v3398, 0.0
      %v3407 = vmax.f32 %v3399, 0.0
      %v3408 = vmax.f32 %v3400, 0.0
      %s3409 = scalar_lea.vmem %s1, 992
      %v3410 = vld [vmem:[%s3409] sm:$0xff]
      %v3411 = vld [vmem:[%s3409 + $0x8] sm:$0xff]
      %v3412 = vld [vmem:[%s3409 + $0x10] sm:$0xff]
      %v3413 = vld [vmem:[%s3409 + $0x18] sm:$0xff]
      %3414 = vrot.lane.b32.xlu0 %v3401, 17
      %v3415 = vpop.permute.xlu0 %3414
      %3416 = vrot.lane.b32.xlu0 %v3403, 17
      %v3417 = vpop.permute.xlu0 %3416
      %3418 = vrot.lane.b32.xlu0 %v3405, 17
      %v3419 = vpop.permute.xlu0 %3418
      %3420 = vrot.lane.b32.xlu0 %v3407, 17
      %v3421 = vpop.permute.xlu0 %3420
      %3422 = vrot.lane.b32.xlu0 %v3402, 17
      %v3423 = vpop.permute.xlu0 %3422
      %3424 = vrot.lane.b32.xlu0 %v3404, 17
      %v3425 = vpop.permute.xlu0 %3424
      %3426 = vrot.lane.b32.xlu0 %v3406, 17
      %v3427 = vpop.permute.xlu0 %3426
      %3428 = vrot.lane.b32.xlu0 %v3408, 17
      %v3429 = vpop.permute.xlu0 %3428
      %v3430 = vsel %vm245, %v3415, %v3423
      %v3431 = vsel %vm245, %v3417, %v3425
      %v3432 = vsel %vm245, %v3419, %v3427
      %v3433 = vsel %vm245, %v3421, %v3429
      %v3434 = vsel %vm245, %v3423, %v3415
      %v3435 = vsel %vm245, %v3425, %v3417
      %v3436 = vsel %vm245, %v3427, %v3419
      %v3437 = vsel %vm245, %v3429, %v3421
      %v3438 = vmul.f32 %v3434, %v2364
      %v3439 = vmul.f32 %v3430, %v2365
      %v3440 = vmul.f32 %v3435, %v2364
      %v3441 = vmul.f32 %v3431, %v2365
      %v3442 = vmul.f32 %v3436, %v2364
      %v3443 = vmul.f32 %v3432, %v2365
      %v3444 = vmul.f32 %v3437, %v2364
      %v3445 = vmul.f32 %v3433, %v2365
      %s3446 = scalar_lea.vmem %s1, 864
      %v3447 = vld [vmem:[%s3446] sm:$0xff]
      %v3448 = vld [vmem:[%s3446 + $0x8] sm:$0xff]
      %v3449 = vld [vmem:[%s3446 + $0x10] sm:$0xff]
      %v3450 = vld [vmem:[%s3446 + $0x18] sm:$0xff]
      %v3452 = vsel %vm272, %v3447, 0
      %v3455 = vsel %vm272, %v3448, 0
      %v3458 = vsel %vm272, %v3449, 0
      %v3461 = vsel %vm272, %v3450, 0
      %3463 = vmatpush.msra.mxu0 0.0
      %3464 = vmatpush.msra.mxu0 0.0
      %3465 = vmatpush.msra.mxu0 0.0
      %3466 = vmatpush.msra.mxu0 0.0
      %3467 = vmatpush.msra.mxu0 0.0
      %3468 = vmatpush.msra.mxu0 0.0
      %3469 = vmatpush.msra.mxu0 0.0
      %3470 = vmatpush.msra.mxu0 0.0
      %3471 = vmatpush.msra.mxu0 0.0
      %3472 = vmatpush.msra.mxu0 0.0
      %3473 = vmatpush.msra.mxu0 0.0
      %3474 = vmatpush.msra.mxu0 0.0
      %3475 = vmatpush.msra.mxu0 %v3444
      %3476 = vmatpush.msra.mxu0 %v3442
      %3477 = vmatpush.msra.mxu0 %v3440
      %3478 = vmatpush.msra.mxu0 %v3438
      %3479 = vmatmul.f32.gmra.mxu0 %v3452
      %v3480 = vpop.f32.mrf.mxu0
      %v3481 = vadd.f32 0.0, %v3480
      %3482 = vmatmul.f32.gmra.mxu0 %v3455
      %v3483 = vpop.f32.mrf.mxu0
      %v3484 = vadd.f32 0.0, %v3483
      %3485 = vmatmul.f32.gmra.mxu0 %v3458
      %v3486 = vpop.f32.mrf.mxu0
      %v3487 = vadd.f32 0.0, %v3486
      %3488 = vmatmul.f32.gmra.mxu0 %v3461
      %v3489 = vpop.f32.mrf.mxu0
      %v3490 = vadd.f32 0.0, %v3489
      %3491 = vdwg.mxu0
      %3492 = vmatpush.msra.mxu0 0.0
      %3493 = vmatpush.msra.mxu0 0.0
      %3494 = vmatpush.msra.mxu0 0.0
      %3495 = vmatpush.msra.mxu0 0.0
      %3496 = vmatpush.msra.mxu0 0.0
      %3497 = vmatpush.msra.mxu0 0.0
      %3498 = vmatpush.msra.mxu0 0.0
      %3499 = vmatpush.msra.mxu0 0.0
      %3500 = vmatpush.msra.mxu0 0.0
      %3501 = vmatpush.msra.mxu0 0.0
      %3502 = vmatpush.msra.mxu0 0.0
      %3503 = vmatpush.msra.mxu0 0.0
      %3504 = vmatpush.msra.mxu0 %v3445
      %3505 = vmatpush.msra.mxu0 %v3443
      %3506 = vmatpush.msra.mxu0 %v3441
      %3507 = vmatpush.msra.mxu0 %v3439
      %3508 = vmatmul.f32.gmra.mxu0 %v3452
      %v3509 = vpop.f32.mrf.mxu0
      %v3510 = vadd.f32 0.0, %v3509
      %3511 = vmatmul.f32.gmra.mxu0 %v3455
      %v3512 = vpop.f32.mrf.mxu0
      %v3513 = vadd.f32 0.0, %v3512
      %3514 = vmatmul.f32.gmra.mxu0 %v3458
      %v3515 = vpop.f32.mrf.mxu0
      %v3516 = vadd.f32 0.0, %v3515
      %3517 = vmatmul.f32.gmra.mxu0 %v3461
      %v3518 = vpop.f32.mrf.mxu0
      %v3519 = vadd.f32 0.0, %v3518
      %3520 = vdwg.mxu0
      %v3522 = vsel %vm272, %v3410, 0
      %v3525 = vsel %vm272, %v3411, 0
      %v3528 = vsel %vm272, %v3412, 0
      %v3531 = vsel %vm272, %v3413, 0
      %3533 = vmatpush.msra.mxu0 0.0
      %3534 = vmatpush.msra.mxu0 0.0
      %3535 = vmatpush.msra.mxu0 0.0
      %3536 = vmatpush.msra.mxu0 0.0
      %3537 = vmatpush.msra.mxu0 0.0
      %3538 = vmatpush.msra.mxu0 0.0
      %3539 = vmatpush.msra.mxu0 0.0
      %3540 = vmatpush.msra.mxu0 0.0
      %3541 = vmatpush.msra.mxu0 0.0
      %3542 = vmatpush.msra.mxu0 0.0
      %3543 = vmatpush.msra.mxu0 0.0
      %3544 = vmatpush.msra.mxu0 0.0
      %3545 = vmatpush.msra.mxu0 %v3407
      %3546 = vmatpush.msra.mxu0 %v3405
      %3547 = vmatpush.msra.mxu0 %v3403
      %3548 = vmatpush.msra.mxu0 %v3401
      %3549 = vmatmul.f32.gmra.mxu0 %v3522
      %v3550 = vpop.f32.mrf.mxu0
      %v3551 = vadd.f32 %v3481, %v3550
      %3552 = vmatmul.f32.gmra.mxu0 %v3525
      %v3553 = vpop.f32.mrf.mxu0
      %v3554 = vadd.f32 %v3484, %v3553
      %3555 = vmatmul.f32.gmra.mxu0 %v3528
      %v3556 = vpop.f32.mrf.mxu0
      %v3557 = vadd.f32 %v3487, %v3556
      %3558 = vmatmul.f32.gmra.mxu0 %v3531
      %v3559 = vpop.f32.mrf.mxu0
      %v3560 = vadd.f32 %v3490, %v3559
      %3561 = vdwg.mxu0
      %3562 = vmatpush.msra.mxu0 0.0
      %3563 = vmatpush.msra.mxu0 0.0
      %3564 = vmatpush.msra.mxu0 0.0
      %3565 = vmatpush.msra.mxu0 0.0
      %3566 = vmatpush.msra.mxu0 0.0
      %3567 = vmatpush.msra.mxu0 0.0
      %3568 = vmatpush.msra.mxu0 0.0
      %3569 = vmatpush.msra.mxu0 0.0
      %3570 = vmatpush.msra.mxu0 0.0
      %3571 = vmatpush.msra.mxu0 0.0
      %3572 = vmatpush.msra.mxu0 0.0
      %3573 = vmatpush.msra.mxu0 0.0
      %3574 = vmatpush.msra.mxu0 %v3408
      %3575 = vmatpush.msra.mxu0 %v3406
      %3576 = vmatpush.msra.mxu0 %v3404
      %3577 = vmatpush.msra.mxu0 %v3402
      %3578 = vmatmul.f32.gmra.mxu0 %v3522
      %v3579 = vpop.f32.mrf.mxu0
      %v3580 = vadd.f32 %v3510, %v3579
      %3581 = vmatmul.f32.gmra.mxu0 %v3525
      %v3582 = vpop.f32.mrf.mxu0
      %v3583 = vadd.f32 %v3513, %v3582
      %3584 = vmatmul.f32.gmra.mxu0 %v3528
      %v3585 = vpop.f32.mrf.mxu0
      %v3586 = vadd.f32 %v3516, %v3585
      %3587 = vmatmul.f32.gmra.mxu0 %v3531
      %v3588 = vpop.f32.mrf.mxu0
      %v3589 = vadd.f32 %v3519, %v3588
      %3590 = vdwg.mxu0
      %3591 = vrot.lane.b32.xlu0 %v3401, 16
      %v3592 = vpop.permute.xlu0 %3591
      %3593 = vrot.lane.b32.xlu0 %v3403, 16
      %v3594 = vpop.permute.xlu0 %3593
      %3595 = vrot.lane.b32.xlu0 %v3405, 16
      %v3596 = vpop.permute.xlu0 %3595
      %3597 = vrot.lane.b32.xlu0 %v3407, 16
      %v3598 = vpop.permute.xlu0 %3597
      %3599 = vrot.lane.b32.xlu0 %v3402, 16
      %v3600 = vpop.permute.xlu0 %3599
      %3601 = vrot.lane.b32.xlu0 %v3404, 16
      %v3602 = vpop.permute.xlu0 %3601
      %3603 = vrot.lane.b32.xlu0 %v3406, 16
      %v3604 = vpop.permute.xlu0 %3603
      %3605 = vrot.lane.b32.xlu0 %v3408, 16
      %v3606 = vpop.permute.xlu0 %3605
      %v3607 = vsel %vm429, %v3592, %v3600
      %v3608 = vsel %vm429, %v3594, %v3602
      %v3609 = vsel %vm429, %v3596, %v3604
      %v3610 = vsel %vm429, %v3598, %v3606
      %v3611 = vsel %vm429, %v3600, %v3592
      %v3612 = vsel %vm429, %v3602, %v3594
      %v3613 = vsel %vm429, %v3604, %v3596
      %v3614 = vsel %vm429, %v3606, %v3598
      %v3615 = vmul.f32 %v3611, %v2547
      %v3616 = vmul.f32 %v3607, %v2548
      %v3617 = vmul.f32 %v3612, %v2547
      %v3618 = vmul.f32 %v3608, %v2548
      %v3619 = vmul.f32 %v3613, %v2547
      %v3620 = vmul.f32 %v3609, %v2548
      %v3621 = vmul.f32 %v3614, %v2547
      %v3622 = vmul.f32 %v3610, %v2548
      %s3623 = scalar_lea.vmem %s1, 896
      %v3624 = vld [vmem:[%s3623] sm:$0xff]
      %v3625 = vld [vmem:[%s3623 + $0x8] sm:$0xff]
      %v3626 = vld [vmem:[%s3623 + $0x10] sm:$0xff]
      %v3627 = vld [vmem:[%s3623 + $0x18] sm:$0xff]
      %v3629 = vsel %vm272, %v3624, 0
      %v3632 = vsel %vm272, %v3625, 0
      %v3635 = vsel %vm272, %v3626, 0
      %v3638 = vsel %vm272, %v3627, 0
      %3640 = vmatpush.msra.mxu0 0.0
      %3641 = vmatpush.msra.mxu0 0.0
      %3642 = vmatpush.msra.mxu0 0.0
      %3643 = vmatpush.msra.mxu0 0.0
      %3644 = vmatpush.msra.mxu0 0.0
      %3645 = vmatpush.msra.mxu0 0.0
      %3646 = vmatpush.msra.mxu0 0.0
      %3647 = vmatpush.msra.mxu0 0.0
      %3648 = vmatpush.msra.mxu0 0.0
      %3649 = vmatpush.msra.mxu0 0.0
      %3650 = vmatpush.msra.mxu0 0.0
      %3651 = vmatpush.msra.mxu0 0.0
      %3652 = vmatpush.msra.mxu0 %v3621
      %3653 = vmatpush.msra.mxu0 %v3619
      %3654 = vmatpush.msra.mxu0 %v3617
      %3655 = vmatpush.msra.mxu0 %v3615
      %3656 = vmatmul.f32.gmra.mxu0 %v3629
      %v3657 = vpop.f32.mrf.mxu0
      %v3658 = vadd.f32 0.0, %v3657
      %3659 = vmatmul.f32.gmra.mxu0 %v3632
      %v3660 = vpop.f32.mrf.mxu0
      %v3661 = vadd.f32 0.0, %v3660
      %3662 = vmatmul.f32.gmra.mxu0 %v3635
      %v3663 = vpop.f32.mrf.mxu0
      %v3664 = vadd.f32 0.0, %v3663
      %3665 = vmatmul.f32.gmra.mxu0 %v3638
      %v3666 = vpop.f32.mrf.mxu0
      %v3667 = vadd.f32 0.0, %v3666
      %3668 = vdwg.mxu0
      %3669 = vmatpush.msra.mxu0 0.0
      %3670 = vmatpush.msra.mxu0 0.0
      %3671 = vmatpush.msra.mxu0 0.0
      %3672 = vmatpush.msra.mxu0 0.0
      %3673 = vmatpush.msra.mxu0 0.0
      %3674 = vmatpush.msra.mxu0 0.0
      %3675 = vmatpush.msra.mxu0 0.0
      %3676 = vmatpush.msra.mxu0 0.0
      %3677 = vmatpush.msra.mxu0 0.0
      %3678 = vmatpush.msra.mxu0 0.0
      %3679 = vmatpush.msra.mxu0 0.0
      %3680 = vmatpush.msra.mxu0 0.0
      %3681 = vmatpush.msra.mxu0 %v3622
      %3682 = vmatpush.msra.mxu0 %v3620
      %3683 = vmatpush.msra.mxu0 %v3618
      %3684 = vmatpush.msra.mxu0 %v3616
      %3685 = vmatmul.f32.gmra.mxu0 %v3629
      %v3686 = vpop.f32.mrf.mxu0
      %v3687 = vadd.f32 0.0, %v3686
      %3688 = vmatmul.f32.gmra.mxu0 %v3632
      %v3689 = vpop.f32.mrf.mxu0
      %v3690 = vadd.f32 0.0, %v3689
      %3691 = vmatmul.f32.gmra.mxu0 %v3635
      %v3692 = vpop.f32.mrf.mxu0
      %v3693 = vadd.f32 0.0, %v3692
      %3694 = vmatmul.f32.gmra.mxu0 %v3638
      %v3695 = vpop.f32.mrf.mxu0
      %v3696 = vadd.f32 0.0, %v3695
      %3697 = vdwg.mxu0
      %v3698 = vadd.f32 %v3551, %v3658
      %v3699 = vadd.f32 %v3580, %v3687
      %v3700 = vadd.f32 %v3554, %v3661
      %v3701 = vadd.f32 %v3583, %v3690
      %v3702 = vadd.f32 %v3557, %v3664
      %v3703 = vadd.f32 %v3586, %v3693
      %v3704 = vadd.f32 %v3560, %v3667
      %v3705 = vadd.f32 %v3589, %v3696
      %3706 = vrot.lane.b32.xlu0 %v3401, 15
      %v3707 = vpop.permute.xlu0 %3706
      %3708 = vrot.lane.b32.xlu0 %v3403, 15
      %v3709 = vpop.permute.xlu0 %3708
      %3710 = vrot.lane.b32.xlu0 %v3405, 15
      %v3711 = vpop.permute.xlu0 %3710
      %3712 = vrot.lane.b32.xlu0 %v3407, 15
      %v3713 = vpop.permute.xlu0 %3712
      %3714 = vrot.lane.b32.xlu0 %v3402, 15
      %v3715 = vpop.permute.xlu0 %3714
      %3716 = vrot.lane.b32.xlu0 %v3404, 15
      %v3717 = vpop.permute.xlu0 %3716
      %3718 = vrot.lane.b32.xlu0 %v3406, 15
      %v3719 = vpop.permute.xlu0 %3718
      %3720 = vrot.lane.b32.xlu0 %v3408, 15
      %v3721 = vpop.permute.xlu0 %3720
      %v3722 = vsel %vm552, %v3707, %v3715
      %v3723 = vsel %vm552, %v3709, %v3717
      %v3724 = vsel %vm552, %v3711, %v3719
      %v3725 = vsel %vm552, %v3713, %v3721
      %v3726 = vsel %vm552, %v3715, %v3707
      %v3727 = vsel %vm552, %v3717, %v3709
      %v3728 = vsel %vm552, %v3719, %v3711
      %v3729 = vsel %vm552, %v3721, %v3713
      %v3730 = vmul.f32 %v3726, %v2668
      %v3731 = vmul.f32 %v3722, %v2669
      %v3732 = vmul.f32 %v3727, %v2668
      %v3733 = vmul.f32 %v3723, %v2669
      %v3734 = vmul.f32 %v3728, %v2668
      %v3735 = vmul.f32 %v3724, %v2669
      %v3736 = vmul.f32 %v3729, %v2668
      %v3737 = vmul.f32 %v3725, %v2669
      %s3738 = scalar_lea.vmem %s1, 928
      %v3739 = vld [vmem:[%s3738] sm:$0xff]
      %v3740 = vld [vmem:[%s3738 + $0x8] sm:$0xff]
      %v3741 = vld [vmem:[%s3738 + $0x10] sm:$0xff]
      %v3742 = vld [vmem:[%s3738 + $0x18] sm:$0xff]
      %v3744 = vsel %vm272, %v3739, 0
      %v3747 = vsel %vm272, %v3740, 0
      %v3750 = vsel %vm272, %v3741, 0
      %v3753 = vsel %vm272, %v3742, 0
      %3755 = vmatpush.msra.mxu0 0.0
      %3756 = vmatpush.msra.mxu0 0.0
      %3757 = vmatpush.msra.mxu0 0.0
      %3758 = vmatpush.msra.mxu0 0.0
      %3759 = vmatpush.msra.mxu0 0.0
      %3760 = vmatpush.msra.mxu0 0.0
      %3761 = vmatpush.msra.mxu0 0.0
      %3762 = vmatpush.msra.mxu0 0.0
      %3763 = vmatpush.msra.mxu0 0.0
      %3764 = vmatpush.msra.mxu0 0.0
      %3765 = vmatpush.msra.mxu0 0.0
      %3766 = vmatpush.msra.mxu0 0.0
      %3767 = vmatpush.msra.mxu0 %v3736
      %3768 = vmatpush.msra.mxu0 %v3734
      %3769 = vmatpush.msra.mxu0 %v3732
      %3770 = vmatpush.msra.mxu0 %v3730
      %3771 = vmatmul.f32.gmra.mxu0 %v3744
      %v3772 = vpop.f32.mrf.mxu0
      %v3773 = vadd.f32 0.0, %v3772
      %3774 = vmatmul.f32.gmra.mxu0 %v3747
      %v3775 = vpop.f32.mrf.mxu0
      %v3776 = vadd.f32 0.0, %v3775
      %3777 = vmatmul.f32.gmra.mxu0 %v3750
      %v3778 = vpop.f32.mrf.mxu0
      %v3779 = vadd.f32 0.0, %v3778
      %3780 = vmatmul.f32.gmra.mxu0 %v3753
      %v3781 = vpop.f32.mrf.mxu0
      %v3782 = vadd.f32 0.0, %v3781
      %3783 = vdwg.mxu0
      %3784 = vmatpush.msra.mxu0 0.0
      %3785 = vmatpush.msra.mxu0 0.0
      %3786 = vmatpush.msra.mxu0 0.0
      %3787 = vmatpush.msra.mxu0 0.0
      %3788 = vmatpush.msra.mxu0 0.0
      %3789 = vmatpush.msra.mxu0 0.0
      %3790 = vmatpush.msra.mxu0 0.0
      %3791 = vmatpush.msra.mxu0 0.0
      %3792 = vmatpush.msra.mxu0 0.0
      %3793 = vmatpush.msra.mxu0 0.0
      %3794 = vmatpush.msra.mxu0 0.0
      %3795 = vmatpush.msra.mxu0 0.0
      %3796 = vmatpush.msra.mxu0 %v3737
      %3797 = vmatpush.msra.mxu0 %v3735
      %3798 = vmatpush.msra.mxu0 %v3733
      %3799 = vmatpush.msra.mxu0 %v3731
      %3800 = vmatmul.f32.gmra.mxu0 %v3744
      %v3801 = vpop.f32.mrf.mxu0
      %v3802 = vadd.f32 0.0, %v3801
      %3803 = vmatmul.f32.gmra.mxu0 %v3747
      %v3804 = vpop.f32.mrf.mxu0
      %v3805 = vadd.f32 0.0, %v3804
      %3806 = vmatmul.f32.gmra.mxu0 %v3750
      %v3807 = vpop.f32.mrf.mxu0
      %v3808 = vadd.f32 0.0, %v3807
      %3809 = vmatmul.f32.gmra.mxu0 %v3753
      %v3810 = vpop.f32.mrf.mxu0
      %v3811 = vadd.f32 0.0, %v3810
      %3812 = vdwg.mxu0
      %v3813 = vadd.f32 %v3698, %v3773
      %v3814 = vadd.f32 %v3699, %v3802
      %v3815 = vadd.f32 %v3700, %v3776
      %v3816 = vadd.f32 %v3701, %v3805
      %v3817 = vadd.f32 %v3702, %v3779
      %v3818 = vadd.f32 %v3703, %v3808
      %v3819 = vadd.f32 %v3704, %v3782
      %v3820 = vadd.f32 %v3705, %v3811
      %3821 = vrot.lane.b32.xlu0 %v3401, 1
      %v3822 = vpop.permute.xlu0 %3821
      %3823 = vrot.lane.b32.xlu0 %v3403, 1
      %v3824 = vpop.permute.xlu0 %3823
      %3825 = vrot.lane.b32.xlu0 %v3405, 1
      %v3826 = vpop.permute.xlu0 %3825
      %3827 = vrot.lane.b32.xlu0 %v3407, 1
      %v3828 = vpop.permute.xlu0 %3827
      %3829 = vrot.lane.b32.xlu0 %v3402, 1
      %v3830 = vpop.permute.xlu0 %3829
      %3831 = vrot.lane.b32.xlu0 %v3404, 1
      %v3832 = vpop.permute.xlu0 %3831
      %3833 = vrot.lane.b32.xlu0 %v3406, 1
      %v3834 = vpop.permute.xlu0 %3833
      %3835 = vrot.lane.b32.xlu0 %v3408, 1
      %v3836 = vpop.permute.xlu0 %3835
      %v3837 = vsel %vm675, %v3822, %v3830
      %v3838 = vsel %vm675, %v3824, %v3832
      %v3839 = vsel %vm675, %v3826, %v3834
      %v3840 = vsel %vm675, %v3828, %v3836
      %v3841 = vsel %vm675, %v3830, %v3822
      %v3842 = vsel %vm675, %v3832, %v3824
      %v3843 = vsel %vm675, %v3834, %v3826
      %v3844 = vsel %vm675, %v3836, %v3828
      %v3845 = vmul.f32 %v3841, %v2789
      %v3846 = vmul.f32 %v3837, %v2790
      %v3847 = vmul.f32 %v3842, %v2789
      %v3848 = vmul.f32 %v3838, %v2790
      %v3849 = vmul.f32 %v3843, %v2789
      %v3850 = vmul.f32 %v3839, %v2790
      %v3851 = vmul.f32 %v3844, %v2789
      %v3852 = vmul.f32 %v3840, %v2790
      %s3853 = scalar_lea.vmem %s1, 960
      %v3854 = vld [vmem:[%s3853] sm:$0xff]
      %v3855 = vld [vmem:[%s3853 + $0x8] sm:$0xff]
      %v3856 = vld [vmem:[%s3853 + $0x10] sm:$0xff]
      %v3857 = vld [vmem:[%s3853 + $0x18] sm:$0xff]
      %v3859 = vsel %vm272, %v3854, 0
      %v3862 = vsel %vm272, %v3855, 0
      %v3865 = vsel %vm272, %v3856, 0
      %v3868 = vsel %vm272, %v3857, 0
      %3870 = vmatpush.msra.mxu0 0.0
      %3871 = vmatpush.msra.mxu0 0.0
      %3872 = vmatpush.msra.mxu0 0.0
      %3873 = vmatpush.msra.mxu0 0.0
      %3874 = vmatpush.msra.mxu0 0.0
      %3875 = vmatpush.msra.mxu0 0.0
      %3876 = vmatpush.msra.mxu0 0.0
      %3877 = vmatpush.msra.mxu0 0.0
      %3878 = vmatpush.msra.mxu0 0.0
      %3879 = vmatpush.msra.mxu0 0.0
      %3880 = vmatpush.msra.mxu0 0.0
      %3881 = vmatpush.msra.mxu0 0.0
      %3882 = vmatpush.msra.mxu0 %v3851
      %3883 = vmatpush.msra.mxu0 %v3849
      %3884 = vmatpush.msra.mxu0 %v3847
      %3885 = vmatpush.msra.mxu0 %v3845
      %3886 = vmatmul.f32.gmra.mxu0 %v3859
      %v3887 = vpop.f32.mrf.mxu0
      %v3888 = vadd.f32 0.0, %v3887
      %3889 = vmatmul.f32.gmra.mxu0 %v3862
      %v3890 = vpop.f32.mrf.mxu0
      %v3891 = vadd.f32 0.0, %v3890
      %3892 = vmatmul.f32.gmra.mxu0 %v3865
      %v3893 = vpop.f32.mrf.mxu0
      %v3894 = vadd.f32 0.0, %v3893
      %3895 = vmatmul.f32.gmra.mxu0 %v3868
      %v3896 = vpop.f32.mrf.mxu0
      %v3897 = vadd.f32 0.0, %v3896
      %3898 = vdwg.mxu0
      %3899 = vmatpush.msra.mxu0 0.0
      %3900 = vmatpush.msra.mxu0 0.0
      %3901 = vmatpush.msra.mxu0 0.0
      %3902 = vmatpush.msra.mxu0 0.0
      %3903 = vmatpush.msra.mxu0 0.0
      %3904 = vmatpush.msra.mxu0 0.0
      %3905 = vmatpush.msra.mxu0 0.0
      %3906 = vmatpush.msra.mxu0 0.0
      %3907 = vmatpush.msra.mxu0 0.0
      %3908 = vmatpush.msra.mxu0 0.0
      %3909 = vmatpush.msra.mxu0 0.0
      %3910 = vmatpush.msra.mxu0 0.0
      %3911 = vmatpush.msra.mxu0 %v3852
      %3912 = vmatpush.msra.mxu0 %v3850
      %3913 = vmatpush.msra.mxu0 %v3848
      %3914 = vmatpush.msra.mxu0 %v3846
      %3915 = vmatmul.f32.gmra.mxu0 %v3859
      %v3916 = vpop.f32.mrf.mxu0
      %v3917 = vadd.f32 0.0, %v3916
      %3918 = vmatmul.f32.gmra.mxu0 %v3862
      %v3919 = vpop.f32.mrf.mxu0
      %v3920 = vadd.f32 0.0, %v3919
      %3921 = vmatmul.f32.gmra.mxu0 %v3865
      %v3922 = vpop.f32.mrf.mxu0
      %v3923 = vadd.f32 0.0, %v3922
      %3924 = vmatmul.f32.gmra.mxu0 %v3868
      %v3925 = vpop.f32.mrf.mxu0
      %v3926 = vadd.f32 0.0, %v3925
      %3927 = vdwg.mxu0
      %v3928 = vadd.f32 %v3813, %v3888
      %v3929 = vadd.f32 %v3814, %v3917
      %v3930 = vadd.f32 %v3815, %v3891
      %v3931 = vadd.f32 %v3816, %v3920
      %v3932 = vadd.f32 %v3817, %v3894
      %v3933 = vadd.f32 %v3818, %v3923
      %v3934 = vadd.f32 %v3819, %v3897
      %v3935 = vadd.f32 %v3820, %v3926
      %3936 = vrot.lane.b32.xlu0 %v3401, 127
      %v3937 = vpop.permute.xlu0 %3936
      %3938 = vrot.lane.b32.xlu0 %v3403, 127
      %v3939 = vpop.permute.xlu0 %3938
      %3940 = vrot.lane.b32.xlu0 %v3405, 127
      %v3941 = vpop.permute.xlu0 %3940
      %3942 = vrot.lane.b32.xlu0 %v3407, 127
      %v3943 = vpop.permute.xlu0 %3942
      %3944 = vrot.lane.b32.xlu0 %v3402, 127
      %v3945 = vpop.permute.xlu0 %3944
      %3946 = vrot.lane.b32.xlu0 %v3404, 127
      %v3947 = vpop.permute.xlu0 %3946
      %3948 = vrot.lane.b32.xlu0 %v3406, 127
      %v3949 = vpop.permute.xlu0 %3948
      %3950 = vrot.lane.b32.xlu0 %v3408, 127
      %v3951 = vpop.permute.xlu0 %3950
      %v3952 = vsel %vm798, %v3937, %v3945
      %v3953 = vsel %vm798, %v3939, %v3947
      %v3954 = vsel %vm798, %v3941, %v3949
      %v3955 = vsel %vm798, %v3943, %v3951
      %v3956 = vsel %vm798, %v3945, %v3937
      %v3957 = vsel %vm798, %v3947, %v3939
      %v3958 = vsel %vm798, %v3949, %v3941
      %v3959 = vsel %vm798, %v3951, %v3943
      %v3960 = vmul.f32 %v3952, %v2910
      %v3961 = vmul.f32 %v3956, %v2911
      %v3962 = vmul.f32 %v3953, %v2910
      %v3963 = vmul.f32 %v3957, %v2911
      %v3964 = vmul.f32 %v3954, %v2910
      %v3965 = vmul.f32 %v3958, %v2911
      %v3966 = vmul.f32 %v3955, %v2910
      %v3967 = vmul.f32 %v3959, %v2911
      %s3968 = scalar_lea.vmem %s1, 1024
      %v3969 = vld [vmem:[%s3968] sm:$0xff]
      %v3970 = vld [vmem:[%s3968 + $0x8] sm:$0xff]
      %v3971 = vld [vmem:[%s3968 + $0x10] sm:$0xff]
      %v3972 = vld [vmem:[%s3968 + $0x18] sm:$0xff]
      %v3974 = vsel %vm272, %v3969, 0
      %v3977 = vsel %vm272, %v3970, 0
      %v3980 = vsel %vm272, %v3971, 0
      %v3983 = vsel %vm272, %v3972, 0
      %3985 = vmatpush.msra.mxu0 0.0
      %3986 = vmatpush.msra.mxu0 0.0
      %3987 = vmatpush.msra.mxu0 0.0
      %3988 = vmatpush.msra.mxu0 0.0
      %3989 = vmatpush.msra.mxu0 0.0
      %3990 = vmatpush.msra.mxu0 0.0
      %3991 = vmatpush.msra.mxu0 0.0
      %3992 = vmatpush.msra.mxu0 0.0
      %3993 = vmatpush.msra.mxu0 0.0
      %3994 = vmatpush.msra.mxu0 0.0
      %3995 = vmatpush.msra.mxu0 0.0
      %3996 = vmatpush.msra.mxu0 0.0
      %3997 = vmatpush.msra.mxu0 %v3966
      %3998 = vmatpush.msra.mxu0 %v3964
      %3999 = vmatpush.msra.mxu0 %v3962
      %4000 = vmatpush.msra.mxu0 %v3960
      %4001 = vmatmul.f32.gmra.mxu0 %v3974
      %v4002 = vpop.f32.mrf.mxu0
      %v4003 = vadd.f32 0.0, %v4002
      %4004 = vmatmul.f32.gmra.mxu0 %v3977
      %v4005 = vpop.f32.mrf.mxu0
      %v4006 = vadd.f32 0.0, %v4005
      %4007 = vmatmul.f32.gmra.mxu0 %v3980
      %v4008 = vpop.f32.mrf.mxu0
      %v4009 = vadd.f32 0.0, %v4008
      %4010 = vmatmul.f32.gmra.mxu0 %v3983
      %v4011 = vpop.f32.mrf.mxu0
      %v4012 = vadd.f32 0.0, %v4011
      %4013 = vdwg.mxu0
      %4014 = vmatpush.msra.mxu0 0.0
      %4015 = vmatpush.msra.mxu0 0.0
      %4016 = vmatpush.msra.mxu0 0.0
      %4017 = vmatpush.msra.mxu0 0.0
      %4018 = vmatpush.msra.mxu0 0.0
      %4019 = vmatpush.msra.mxu0 0.0
      %4020 = vmatpush.msra.mxu0 0.0
      %4021 = vmatpush.msra.mxu0 0.0
      %4022 = vmatpush.msra.mxu0 0.0
      %4023 = vmatpush.msra.mxu0 0.0
      %4024 = vmatpush.msra.mxu0 0.0
      %4025 = vmatpush.msra.mxu0 0.0
      %4026 = vmatpush.msra.mxu0 %v3967
      %4027 = vmatpush.msra.mxu0 %v3965
      %4028 = vmatpush.msra.mxu0 %v3963
      %4029 = vmatpush.msra.mxu0 %v3961
      %4030 = vmatmul.f32.gmra.mxu0 %v3974
      %v4031 = vpop.f32.mrf.mxu0
      %v4032 = vadd.f32 0.0, %v4031
      %4033 = vmatmul.f32.gmra.mxu0 %v3977
      %v4034 = vpop.f32.mrf.mxu0
      %v4035 = vadd.f32 0.0, %v4034
      %4036 = vmatmul.f32.gmra.mxu0 %v3980
      %v4037 = vpop.f32.mrf.mxu0
      %v4038 = vadd.f32 0.0, %v4037
      %4039 = vmatmul.f32.gmra.mxu0 %v3983
      %v4040 = vpop.f32.mrf.mxu0
      %v4041 = vadd.f32 0.0, %v4040
      %4042 = vdwg.mxu0
      %v4043 = vadd.f32 %v3928, %v4003
      %v4044 = vadd.f32 %v3929, %v4032
      %v4045 = vadd.f32 %v3930, %v4006
      %v4046 = vadd.f32 %v3931, %v4035
      %v4047 = vadd.f32 %v3932, %v4009
      %v4048 = vadd.f32 %v3933, %v4038
      %v4049 = vadd.f32 %v3934, %v4012
      %v4050 = vadd.f32 %v3935, %v4041
      %4051 = vrot.lane.b32.xlu0 %v3401, 113
      %v4052 = vpop.permute.xlu0 %4051
      %4053 = vrot.lane.b32.xlu0 %v3403, 113
      %v4054 = vpop.permute.xlu0 %4053
      %4055 = vrot.lane.b32.xlu0 %v3405, 113
      %v4056 = vpop.permute.xlu0 %4055
      %4057 = vrot.lane.b32.xlu0 %v3407, 113
      %v4058 = vpop.permute.xlu0 %4057
      %4059 = vrot.lane.b32.xlu0 %v3402, 113
      %v4060 = vpop.permute.xlu0 %4059
      %4061 = vrot.lane.b32.xlu0 %v3404, 113
      %v4062 = vpop.permute.xlu0 %4061
      %4063 = vrot.lane.b32.xlu0 %v3406, 113
      %v4064 = vpop.permute.xlu0 %4063
      %4065 = vrot.lane.b32.xlu0 %v3408, 113
      %v4066 = vpop.permute.xlu0 %4065
      %v4067 = vsel %vm921, %v4052, %v4060
      %v4068 = vsel %vm921, %v4054, %v4062
      %v4069 = vsel %vm921, %v4056, %v4064
      %v4070 = vsel %vm921, %v4058, %v4066
      %v4071 = vsel %vm921, %v4060, %v4052
      %v4072 = vsel %vm921, %v4062, %v4054
      %v4073 = vsel %vm921, %v4064, %v4056
      %v4074 = vsel %vm921, %v4066, %v4058
      %v4075 = vmul.f32 %v4067, %v3031
      %v4076 = vmul.f32 %v4071, %v3032
      %v4077 = vmul.f32 %v4068, %v3031
      %v4078 = vmul.f32 %v4072, %v3032
      %v4079 = vmul.f32 %v4069, %v3031
      %v4080 = vmul.f32 %v4073, %v3032
      %v4081 = vmul.f32 %v4070, %v3031
      %v4082 = vmul.f32 %v4074, %v3032
      %s4083 = scalar_lea.vmem %s1, 1056
      %v4084 = vld [vmem:[%s4083] sm:$0xff]
      %v4085 = vld [vmem:[%s4083 + $0x8] sm:$0xff]
      %v4086 = vld [vmem:[%s4083 + $0x10] sm:$0xff]
      %v4087 = vld [vmem:[%s4083 + $0x18] sm:$0xff]
      %v4089 = vsel %vm272, %v4084, 0
      %v4092 = vsel %vm272, %v4085, 0
      %v4095 = vsel %vm272, %v4086, 0
      %v4098 = vsel %vm272, %v4087, 0
      %4100 = vmatpush.msra.mxu0 0.0
      %4101 = vmatpush.msra.mxu0 0.0
      %4102 = vmatpush.msra.mxu0 0.0
      %4103 = vmatpush.msra.mxu0 0.0
      %4104 = vmatpush.msra.mxu0 0.0
      %4105 = vmatpush.msra.mxu0 0.0
      %4106 = vmatpush.msra.mxu0 0.0
      %4107 = vmatpush.msra.mxu0 0.0
      %4108 = vmatpush.msra.mxu0 0.0
      %4109 = vmatpush.msra.mxu0 0.0
      %4110 = vmatpush.msra.mxu0 0.0
      %4111 = vmatpush.msra.mxu0 0.0
      %4112 = vmatpush.msra.mxu0 %v4081
      %4113 = vmatpush.msra.mxu0 %v4079
      %4114 = vmatpush.msra.mxu0 %v4077
      %4115 = vmatpush.msra.mxu0 %v4075
      %4116 = vmatmul.f32.gmra.mxu0 %v4089
      %v4117 = vpop.f32.mrf.mxu0
      %v4118 = vadd.f32 0.0, %v4117
      %4119 = vmatmul.f32.gmra.mxu0 %v4092
      %v4120 = vpop.f32.mrf.mxu0
      %v4121 = vadd.f32 0.0, %v4120
      %4122 = vmatmul.f32.gmra.mxu0 %v4095
      %v4123 = vpop.f32.mrf.mxu0
      %v4124 = vadd.f32 0.0, %v4123
      %4125 = vmatmul.f32.gmra.mxu0 %v4098
      %v4126 = vpop.f32.mrf.mxu0
      %v4127 = vadd.f32 0.0, %v4126
      %4128 = vdwg.mxu0
      %4129 = vmatpush.msra.mxu0 0.0
      %4130 = vmatpush.msra.mxu0 0.0
      %4131 = vmatpush.msra.mxu0 0.0
      %4132 = vmatpush.msra.mxu0 0.0
      %4133 = vmatpush.msra.mxu0 0.0
      %4134 = vmatpush.msra.mxu0 0.0
      %4135 = vmatpush.msra.mxu0 0.0
      %4136 = vmatpush.msra.mxu0 0.0
      %4137 = vmatpush.msra.mxu0 0.0
      %4138 = vmatpush.msra.mxu0 0.0
      %4139 = vmatpush.msra.mxu0 0.0
      %4140 = vmatpush.msra.mxu0 0.0
      %4141 = vmatpush.msra.mxu0 %v4082
      %4142 = vmatpush.msra.mxu0 %v4080
      %4143 = vmatpush.msra.mxu0 %v4078
      %4144 = vmatpush.msra.mxu0 %v4076
      %4145 = vmatmul.f32.gmra.mxu0 %v4089
      %v4146 = vpop.f32.mrf.mxu0
      %v4147 = vadd.f32 0.0, %v4146
      %4148 = vmatmul.f32.gmra.mxu0 %v4092
      %v4149 = vpop.f32.mrf.mxu0
      %v4150 = vadd.f32 0.0, %v4149
      %4151 = vmatmul.f32.gmra.mxu0 %v4095
      %v4152 = vpop.f32.mrf.mxu0
      %v4153 = vadd.f32 0.0, %v4152
      %4154 = vmatmul.f32.gmra.mxu0 %v4098
      %v4155 = vpop.f32.mrf.mxu0
      %v4156 = vadd.f32 0.0, %v4155
      %4157 = vdwg.mxu0
      %v4158 = vadd.f32 %v4043, %v4118
      %v4159 = vadd.f32 %v4044, %v4147
      %v4160 = vadd.f32 %v4045, %v4121
      %v4161 = vadd.f32 %v4046, %v4150
      %v4162 = vadd.f32 %v4047, %v4124
      %v4163 = vadd.f32 %v4048, %v4153
      %v4164 = vadd.f32 %v4049, %v4127
      %v4165 = vadd.f32 %v4050, %v4156
      %4166 = vrot.lane.b32.xlu0 %v3401, 112
      %v4167 = vpop.permute.xlu0 %4166
      %4168 = vrot.lane.b32.xlu0 %v3403, 112
      %v4169 = vpop.permute.xlu0 %4168
      %4170 = vrot.lane.b32.xlu0 %v3405, 112
      %v4171 = vpop.permute.xlu0 %4170
      %4172 = vrot.lane.b32.xlu0 %v3407, 112
      %v4173 = vpop.permute.xlu0 %4172
      %4174 = vrot.lane.b32.xlu0 %v3402, 112
      %v4175 = vpop.permute.xlu0 %4174
      %4176 = vrot.lane.b32.xlu0 %v3404, 112
      %v4177 = vpop.permute.xlu0 %4176
      %4178 = vrot.lane.b32.xlu0 %v3406, 112
      %v4179 = vpop.permute.xlu0 %4178
      %4180 = vrot.lane.b32.xlu0 %v3408, 112
      %v4181 = vpop.permute.xlu0 %4180
      %v4182 = vsel %vm1044, %v4167, %v4175
      %v4183 = vsel %vm1044, %v4169, %v4177
      %v4184 = vsel %vm1044, %v4171, %v4179
      %v4185 = vsel %vm1044, %v4173, %v4181
      %v4186 = vsel %vm1044, %v4175, %v4167
      %v4187 = vsel %vm1044, %v4177, %v4169
      %v4188 = vsel %vm1044, %v4179, %v4171
      %v4189 = vsel %vm1044, %v4181, %v4173
      %v4190 = vmul.f32 %v4182, %v3152
      %v4191 = vmul.f32 %v4186, %v3153
      %v4192 = vmul.f32 %v4183, %v3152
      %v4193 = vmul.f32 %v4187, %v3153
      %v4194 = vmul.f32 %v4184, %v3152
      %v4195 = vmul.f32 %v4188, %v3153
      %v4196 = vmul.f32 %v4185, %v3152
      %v4197 = vmul.f32 %v4189, %v3153
      %s4198 = scalar_lea.vmem %s1, 1088
      %v4199 = vld [vmem:[%s4198] sm:$0xff]
      %v4200 = vld [vmem:[%s4198 + $0x8] sm:$0xff]
      %v4201 = vld [vmem:[%s4198 + $0x10] sm:$0xff]
      %v4202 = vld [vmem:[%s4198 + $0x18] sm:$0xff]
      %v4204 = vsel %vm272, %v4199, 0
      %v4207 = vsel %vm272, %v4200, 0
      %v4210 = vsel %vm272, %v4201, 0
      %v4213 = vsel %vm272, %v4202, 0
      %4215 = vmatpush.msra.mxu0 0.0
      %4216 = vmatpush.msra.mxu0 0.0
      %4217 = vmatpush.msra.mxu0 0.0
      %4218 = vmatpush.msra.mxu0 0.0
      %4219 = vmatpush.msra.mxu0 0.0
      %4220 = vmatpush.msra.mxu0 0.0
      %4221 = vmatpush.msra.mxu0 0.0
      %4222 = vmatpush.msra.mxu0 0.0
      %4223 = vmatpush.msra.mxu0 0.0
      %4224 = vmatpush.msra.mxu0 0.0
      %4225 = vmatpush.msra.mxu0 0.0
      %4226 = vmatpush.msra.mxu0 0.0
      %4227 = vmatpush.msra.mxu0 %v4196
      %4228 = vmatpush.msra.mxu0 %v4194
      %4229 = vmatpush.msra.mxu0 %v4192
      %4230 = vmatpush.msra.mxu0 %v4190
      %4231 = vmatmul.f32.gmra.mxu0 %v4204
      %v4232 = vpop.f32.mrf.mxu0
      %v4233 = vadd.f32 0.0, %v4232
      %4234 = vmatmul.f32.gmra.mxu0 %v4207
      %v4235 = vpop.f32.mrf.mxu0
      %v4236 = vadd.f32 0.0, %v4235
      %4237 = vmatmul.f32.gmra.mxu0 %v4210
      %v4238 = vpop.f32.mrf.mxu0
      %v4239 = vadd.f32 0.0, %v4238
      %4240 = vmatmul.f32.gmra.mxu0 %v4213
      %v4241 = vpop.f32.mrf.mxu0
      %v4242 = vadd.f32 0.0, %v4241
      %4243 = vdwg.mxu0
      %4244 = vmatpush.msra.mxu0 0.0
      %4245 = vmatpush.msra.mxu0 0.0
      %4246 = vmatpush.msra.mxu0 0.0
      %4247 = vmatpush.msra.mxu0 0.0
      %4248 = vmatpush.msra.mxu0 0.0
      %4249 = vmatpush.msra.mxu0 0.0
      %4250 = vmatpush.msra.mxu0 0.0
      %4251 = vmatpush.msra.mxu0 0.0
      %4252 = vmatpush.msra.mxu0 0.0
      %4253 = vmatpush.msra.mxu0 0.0
      %4254 = vmatpush.msra.mxu0 0.0
      %4255 = vmatpush.msra.mxu0 0.0
      %4256 = vmatpush.msra.mxu0 %v4197
      %4257 = vmatpush.msra.mxu0 %v4195
      %4258 = vmatpush.msra.mxu0 %v4193
      %4259 = vmatpush.msra.mxu0 %v4191
      %4260 = vmatmul.f32.gmra.mxu0 %v4204
      %v4261 = vpop.f32.mrf.mxu0
      %v4262 = vadd.f32 0.0, %v4261
      %4263 = vmatmul.f32.gmra.mxu0 %v4207
      %v4264 = vpop.f32.mrf.mxu0
      %v4265 = vadd.f32 0.0, %v4264
      %4266 = vmatmul.f32.gmra.mxu0 %v4210
      %v4267 = vpop.f32.mrf.mxu0
      %v4268 = vadd.f32 0.0, %v4267
      %4269 = vmatmul.f32.gmra.mxu0 %v4213
      %v4270 = vpop.f32.mrf.mxu0
      %v4271 = vadd.f32 0.0, %v4270
      %4272 = vdwg.mxu0
      %v4273 = vadd.f32 %v4158, %v4233
      %v4274 = vadd.f32 %v4159, %v4262
      %v4275 = vadd.f32 %v4160, %v4236
      %v4276 = vadd.f32 %v4161, %v4265
      %v4277 = vadd.f32 %v4162, %v4239
      %v4278 = vadd.f32 %v4163, %v4268
      %v4279 = vadd.f32 %v4164, %v4242
      %v4280 = vadd.f32 %v4165, %v4271
      %4281 = vrot.lane.b32.xlu0 %v3401, 111
      %v4282 = vpop.permute.xlu0 %4281
      %4283 = vrot.lane.b32.xlu0 %v3403, 111
      %v4284 = vpop.permute.xlu0 %4283
      %4285 = vrot.lane.b32.xlu0 %v3405, 111
      %v4286 = vpop.permute.xlu0 %4285
      %4287 = vrot.lane.b32.xlu0 %v3407, 111
      %v4288 = vpop.permute.xlu0 %4287
      %4289 = vrot.lane.b32.xlu0 %v3402, 111
      %v4290 = vpop.permute.xlu0 %4289
      %4291 = vrot.lane.b32.xlu0 %v3404, 111
      %v4292 = vpop.permute.xlu0 %4291
      %4293 = vrot.lane.b32.xlu0 %v3406, 111
      %v4294 = vpop.permute.xlu0 %4293
      %4295 = vrot.lane.b32.xlu0 %v3408, 111
      %v4296 = vpop.permute.xlu0 %4295
      %v4297 = vsel %vm1167, %v4282, %v4290
      %v4298 = vsel %vm1167, %v4284, %v4292
      %v4299 = vsel %vm1167, %v4286, %v4294
      %v4300 = vsel %vm1167, %v4288, %v4296
      %v4301 = vsel %vm1167, %v4290, %v4282
      %v4302 = vsel %vm1167, %v4292, %v4284
      %v4303 = vsel %vm1167, %v4294, %v4286
      %v4304 = vsel %vm1167, %v4296, %v4288
      %v4305 = vmul.f32 %v4297, %v3273
      %v4306 = vmul.f32 %v4301, %v3274
      %v4307 = vmul.f32 %v4298, %v3273
      %v4308 = vmul.f32 %v4302, %v3274
      %v4309 = vmul.f32 %v4299, %v3273
      %v4310 = vmul.f32 %v4303, %v3274
      %v4311 = vmul.f32 %v4300, %v3273
      %v4312 = vmul.f32 %v4304, %v3274
      %s4313 = scalar_lea.vmem %s1, 1120
      %v4314 = vld [vmem:[%s4313] sm:$0xff]
      %v4315 = vld [vmem:[%s4313 + $0x8] sm:$0xff]
      %v4316 = vld [vmem:[%s4313 + $0x10] sm:$0xff]
      %v4317 = vld [vmem:[%s4313 + $0x18] sm:$0xff]
      %v4319 = vsel %vm272, %v4314, 0
      %v4322 = vsel %vm272, %v4315, 0
      %v4325 = vsel %vm272, %v4316, 0
      %v4328 = vsel %vm272, %v4317, 0
      %4330 = vmatpush.msra.mxu0 0.0
      %4331 = vmatpush.msra.mxu0 0.0
      %4332 = vmatpush.msra.mxu0 0.0
      %4333 = vmatpush.msra.mxu0 0.0
      %4334 = vmatpush.msra.mxu0 0.0
      %4335 = vmatpush.msra.mxu0 0.0
      %4336 = vmatpush.msra.mxu0 0.0
      %4337 = vmatpush.msra.mxu0 0.0
      %4338 = vmatpush.msra.mxu0 0.0
      %4339 = vmatpush.msra.mxu0 0.0
      %4340 = vmatpush.msra.mxu0 0.0
      %4341 = vmatpush.msra.mxu0 0.0
      %4342 = vmatpush.msra.mxu0 %v4311
      %4343 = vmatpush.msra.mxu0 %v4309
      %4344 = vmatpush.msra.mxu0 %v4307
      %4345 = vmatpush.msra.mxu0 %v4305
      %4346 = vmatmul.f32.gmra.mxu0 %v4319
      %v4347 = vpop.f32.mrf.mxu0
      %v4348 = vadd.f32 0.0, %v4347
      %4349 = vmatmul.f32.gmra.mxu0 %v4322
      %v4350 = vpop.f32.mrf.mxu0
      %v4351 = vadd.f32 0.0, %v4350
      %4352 = vmatmul.f32.gmra.mxu0 %v4325
      %v4353 = vpop.f32.mrf.mxu0
      %v4354 = vadd.f32 0.0, %v4353
      %4355 = vmatmul.f32.gmra.mxu0 %v4328
      %v4356 = vpop.f32.mrf.mxu0
      %v4357 = vadd.f32 0.0, %v4356
      %4358 = vdwg.mxu0
      %4359 = vmatpush.msra.mxu0 0.0
      %4360 = vmatpush.msra.mxu0 0.0
      %4361 = vmatpush.msra.mxu0 0.0
      %4362 = vmatpush.msra.mxu0 0.0
      %4363 = vmatpush.msra.mxu0 0.0
      %4364 = vmatpush.msra.mxu0 0.0
      %4365 = vmatpush.msra.mxu0 0.0
      %4366 = vmatpush.msra.mxu0 0.0
      %4367 = vmatpush.msra.mxu0 0.0
      %4368 = vmatpush.msra.mxu0 0.0
      %4369 = vmatpush.msra.mxu0 0.0
      %4370 = vmatpush.msra.mxu0 0.0
      %4371 = vmatpush.msra.mxu0 %v4312
      %4372 = vmatpush.msra.mxu0 %v4310
      %4373 = vmatpush.msra.mxu0 %v4308
      %4374 = vmatpush.msra.mxu0 %v4306
      %4375 = vmatmul.f32.gmra.mxu0 %v4319
      %v4376 = vpop.f32.mrf.mxu0
      %v4377 = vadd.f32 0.0, %v4376
      %4378 = vmatmul.f32.gmra.mxu0 %v4322
      %v4379 = vpop.f32.mrf.mxu0
      %v4380 = vadd.f32 0.0, %v4379
      %4381 = vmatmul.f32.gmra.mxu0 %v4325
      %v4382 = vpop.f32.mrf.mxu0
      %v4383 = vadd.f32 0.0, %v4382
      %4384 = vmatmul.f32.gmra.mxu0 %v4328
      %v4385 = vpop.f32.mrf.mxu0
      %v4386 = vadd.f32 0.0, %v4385
      %4387 = vdwg.mxu0
      %v4388 = vadd.f32 %v4273, %v4348
      %v4389 = vadd.f32 %v4274, %v4377
      %v4390 = vadd.f32 %v4275, %v4351
      %v4391 = vadd.f32 %v4276, %v4380
      %v4392 = vadd.f32 %v4277, %v4354
      %v4393 = vadd.f32 %v4278, %v4383
      %v4394 = vadd.f32 %v4279, %v4357
      %v4395 = vadd.f32 %v4280, %v4386
      %v4396 = vld [vmem:[#allocation2] sm:$0xff]
      %v4397 = vld [vmem:[#allocation2 + $0x8] sm:$0xff]
      %v4398 = vld [vmem:[#allocation2 + $0x10] sm:$0xff]
      %v4399 = vld [vmem:[#allocation2 + $0x18] sm:$0xff]
      %v4400 = vld [vmem:[#allocation2 + $0x20] sm:$0xff]
      %v4401 = vld [vmem:[#allocation2 + $0x28] sm:$0xff]
      %v4402 = vld [vmem:[#allocation2 + $0x30] sm:$0xff]
      %v4403 = vld [vmem:[#allocation2 + $0x38] sm:$0xff]
      %v4404 = vadd.f32 %v4388, %v4396
      %v4405 = vadd.f32 %v4389, %v4397
      %v4406 = vadd.f32 %v4390, %v4398
      %v4407 = vadd.f32 %v4391, %v4399
      %v4408 = vadd.f32 %v4392, %v4400
      %v4409 = vadd.f32 %v4393, %v4401
      %v4410 = vadd.f32 %v4394, %v4402
      %v4411 = vadd.f32 %v4395, %v4403
      %4412 = vst [vmem:[%s197] sm:$0xff] %v4404
      %4413 = vst [vmem:[%s197 + $0x8] sm:$0xff] %v4405
      %4414 = vst [vmem:[%s197 + $0x10] sm:$0xff] %v4406
      %4415 = vst [vmem:[%s197 + $0x18] sm:$0xff] %v4407
      %4416 = vst [vmem:[%s197 + $0x20] sm:$0xff] %v4408
      %4417 = vst [vmem:[%s197 + $0x28] sm:$0xff] %v4409
      %4418 = vst [vmem:[%s197 + $0x30] sm:$0xff] %v4410
      %4419 = vst [vmem:[%s197 + $0x38] sm:$0xff] %v4411
      %p4420 = scmp.lt.s32.totalorder %s15, 1
      %s4421 = scalar_select %p4420, %s15, 1
      %s4422 = smul.addr %s4421, 8
      %s4423 = smul.addr %s4422, 8
      %s4424 = scalar_lea.vmem %s4, %s4423
      // Predicated region
      $region37: #{rcu_forward.1} parent=35 // pred_check
        %p4425 = pneg %p122
      $region38: #{rcu_forward.1} parent=35 // pred_check_branch
        %4427 = sbr.rel (%p4425) target = $region40
      $region39: #{rcu_forward.1} parent=35 // pred_region
        _
      $region40: #{rcu_forward.1} parent=35 // pred_fallthru
        _
    $region36: #{rcu_forward.1} parent=5 // pred_fallthru
      _
    %p4428 = scmp.le.s32.totalorder 2, %s10
    // Predicated region
    $region41: #{rcu_forward.1} parent=5 // pred_check
      %p4429 = pneg %p4428
    $region42: #{rcu_forward.1} parent=5 // pred_check_branch
      %4431 = sbr.rel (%p4429) target = $region44
    $region43: #{rcu_forward.1} parent=5 // pred_region
      %s4432 = ssub.s32 %s10, 2
      // Predicated region
      $region45: #{rcu_forward.1} parent=43 // pred_check
        %p4433 = pneg %p128
      $region46: #{rcu_forward.1} parent=43 // pred_check_branch
        %4435 = sbr.rel (%p4433) target = $region48
      $region47: #{rcu_forward.1} parent=43 // pred_region
        %p4436 = scmp.lt.s32.totalorder %s16, 1
        %s4437 = scalar_select %p4436, %s16, 1
        %s4438 = smul.addr %s4437, 8
        %s4439 = smul.addr %s4438, 8
        %s4440 = scalar_lea.vmem %s4, %s4439
      $region48: #{rcu_forward.1} parent=43 // pred_fallthru
        _
    $region44: #{rcu_forward.1} parent=5 // pred_fallthru
      _
  $region6: #{rcu_forward.1} parent=0 // loop_footer
    %s14 = sadd.s32 1, %s10
  $region7: #{rcu_forward.1} parent=0 // loop_footer_branch
    %9 = sbr.rel target = $region3
  $region8: #{rcu_forward.1} parent=0 // loop_exit
    _

</llo_original>
